<compile_context>
chip_gen: v7x
topology: tpu7x:2x2x1
jax: 0.10.0
libtpu: 0.0.40
codegen_flags: <defaults>
</compile_context>

<pallas_src>
import jax
import jax.numpy as jnp
from jax.experimental import pallas as pl
from jax.experimental.pallas import tpu as pltpu

TILE_B = 8  # images per grid step; TILE_B*12*12 = 1152 = 9*128 -> lane aligned


def _round_up(x, m):
    return ((x + m - 1) // m) * m


# ----------------------------------------------------------------------------
# Pallas kernels
# ----------------------------------------------------------------------------
def conv1_pool_relu_kernel(p_ref, w_ref, b_ref, o_ref):
    """conv1 (one matmul over all 4 pooling taps) -> maxpool -> +bias -> ReLU.

    p_ref: [K1p, 4*N]  bf16  patches; lane order (tap, image, pooled position)
    w_ref: [F1p, K1p]  bf16  conv1 weight (VMEM resident, zero-padded)
    b_ref: [F1p, 1]    f32
    o_ref: [F1p, N]    f32   N = TILE_B * 12 * 12 (lane-dense, 9*128)
    """
    n = o_ref.shape[-1]
    y = jnp.dot(w_ref[...], p_ref[...], preferred_element_type=jnp.float32)
    # 2x2 max-pool == max over the four 128-aligned lane slices (one per tap).
    h = jnp.maximum(jnp.maximum(y[:, 0 * n:1 * n], y[:, 1 * n:2 * n]),
                    jnp.maximum(y[:, 2 * n:3 * n], y[:, 3 * n:4 * n]))
    o_ref[...] = jnp.maximum(h + b_ref[...], 0.0)


def conv2_fc_head_kernel(p2_ref, w2_ref, b2_ref, wfc1_ref, bfc1_ref,
                         wfc2_ref, bfc2_ref, o_ref):
    """conv2 -> maxpool -> +bias -> ReLU -> flatten -> fc1 -> ReLU -> fc2
    -> log_softmax, fused in one kernel.

    p2_ref:   [4*TB, KBIGp] bf16  rows = (tap, image); cols = (pos, (c,di,dj))
    w2_ref:   [KBIGp, LSp]  bf16  block-diagonal conv2 weight kron(I_16, W2)
    b2_ref:   [1, LSp]      f32
    wfc1_ref: [LSp, H1p]    bf16  fc1 weight, rows in (pos-major, chan-minor)
    bfc1_ref: [1, H1p]      f32
    wfc2_ref: [H1p, Cp]     bf16
    bfc2_ref: [1, Cp]       f32   (-1e30 on padded class columns)
    o_ref:    [TB, Cp]      f32   padded log_softmax rows
    """
    tb = o_ref.shape[0]
    # conv2 over all four pooling taps in a single MXU matmul.
    y = jnp.dot(p2_ref[...], w2_ref[...], preferred_element_type=jnp.float32)
    # 2x2 max-pool = max over the 4 tap row-blocks (sublane-aligned slices).
    h = jnp.maximum(jnp.maximum(y[0 * tb:1 * tb], y[1 * tb:2 * tb]),
                    jnp.maximum(y[2 * tb:3 * tb], y[3 * tb:4 * tb]))
    h = jnp.maximum(h + b2_ref[...], 0.0)   # per-filter bias + ReLU (post-pool)
    # TODO(synk): nn.Dropout(0.5) treated as identity (inference semantics).
    z = jnp.dot(h.astype(jnp.bfloat16), wfc1_ref[...],
                preferred_element_type=jnp.float32)
    z = jnp.maximum(z + bfc1_ref[...], 0.0)
    logits = jnp.dot(z.astype(jnp.bfloat16), wfc2_ref[...],
                     preferred_element_type=jnp.float32) + bfc2_ref[...]
    m = jnp.max(logits, axis=-1, keepdims=True)
    lse = jnp.log(jnp.sum(jnp.exp(logits - m), axis=-1, keepdims=True)) + m
    o_ref[...] = logits - lse


# ----------------------------------------------------------------------------
# pallas_call wrappers
# ----------------------------------------------------------------------------
def _compiler_params():
    return pltpu.CompilerParams(
        dimension_semantics=("parallel",),      # shard batch tiles across TCs
        vmem_limit_bytes=32 * 1024 * 1024,      # tiles are small; fits v7x too
    )


def conv1_pool_relu(P1, W1p, b1p):
    GB, K1p, four_n = P1.shape
    F1p = W1p.shape[0]
    N = four_n // 4
    return pl.pallas_call(
        conv1_pool_relu_kernel,
        out_shape=jax.ShapeDtypeStruct((GB, F1p, N), jnp.float32),
        grid=(GB,),
        in_specs=[
            pl.BlockSpec((None, K1p, four_n), lambda i: (i, 0, 0)),
            pl.BlockSpec((F1p, K1p), lambda i: (0, 0)),   # VMEM resident
            pl.BlockSpec((F1p, 1), lambda i: (0, 0)),
        ],
        out_specs=pl.BlockSpec((None, F1p, N), lambda i: (i, 0, 0)),
        compiler_params=_compiler_params(),
    )(P1, W1p, b1p)


def conv2_fc_head(P2, W2big, b2row, Wfc1p, bfc1p, Wfc2p, bfc2p):
    GB, R, KBIGp = P2.shape
    TB = R // 4
    LSp = W2big.shape[1]
    H1p = Wfc1p.shape[1]
    Cp = Wfc2p.shape[1]
    return pl.pallas_call(
        conv2_fc_head_kernel,
        out_shape=jax.ShapeDtypeStruct((GB * TB, Cp), jnp.float32),
        grid=(GB,),
        in_specs=[
            pl.BlockSpec((None, R, KBIGp), lambda i: (i, 0, 0)),
            pl.BlockSpec((KBIGp, LSp), lambda i: (0, 0)),  # weights stay in VMEM
            pl.BlockSpec((1, LSp), lambda i: (0, 0)),
            pl.BlockSpec((LSp, H1p), lambda i: (0, 0)),
            pl.BlockSpec((1, H1p), lambda i: (0, 0)),
            pl.BlockSpec((H1p, Cp), lambda i: (0, 0)),
            pl.BlockSpec((1, Cp), lambda i: (0, 0)),
        ],
        out_specs=pl.BlockSpec((TB, Cp), lambda i: (i, 0)),
        compiler_params=_compiler_params(),
    )(P2, W2big, b2row, Wfc1p, bfc1p, Wfc2p, bfc2p)


# ----------------------------------------------------------------------------
# Host-side (XLA) patch extraction in the kernels' lane-dense layouts.
# ----------------------------------------------------------------------------
def _conv1_pool_patches(x, k, tile_b):
    """x: [Bp, H, W] (single channel). Returns [GB, k*k, 4*tile_b*ph*pw], ph, pw.
    Lane order within a tile: (pool tap, image, pooled row, pooled col);
    K order (di, dj) matches torch conv1 weight flattening."""
    Bp, H, W = x.shape
    oh, ow = H - k + 1, W - k + 1
    ph, pw = oh // 2, ow // 2
    K = k * k
    taps = []
    for a in range(2):
        for b in range(2):
            offs = []
            for di in range(k):
                for dj in range(k):
                    sl = x[:, a + di: a + di + 2 * ph: 2,
                           b + dj: b + dj + 2 * pw: 2]            # [Bp, ph, pw]
                    offs.append(sl.reshape(Bp, ph * pw))
            taps.append(jnp.stack(offs, axis=1))                  # [Bp, K, S]
    P = jnp.stack(taps, axis=1)                                   # [Bp, 4, K, S]
    GB = Bp // tile_b
    P = P.reshape(GB, tile_b, 4, K, ph * pw)
    P = jnp.transpose(P, (0, 3, 2, 1, 4))                         # [GB,K,4,TB,S]
    return P.reshape(GB, K, 4 * tile_b * ph * pw), ph, pw


def _conv2_pool_patches_blockdiag(h_tiles, c_used, k):
    """h_tiles: [GB, Cp, TB, H, W] (kernel-native tiled layout; only the first
    `c_used` channels are real).  Returns [GB, 4*TB, (ph*pw)*c_used*k*k], ph, pw.
    Row order (tap, image); column order (pooled position, (c, di, dj)) — the
    layout consumed by the block-diagonal conv2 weight kron(I_{ph*pw}, W2)."""
    GB, _, TB, H, W = h_tiles.shape
    oh, ow = H - k + 1, W - k + 1
    ph, pw = oh // 2, ow // 2
    K = c_used * k * k
    taps = []
    for a in range(2):
        for b in range(2):
            feats = []
            for c in range(c_used):
                for di in range(k):
                    for dj in range(k):
                        sl = h_tiles[:, c, :, a + di: a + di + 2 * ph: 2,
                                     b + dj: b + dj + 2 * pw: 2]  # [GB,TB,ph,pw]
                        feats.append(sl)
            f = jnp.stack(feats, axis=-1)                         # [GB,TB,ph,pw,K]
            taps.append(f.reshape(GB, TB, ph * pw * K))
    P = jnp.stack(taps, axis=1)                                   # [GB,4,TB,P*K]
    return P.reshape(GB, 4 * TB, ph * pw * K), ph, pw


# ----------------------------------------------------------------------------
# Model
# ----------------------------------------------------------------------------
def init_params(key, f1, k1, f2, k2):
    after_pool1 = (28 - k1 + 1) // 2
    after_pool2 = (after_pool1 - k2 + 1) // 2
    linear_size = f2 * after_pool2 * after_pool2
    ks = jax.random.split(key, 8)
    p = {
        # torch layouts: conv [F, Cin, kh, kw], linear [out, in]
        "w1": 0.1 * jax.random.normal(ks[0], (f1, 1, k1, k1), jnp.float32),
        "b1": 0.1 * jax.random.normal(ks[1], (f1,), jnp.float32),
        "w2": 0.1 * jax.random.normal(ks[2], (f2, f1, k2, k2), jnp.float32),
        "b2": 0.1 * jax.random.normal(ks[3], (f2,), jnp.float32),
        "wfc1": 0.1 * jax.random.normal(ks[4], (50, linear_size), jnp.float32),
        "bfc1": 0.1 * jax.random.normal(ks[5], (50,), jnp.float32),
        "wfc2": 0.1 * jax.random.normal(ks[6], (10, 50), jnp.float32),
        "bfc2": 0.1 * jax.random.normal(ks[7], (10,), jnp.float32),
    }
    return p, (f1, k1, f2, k2, after_pool1, after_pool2, linear_size)


def fashion_convnet_forward(x_nchw, params, cfg):
    f1, k1, f2, k2, ap1, ap2, linear_size = cfg
    B = x_nchw.shape[0]
    Bp = _round_up(B, TILE_B)
    GB = Bp // TILE_B

    x = x_nchw[:, 0].astype(jnp.float32)                          # [B, 28, 28]
    if Bp != B:
        x = jnp.pad(x, ((0, Bp - B), (0, 0), (0, 0)))

    # ---- stage A: conv1 -> maxpool(2) -> ReLU -----------------------------
    P1, ph1, pw1 = _conv1_pool_patches(x, k1, TILE_B)             # [GB,25,4608]
    K1 = k1 * k1
    K1p = _round_up(K1, 32)        # bf16 sublane-aligned contraction dim
    F1p = _round_up(f1, 8)         # full f32 sublane tile on the output
    P1 = jnp.pad(P1, ((0, 0), (0, K1p - K1), (0, 0))).astype(jnp.bfloat16)
    W1p = jnp.pad(params["w1"].reshape(f1, K1),
                  ((0, F1p - f1), (0, K1p - K1))).astype(jnp.bfloat16)
    b1p = jnp.pad(params["b1"], (0, F1p - f1)).reshape(F1p, 1).astype(jnp.float32)
    h1 = conv1_pool_relu(P1, W1p, b1p)                            # [GB,F1p,TB*144]
    h1 = h1.reshape(GB, F1p, TILE_B, ph1, pw1)                    # tiled layout

    # ---- stage B: conv2 + maxpool + ReLU + flatten + fc head (fused) ------
    P2, ph2, pw2 = _conv2_pool_patches_blockdiag(h1, f1, k2)      # [GB,32,1600]
    npos = ph2 * pw2                                              # == ap2*ap2
    K2 = f1 * k2 * k2
    LS = f2 * npos                                                # linear_size
    LSp = _round_up(LS, 128)
    hidden = params["wfc1"].shape[0]
    H1p = _round_up(hidden, 64)
    ncls = params["wfc2"].shape[0]
    Cp = _round_up(ncls, 128)
    KBIG = npos * K2
    KBIGp = _round_up(KBIG, 128)   # lane-aligned conv2 contraction dim

    P2 = jnp.pad(P2, ((0, 0), (0, 0), (0, KBIGp - KBIG))).astype(jnp.bfloat16)

    # Block-diagonal conv2 weight: one matmul emits flattened per-image rows
    # in (pos-major, channel-minor) order.
    W2mat = params["w2"].reshape(f2, K2).T                        # [K2, F2]
    W2big = jnp.kron(jnp.eye(npos, dtype=W2mat.dtype), W2mat)     # [KBIG, LS]
    W2big = jnp.pad(W2big, ((0, KBIGp - KBIG), (0, LSp - LS))).astype(jnp.bfloat16)
    b2row = jnp.pad(jnp.tile(params["b2"], npos), (0, LSp - LS))
    b2row = b2row.reshape(1, LSp).astype(jnp.float32)

    # fc1 weight repacked from torch's (channel-major) flatten order to the
    # kernel's (pos-major) order; hidden padded 50 -> 64.
    wfc1 = params["wfc1"].reshape(hidden, f2, npos)
    wfc1 = jnp.transpose(wfc1, (2, 1, 0)).reshape(LS, hidden)
    Wfc1p = jnp.pad(wfc1, ((0, LSp - LS), (0, H1p - hidden))).astype(jnp.bfloat16)
    bfc1p = jnp.pad(params["bfc1"], (0, H1p - hidden)).reshape(1, H1p)
    bfc1p = bfc1p.astype(jnp.float32)

    # fc2: classes padded 10 -> 128 (lane-dense softmax reduction); padded
    # classes get a -1e30 bias so they vanish under log_softmax.
    Wfc2p = jnp.pad(params["wfc2"].T,
                    ((0, H1p - hidden), (0, Cp - ncls))).astype(jnp.bfloat16)
    bfc2p = jnp.concatenate(
        [params["bfc2"].astype(jnp.float32),
         jnp.full((Cp - ncls,), -1e30, jnp.float32)]).reshape(1, Cp)

    out = conv2_fc_head(P2, W2big, b2row, Wfc1p, bfc1p, Wfc2p, bfc2p)  # [Bp,Cp]
    return out[:B, :ncls]


# ----------------------------------------------------------------------------
# Pure-JAX reference (f32) for correctness checking.
# ----------------------------------------------------------------------------
def reference_forward(x_nchw, params):
    dn = ("NCHW", "OIHW", "NCHW")
    y = jax.lax.conv_general_dilated(x_nchw, params["w1"], (1, 1), "VALID",
                                     dimension_numbers=dn)
    y = y + params["b1"][None, :, None, None]
    y = jax.lax.reduce_window(y, -jnp.inf, jax.lax.max,
                              (1, 1, 2, 2), (1, 1, 2, 2), "VALID")
    y = jnp.maximum(y, 0.0)
    y = jax.lax.conv_general_dilated(y, params["w2"], (1, 1), "VALID",
                                     dimension_numbers=dn)
    y = y + params["b2"][None, :, None, None]
    y = jax.lax.reduce_window(y, -jnp.inf, jax.lax.max,
                              (1, 1, 2, 2), (1, 1, 2, 2), "VALID")
    y = jnp.maximum(y, 0.0)
    flat = y.reshape(y.shape[0], -1)
    z = jnp.maximum(flat @ params["wfc1"].T + params["bfc1"], 0.0)
    logits = z @ params["wfc2"].T + params["bfc2"]
    return jax.nn.log_softmax(logits, axis=-1)


if __name__ == "__main__":
    # FashionConvNet(num_filters_conv1=4, kernel_size_conv1=5,
    #                num_filters_conv2=8, kernel_size_conv2=5)
    key = jax.random.PRNGKey(0)
    kp, kx = jax.random.split(key)
    params, cfg = init_params(kp, 4, 5, 8, 5)

    B = 16                                           # 2 batch tiles -> grid=(2,)
    x = jax.random.normal(kx, (B, 1, 28, 28), jnp.float32)   # NCHW like PyTorch

    fwd = jax.jit(fashion_convnet_forward, static_argnums=(2,))
    out = jax.block_until_ready(fwd(x, params, cfg))

    assert out.shape == (B, 10)
    # log_softmax rows should sum to ~1 in prob space
    assert jnp.allclose(jnp.sum(jnp.exp(out), axis=1), 1.0, atol=1e-3)

    ref = jax.block_until_ready(reference_forward(x, params))
    max_err = float(jnp.max(jnp.abs(out - ref)))
    assert max_err < 0.15, f"max |pallas - ref| = {max_err}"
    print("KERNEL_OK")
</pallas_src>

<mosaic_0001>
module attributes {stable_mosaic.version = 11 : i64} {
  func.func @conv1_pool_relu_kernel(%arg0: i32, %arg1: memref<1x32x4608xbf16, #tpu.memory_space<vmem>>, %arg2: memref<8x32xbf16, #tpu.memory_space<vmem>>, %arg3: memref<8x1xf32, #tpu.memory_space<vmem>>, %arg4: memref<1x8x1152xf32, #tpu.memory_space<vmem>>) attributes {dimension_semantics = [#tpu.dimension_semantics<parallel>], iteration_bounds = array<i64: 2>, scalar_prefetch = 0 : i64, scratch_operands = 0 : i64, tpu.core_type = #tpu.core_type<tc>, window_params = [{transform_indices = @transform_0, window_bounds = array<i64: 1, 32, 4608>}, {pipeline_mode = #tpu.pipeline_mode<synchronous>, transform_indices = @transform_1, window_bounds = array<i64: 8, 32>}, {pipeline_mode = #tpu.pipeline_mode<synchronous>, transform_indices = @transform_2, window_bounds = array<i64: 8, 1>}, {transform_indices = @transform_3, window_bounds = array<i64: 1, 8, 1152>}]} {
    %c0 = arith.constant 0 : index
    %c0_0 = arith.constant 0 : index
    %0 = vector.load %arg2[%c0, %c0_0] : memref<8x32xbf16, #tpu.memory_space<vmem>>, vector<8x32xbf16>
    %c0_1 = arith.constant 0 : index
    %c0_2 = arith.constant 0 : index
    %c0_3 = arith.constant 0 : index
    %1 = vector.load %arg1[%c0_1, %c0_2, %c0_3] : memref<1x32x4608xbf16, #tpu.memory_space<vmem>>, vector<1x32x4608xbf16>
    %2 = vector.shape_cast %1 : vector<1x32x4608xbf16> to vector<32x4608xbf16>
    %cst = arith.constant dense<0.000000e+00> : vector<8x4608xf32>
    %3 = tpu.matmul %0, %2, %cst {dimension_numbers = #tpu.dot_dimension_numbers<[1], [0], [0], [1], [0, 0, 1, 1], [], []>} : vector<8x32xbf16>, vector<32x4608xbf16>, vector<8x4608xf32> -> vector<8x4608xf32>
    %4 = vector.extract_strided_slice %3 {offsets = [0, 0], sizes = [8, 1152], strides = [1, 1]} : vector<8x4608xf32> to vector<8x1152xf32>
    %5 = vector.extract_strided_slice %3 {offsets = [0, 1152], sizes = [8, 1152], strides = [1, 1]} : vector<8x4608xf32> to vector<8x1152xf32>
    %6 = arith.maximumf %4, %5 : vector<8x1152xf32>
    %7 = vector.extract_strided_slice %3 {offsets = [0, 2304], sizes = [8, 1152], strides = [1, 1]} : vector<8x4608xf32> to vector<8x1152xf32>
    %8 = vector.extract_strided_slice %3 {offsets = [0, 3456], sizes = [8, 1152], strides = [1, 1]} : vector<8x4608xf32> to vector<8x1152xf32>
    %9 = arith.maximumf %7, %8 : vector<8x1152xf32>
    %10 = arith.maximumf %6, %9 : vector<8x1152xf32>
    %c0_4 = arith.constant 0 : index
    %c0_5 = arith.constant 0 : index
    %11 = vector.load %arg3[%c0_4, %c0_5] : memref<8x1xf32, #tpu.memory_space<vmem>>, vector<8x1xf32>
    %12 = vector.broadcast %11 : vector<8x1xf32> to vector<8x1152xf32>
    %13 = arith.addf %10, %12 : vector<8x1152xf32>
    %cst_6 = arith.constant 0.000000e+00 : f32
    %14 = vector.broadcast %cst_6 : f32 to vector<8x1152xf32>
    %15 = arith.maximumf %13, %14 : vector<8x1152xf32>
    %c0_7 = arith.constant 0 : index
    %c0_8 = arith.constant 0 : index
    %c0_9 = arith.constant 0 : index
    %16 = vector.load %arg4[%c0_7, %c0_8, %c0_9] : memref<1x8x1152xf32, #tpu.memory_space<vmem>>, vector<1x8x1152xf32>
    %17 = vector.shape_cast %16 : vector<1x8x1152xf32> to vector<8x1152xf32>
    %18 = vector.shape_cast %15 : vector<8x1152xf32> to vector<1x8x1152xf32>
    tpu.vector_store %arg4[%c0_7, %c0_8, %c0_9], %18 {strides = array<i32>} : memref<1x8x1152xf32, #tpu.memory_space<vmem>>, vector<1x8x1152xf32>,
    return
  }
  func.func @transform_0(%arg0: i32) -> (i32, i32, i32) {
    %c0_i32 = arith.constant 0 : i32
    %c0_i32_0 = arith.constant 0 : i32
    %c0_i32_1 = arith.constant 0 : i32
    return %arg0, %c0_i32, %c0_i32_0 : i32, i32, i32
  }
  func.func @transform_1(%arg0: i32) -> (i32, i32) {
    %c0_i32 = arith.constant 0 : i32
    %c0_i32_0 = arith.constant 0 : i32
    %c0_i32_1 = arith.constant 0 : i32
    return %c0_i32, %c0_i32_0 : i32, i32
  }
  func.func @transform_2(%arg0: i32) -> (i32, i32) {
    %c0_i32 = arith.constant 0 : i32
    %c0_i32_0 = arith.constant 0 : i32
    %c0_i32_1 = arith.constant 0 : i32
    return %c0_i32, %c0_i32_0 : i32, i32
  }
  func.func @transform_3(%arg0: i32) -> (i32, i32, i32) {
    %c0_i32 = arith.constant 0 : i32
    %c0_i32_0 = arith.constant 0 : i32
    %c0_i32_1 = arith.constant 0 : i32
    return %arg0, %c0_i32, %c0_i32_0 : i32, i32, i32
  }
}

module attributes {stable_mosaic.version = 11 : i64} {
  func.func @conv2_fc_head_kernel(%arg0: i32, %arg1: memref<1x32x1664xbf16, #tpu.memory_space<vmem>>, %arg2: memref<1664x128xbf16, #tpu.memory_space<vmem>>, %arg3: memref<1x128xf32, #tpu.memory_space<vmem>>, %arg4: memref<128x64xbf16, #tpu.memory_space<vmem>>, %arg5: memref<1x64xf32, #tpu.memory_space<vmem>>, %arg6: memref<64x128xbf16, #tpu.memory_space<vmem>>, %arg7: memref<1x128xf32, #tpu.memory_space<vmem>>, %arg8: memref<8x128xf32, #tpu.memory_space<vmem>>) attributes {dimension_semantics = [#tpu.dimension_semantics<parallel>], iteration_bounds = array<i64: 2>, scalar_prefetch = 0 : i64, scratch_operands = 0 : i64, tpu.core_type = #tpu.core_type<tc>, window_params = [{transform_indices = @transform_0, window_bounds = array<i64: 1, 32, 1664>}, {pipeline_mode = #tpu.pipeline_mode<synchronous>, transform_indices = @transform_1, window_bounds = array<i64: 1664, 128>}, {pipeline_mode = #tpu.pipeline_mode<synchronous>, transform_indices = @transform_2, window_bounds = array<i64: 1, 128>}, {pipeline_mode = #tpu.pipeline_mode<synchronous>, transform_indices = @transform_3, window_bounds = array<i64: 128, 64>}, {pipeline_mode = #tpu.pipeline_mode<synchronous>, transform_indices = @transform_4, window_bounds = array<i64: 1, 64>}, {pipeline_mode = #tpu.pipeline_mode<synchronous>, transform_indices = @transform_5, window_bounds = array<i64: 64, 128>}, {pipeline_mode = #tpu.pipeline_mode<synchronous>, transform_indices = @transform_6, window_bounds = array<i64: 1, 128>}, {transform_indices = @transform_7, window_bounds = array<i64: 8, 128>}]} {
    %c0 = arith.constant 0 : index
    %c0_0 = arith.constant 0 : index
    %c0_1 = arith.constant 0 : index
    %0 = vector.load %arg1[%c0, %c0_0, %c0_1] : memref<1x32x1664xbf16, #tpu.memory_space<vmem>>, vector<1x32x1664xbf16>
    %1 = vector.shape_cast %0 : vector<1x32x1664xbf16> to vector<32x1664xbf16>
    %c0_2 = arith.constant 0 : index
    %c0_3 = arith.constant 0 : index
    %2 = vector.load %arg2[%c0_2, %c0_3] : memref<1664x128xbf16, #tpu.memory_space<vmem>>, vector<1664x128xbf16>
    %cst = arith.constant dense<0.000000e+00> : vector<32x128xf32>
    %3 = tpu.matmul %1, %2, %cst {dimension_numbers = #tpu.dot_dimension_numbers<[1], [0], [0], [1], [0, 0, 1, 1], [], []>} : vector<32x1664xbf16>, vector<1664x128xbf16>, vector<32x128xf32> -> vector<32x128xf32>
    %4 = vector.extract_strided_slice %3 {offsets = [0, 0], sizes = [8, 128], strides = [1, 1]} : vector<32x128xf32> to vector<8x128xf32>
    %5 = vector.extract_strided_slice %3 {offsets = [8, 0], sizes = [8, 128], strides = [1, 1]} : vector<32x128xf32> to vector<8x128xf32>
    %6 = arith.maximumf %4, %5 : vector<8x128xf32>
    %7 = vector.extract_strided_slice %3 {offsets = [16, 0], sizes = [8, 128], strides = [1, 1]} : vector<32x128xf32> to vector<8x128xf32>
    %8 = vector.extract_strided_slice %3 {offsets = [24, 0], sizes = [8, 128], strides = [1, 1]} : vector<32x128xf32> to vector<8x128xf32>
    %9 = arith.maximumf %7, %8 : vector<8x128xf32>
    %10 = arith.maximumf %6, %9 : vector<8x128xf32>
    %c0_4 = arith.constant 0 : index
    %c0_5 = arith.constant 0 : index
    %11 = vector.load %arg3[%c0_4, %c0_5] : memref<1x128xf32, #tpu.memory_space<vmem>>, vector<1x128xf32>
    %12 = vector.broadcast %11 : vector<1x128xf32> to vector<8x128xf32>
    %13 = arith.addf %10, %12 : vector<8x128xf32>
    %cst_6 = arith.constant 0.000000e+00 : f32
    %14 = vector.broadcast %cst_6 : f32 to vector<8x128xf32>
    %15 = arith.maximumf %13, %14 : vector<8x128xf32>
    %16 = arith.truncf %15 : vector<8x128xf32> to vector<8x128xbf16>
    %c0_7 = arith.constant 0 : index
    %c0_8 = arith.constant 0 : index
    %17 = vector.load %arg4[%c0_7, %c0_8] : memref<128x64xbf16, #tpu.memory_space<vmem>>, vector<128x64xbf16>
    %cst_9 = arith.constant dense<0.000000e+00> : vector<8x64xf32>
    %18 = tpu.matmul %16, %17, %cst_9 {dimension_numbers = #tpu.dot_dimension_numbers<[1], [0], [0], [1], [0, 0, 1, 1], [], []>} : vector<8x128xbf16>, vector<128x64xbf16>, vector<8x64xf32> -> vector<8x64xf32>
    %c0_10 = arith.constant 0 : index
    %c0_11 = arith.constant 0 : index
    %19 = vector.load %arg5[%c0_10, %c0_11] : memref<1x64xf32, #tpu.memory_space<vmem>>, vector<1x64xf32>
    %20 = vector.broadcast %19 : vector<1x64xf32> to vector<8x64xf32>
    %21 = arith.addf %18, %20 : vector<8x64xf32>
    %cst_12 = arith.constant 0.000000e+00 : f32
    %22 = vector.broadcast %cst_12 : f32 to vector<8x64xf32>
    %23 = arith.maximumf %21, %22 : vector<8x64xf32>
    %24 = arith.truncf %23 : vector<8x64xf32> to vector<8x64xbf16>
    %c0_13 = arith.constant 0 : index
    %c0_14 = arith.constant 0 : index
    %25 = vector.load %arg6[%c0_13, %c0_14] : memref<64x128xbf16, #tpu.memory_space<vmem>>, vector<64x128xbf16>
    %cst_15 = arith.constant dense<0.000000e+00> : vector<8x128xf32>
    %26 = tpu.matmul %24, %25, %cst_15 {dimension_numbers = #tpu.dot_dimension_numbers<[1], [0], [0], [1], [0, 0, 1, 1], [], []>} : vector<8x64xbf16>, vector<64x128xbf16>, vector<8x128xf32> -> vector<8x128xf32>
    %c0_16 = arith.constant 0 : index
    %c0_17 = arith.constant 0 : index
    %27 = vector.load %arg7[%c0_16, %c0_17] : memref<1x128xf32, #tpu.memory_space<vmem>>, vector<1x128xf32>
    %28 = vector.broadcast %27 : vector<1x128xf32> to vector<8x128xf32>
    %29 = arith.addf %26, %28 : vector<8x128xf32>
    %cst_18 = arith.constant dense<0xFF800000> : vector<8xf32>
    %30 = vector.multi_reduction <maximumf>, %29, %cst_18 [1] : vector<8x128xf32> to vector<8xf32>
    %31 = vector.shape_cast %30 : vector<8xf32> to vector<8x1xf32>
    %32 = vector.broadcast %31 : vector<8x1xf32> to vector<8x128xf32>
    %33 = arith.subf %29, %32 : vector<8x128xf32>
    %34 = math.exp %33 : vector<8x128xf32>
    %cst_19 = arith.constant dense<0.000000e+00> : vector<8xf32>
    %35 = vector.multi_reduction <add>, %34, %cst_19 [1] : vector<8x128xf32> to vector<8xf32>
    %36 = vector.shape_cast %35 : vector<8xf32> to vector<8x1xf32>
    %37 = math.log %36 : vector<8x1xf32>
    %38 = arith.addf %37, %31 : vector<8x1xf32>
    %39 = vector.broadcast %38 : vector<8x1xf32> to vector<8x128xf32>
    %40 = arith.subf %29, %39 : vector<8x128xf32>
    %c0_20 = arith.constant 0 : index
    %c0_21 = arith.constant 0 : index
    %41 = vector.load %arg8[%c0_20, %c0_21] : memref<8x128xf32, #tpu.memory_space<vmem>>, vector<8x128xf32>
    tpu.vector_store %arg8[%c0_20, %c0_21], %40 {strides = array<i32>} : memref<8x128xf32, #tpu.memory_space<vmem>>, vector<8x128xf32>,
    return
  }
  func.func @transform_0(%arg0: i32) -> (i32, i32, i32) {
    %c0_i32 = arith.constant 0 : i32
    %c0_i32_0 = arith.constant 0 : i32
    %c0_i32_1 = arith.constant 0 : i32
    return %arg0, %c0_i32, %c0_i32_0 : i32, i32, i32
  }
  func.func @transform_1(%arg0: i32) -> (i32, i32) {
    %c0_i32 = arith.constant 0 : i32
    %c0_i32_0 = arith.constant 0 : i32
    %c0_i32_1 = arith.constant 0 : i32
    return %c0_i32, %c0_i32_0 : i32, i32
  }
  func.func @transform_2(%arg0: i32) -> (i32, i32) {
    %c0_i32 = arith.constant 0 : i32
    %c0_i32_0 = arith.constant 0 : i32
    %c0_i32_1 = arith.constant 0 : i32
    return %c0_i32, %c0_i32_0 : i32, i32
  }
  func.func @transform_3(%arg0: i32) -> (i32, i32) {
    %c0_i32 = arith.constant 0 : i32
    %c0_i32_0 = arith.constant 0 : i32
    %c0_i32_1 = arith.constant 0 : i32
    return %c0_i32, %c0_i32_0 : i32, i32
  }
  func.func @transform_4(%arg0: i32) -> (i32, i32) {
    %c0_i32 = arith.constant 0 : i32
    %c0_i32_0 = arith.constant 0 : i32
    %c0_i32_1 = arith.constant 0 : i32
    return %c0_i32, %c0_i32_0 : i32, i32
  }
  func.func @transform_5(%arg0: i32) -> (i32, i32) {
    %c0_i32 = arith.constant 0 : i32
    %c0_i32_0 = arith.constant 0 : i32
    %c0_i32_1 = arith.constant 0 : i32
    return %c0_i32, %c0_i32_0 : i32, i32
  }
  func.func @transform_6(%arg0: i32) -> (i32, i32) {
    %c0_i32 = arith.constant 0 : i32
    %c0_i32_0 = arith.constant 0 : i32
    %c0_i32_1 = arith.constant 0 : i32
    return %c0_i32, %c0_i32_0 : i32, i32
  }
  func.func @transform_7(%arg0: i32) -> (i32, i32) {
    %c0_i32 = arith.constant 0 : i32
    %c0_i32_0 = arith.constant 0 : i32
    return %arg0, %c0_i32 : i32, i32
  }
}

</mosaic_0001>

<llo_original>
// kernel: fashion_convnet_forward.2
$region0: #{fashion_convnet_forward.2}
  #allocation0 [shape = 'u32[]', space=smem, size = 0x4, offset = 0x4, fixed_abs, tag = 'smem constant byte address 0x4 - core index']
  #allocation1 [shape = 'u32[144,128]{1,0:T(1,128)}', space=vmem, size = 0x12000, scoped, tag = 'internal scratch']
  %s0 = inlined_call_operand.vmem [shape: bf16[2,32,4608], index: 0, kind: input, shape index: {}]
  %s1 = inlined_call_operand.vmem [shape: bf16[8,32], index: 1, kind: input, shape index: {}]
  %s2 = inlined_call_operand.vmem [shape: f32[8,1], index: 2, kind: input, shape index: {}]
  %s3 = inlined_call_operand.vmem [shape: f32[2,8,1152], index: 3, kind: output, shape index: {}]
  %s4 = sld [smem:[#allocation0]]
  $region45: #{fashion_convnet_forward.2} parent=0
    _
  %s6 = ssub.s32 1, %s4
  %s7 = scalar_select 0, %s6, %s4
  loop: start=0, step=1, limit=4
  $region2: #{fashion_convnet_forward.2} parent=0 // loop_pre_header
    _
  $region3: #{fashion_convnet_forward.2} parent=0 // loop_header
    %s9 = sphi 0, %s13
    %p10 = scmp.ge.s32.totalorder %s9, 4
    %s19 = sphi 0, %s21
    %s22 = sphi 0, %s19
    %s23 = sphi 0, %s22
    %s39 = sphi 0, %s23
    %s43 = sphi 0, %s43
    %s45 = sphi 0, %s43
    %s46 = sphi 0, %s45
    %s60 = sphi 0, %s46
    %s64 = sphi 0, %s64
    %s66 = sphi 0, %s64
    %s67 = sphi 0, %s66
    %s81 = sphi 0, %s67
    %s87 = sphi 0, %s89
    %s90 = sphi 0, %s87
    %s91 = sphi 0, %s90
    %s107 = sphi 0, %s91
  $region4: #{fashion_convnet_forward.2} parent=0 // loop_header_branch
    %12 = sbr.rel (%p10) target = $region8
  $region5: #{fashion_convnet_forward.2} parent=0 // loop_body
    %s14 = ssub.s32 %s9, 1
    %s15 = ssub.s32 %s9, 2
    %s16 = sadd.s32 %s9, 1
    %s17 = ssub.s32 %s9, %s16
    %p18 = scmp.eq.s32.totalorder %s17, 0
    %s20 = sadd.s32 %s19, 1
    %s21 = scalar_select %p18, %s19, %s20
    %p24 = pneg %p18
    %p25 = scmp.eq.s32.totalorder %s9, 1
    %p26 = por %p24, %p25
    %p27 = scmp.ne.s32.totalorder %s19, %s22
    %p28 = scmp.eq.s32.totalorder %s9, 0
    %p29 = por %p27, %p28
    %p30 = scmp.ne.s32.totalorder %s19, %s22
    %p31 = scmp.eq.s32.totalorder %s14, 1
    %p32 = por %p30, %p31
    %p33 = scmp.ne.s32.totalorder %s22, %s23
    %p34 = scmp.eq.s32.totalorder %s14, 0
    %p35 = por %p33, %p34
    %p36 = scmp.ne.s32.totalorder %s22, %s23
    %p37 = scmp.eq.s32.totalorder %s15, 1
    %p38 = por %p36, %p37
    %p40 = scmp.ne.s32.totalorder %s23, %s39
    %p41 = scmp.eq.s32.totalorder %s15, 0
    %p42 = por %p40, %p41
    %s44 = sadd.s32 %s43, 1
    %p47 = scmp.eq.s32.totalorder %s9, 1
    %p48 = scmp.ne.s32.totalorder %s43, %s45
    %p49 = scmp.eq.s32.totalorder %s9, 0
    %p50 = por %p48, %p49
    %p51 = scmp.ne.s32.totalorder %s43, %s45
    %p52 = scmp.eq.s32.totalorder %s14, 1
    %p53 = por %p51, %p52
    %p54 = scmp.ne.s32.totalorder %s45, %s46
    %p55 = scmp.eq.s32.totalorder %s14, 0
    %p56 = por %p54, %p55
    %p57 = scmp.ne.s32.totalorder %s45, %s46
    %p58 = scmp.eq.s32.totalorder %s15, 1
    %p59 = por %p57, %p58
    %p61 = scmp.ne.s32.totalorder %s46, %s60
    %p62 = scmp.eq.s32.totalorder %s15, 0
    %p63 = por %p61, %p62
    %s65 = sadd.s32 %s64, 1
    %p68 = scmp.eq.s32.totalorder %s9, 1
    %p69 = scmp.ne.s32.totalorder %s64, %s66
    %p70 = scmp.eq.s32.totalorder %s9, 0
    %p71 = por %p69, %p70
    %p72 = scmp.ne.s32.totalorder %s64, %s66
    %p73 = scmp.eq.s32.totalorder %s14, 1
    %p74 = por %p72, %p73
    %p75 = scmp.ne.s32.totalorder %s66, %s67
    %p76 = scmp.eq.s32.totalorder %s14, 0
    %p77 = por %p75, %p76
    %p78 = scmp.ne.s32.totalorder %s66, %s67
    %p79 = scmp.eq.s32.totalorder %s15, 1
    %p80 = por %p78, %p79
    %p82 = scmp.ne.s32.totalorder %s67, %s81
    %p83 = scmp.eq.s32.totalorder %s15, 0
    %p84 = por %p82, %p83
    %s85 = ssub.s32 %s9, %s16
    %p86 = scmp.eq.s32.totalorder %s85, 0
    %s88 = sadd.s32 %s87, 1
    %s89 = scalar_select %p86, %s87, %s88
    %p92 = pneg %p86
    %p93 = scmp.eq.s32.totalorder %s9, 1
    %p94 = por %p92, %p93
    %p95 = scmp.ne.s32.totalorder %s87, %s90
    %p96 = scmp.eq.s32.totalorder %s9, 0
    %p97 = por %p95, %p96
    %p98 = scmp.ne.s32.totalorder %s87, %s90
    %p99 = scmp.eq.s32.totalorder %s14, 1
    %p100 = por %p98, %p99
    %p101 = scmp.ne.s32.totalorder %s90, %s91
    %p102 = scmp.eq.s32.totalorder %s14, 0
    %p103 = por %p101, %p102
    %p104 = scmp.ne.s32.totalorder %s90, %s91
    %p105 = scmp.eq.s32.totalorder %s15, 1
    %p106 = por %p104, %p105
    %p108 = scmp.ne.s32.totalorder %s91, %s107
    %p109 = scmp.eq.s32.totalorder %s15, 0
    %p110 = por %p108, %p109
    %p111 = scmp.le.s32.totalorder 1, %s9
    %p112 = scmp.lt.s32.totalorder %s9, 3
    %p113 = pnand %p111, %p112
    %p114 = pneg %p113
    // Predicated region
    $region9: #{fashion_convnet_forward.2} parent=5 // pred_check
      _
    $region10: #{fashion_convnet_forward.2} parent=5 // pred_check_branch
      %116 = sbr.rel (%p113) target = $region12
    $region11: #{fashion_convnet_forward.2} parent=5 // pred_region
      %s117 = ssub.s32 %s9, 1
      // Predicated region
      $region13: #{fashion_convnet_forward.2} parent=11 // pred_check
        %p118 = pneg %p56
      $region14: #{fashion_convnet_forward.2} parent=11 // pred_check_branch
        %120 = sbr.rel (%p118) target = $region16
      $region15: #{fashion_convnet_forward.2} parent=11 // pred_region
        _
      $region16: #{fashion_convnet_forward.2} parent=11 // pred_fallthru
        _
      // Predicated region
      $region17: #{fashion_convnet_forward.2} parent=11 // pred_check
        %p121 = pneg %p77
      $region18: #{fashion_convnet_forward.2} parent=11 // pred_check_branch
        %123 = sbr.rel (%p121) target = $region20
      $region19: #{fashion_convnet_forward.2} parent=11 // pred_region
        _
      $region20: #{fashion_convnet_forward.2} parent=11 // pred_fallthru
        _
    $region12: #{fashion_convnet_forward.2} parent=5 // pred_fallthru
      _
    %p124 = scmp.lt.s32.totalorder %s9, 2
    // Predicated region
    $region21: #{fashion_convnet_forward.2} parent=5 // pred_check
      %p125 = pneg %p124
    $region22: #{fashion_convnet_forward.2} parent=5 // pred_check_branch
      %127 = sbr.rel (%p125) target = $region24
    $region23: #{fashion_convnet_forward.2} parent=5 // pred_region
      // Predicated region
      $region25: #{fashion_convnet_forward.2} parent=23 // pred_check
        %p128 = pneg %p29
      $region26: #{fashion_convnet_forward.2} parent=23 // pred_check_branch
        %130 = sbr.rel (%p128) target = $region28
      $region27: #{fashion_convnet_forward.2} parent=23 // pred_region
        %p131 = scmp.lt.s32.totalorder %s9, 1
        %s132 = scalar_select %p131, %s9, 1
        %s133 = smul.addr %s132, 144
        %s134 = smul.addr %s133, 4
        %s135 = scalar_lea.vmem %s0, %s134
      $region28: #{fashion_convnet_forward.2} parent=23 // pred_fallthru
        _
    $region24: #{fashion_convnet_forward.2} parent=5 // pred_fallthru
      _
    %p136 = scmp.le.s32.totalorder 1, %s9
    %p137 = scmp.lt.s32.totalorder %s9, 3
    %p138 = pnand %p136, %p137
    %p139 = pneg %p138
    // Predicated region
    $region29: #{fashion_convnet_forward.2} parent=5 // pred_check
      _
    $region30: #{fashion_convnet_forward.2} parent=5 // pred_check_branch
      %141 = sbr.rel (%p138) target = $region32
    $region31: #{fashion_convnet_forward.2} parent=5 // pred_region
      %s142 = ssub.s32 %s9, 1
      %p143 = scmp.lt.s32.totalorder %s14, 1
      %s144 = scalar_select %p143, %s14, 1
      %s145 = smul.addr %s144, 144
      %s146 = smul.addr %s145, 4
      %s147 = scalar_lea.vmem %s0, %s146
      %p148 = pneg %p35
      %p149 = pneg %p32
      %p150 = pneg %p56
      %p151 = pneg %p53
      %p152 = pneg %p77
      %p153 = pneg %p74
      %p154 = pneg %p103
      %p155 = pneg %p100
      %p156 = scmp.lt.s32.totalorder %s14, 1
      %s157 = scalar_select %p156, %s14, 1
      %s158 = smul.addr %s157, 9
      %s159 = smul.addr %s158, 8
      %s160 = scalar_lea.vmem %s3, %s159
      %p161 = scmp.lt.s32.totalorder %s14, 1
      %s162 = scalar_select %p161, %s14, 1
      %s163 = smul.addr %s162, 144
      %s164 = smul.addr %s163, 4
      %s165 = scalar_lea.vmem %s0, %s164
      %p166 = scmp.lt.s32.totalorder %s14, 1
      %s167 = scalar_select %p166, %s14, 1
      %s168 = smul.addr %s167, 9
      %s169 = smul.addr %s168, 8
      %s170 = scalar_lea.vmem %s3, %s169
      %v172 = vld [vmem:[%s1] sm:$0xf]
      %v173 = vld [vmem:[%s165] sm:$0xff]
      %v174 = vld [vmem:[%s165 + $0x8] sm:$0xff]
      %v175 = vld [vmem:[%s165 + $0x10] sm:$0xff]
      %v176 = vld [vmem:[%s165 + $0x18] sm:$0xff]
      %v177 = vld [vmem:[%s165 + $0x20] sm:$0xff]
      %v178 = vld [vmem:[%s165 + $0x28] sm:$0xff]
      %v179 = vld [vmem:[%s165 + $0x30] sm:$0xff]
      %v180 = vld [vmem:[%s165 + $0x38] sm:$0xff]
      %v181 = vld [vmem:[%s165 + $0x40] sm:$0xff]
      %v182 = vld [vmem:[%s165 + $0x48] sm:$0xff]
      %v183 = vld [vmem:[%s165 + $0x50] sm:$0xff]
      %v184 = vld [vmem:[%s165 + $0x58] sm:$0xff]
      %v185 = vld [vmem:[%s165 + $0x60] sm:$0xff]
      %v186 = vld [vmem:[%s165 + $0x68] sm:$0xff]
      %v187 = vld [vmem:[%s165 + $0x70] sm:$0xff]
      %v188 = vld [vmem:[%s165 + $0x78] sm:$0xff]
      %v189 = vld [vmem:[%s165 + $0x80] sm:$0xff]
      %v190 = vld [vmem:[%s165 + $0x88] sm:$0xff]
      %v191 = vld [vmem:[%s165 + $0x90] sm:$0xff]
      %v192 = vld [vmem:[%s165 + $0x98] sm:$0xff]
      %v193 = vld [vmem:[%s165 + $0xa0] sm:$0xff]
      %v194 = vld [vmem:[%s165 + $0xa8] sm:$0xff]
      %v195 = vld [vmem:[%s165 + $0xb0] sm:$0xff]
      %v196 = vld [vmem:[%s165 + $0xb8] sm:$0xff]
      %v197 = vld [vmem:[%s165 + $0xc0] sm:$0xff]
      %v198 = vld [vmem:[%s165 + $0xc8] sm:$0xff]
      %v199 = vld [vmem:[%s165 + $0xd0] sm:$0xff]
      %v200 = vld [vmem:[%s165 + $0xd8] sm:$0xff]
      %v201 = vld [vmem:[%s165 + $0xe0] sm:$0xff]
      %v202 = vld [vmem:[%s165 + $0xe8] sm:$0xff]
      %v203 = vld [vmem:[%s165 + $0xf0] sm:$0xff]
      %v204 = vld [vmem:[%s165 + $0xf8] sm:$0xff]
      %v205 = vld [vmem:[%s165 + $0x100] sm:$0xff]
      %v206 = vld [vmem:[%s165 + $0x108] sm:$0xff]
      %v207 = vld [vmem:[%s165 + $0x110] sm:$0xff]
      %v208 = vld [vmem:[%s165 + $0x118] sm:$0xff]
      %v209 = vld [vmem:[%s165 + $0x120] sm:$0xff]
      %v210 = vld [vmem:[%s165 + $0x128] sm:$0xff]
      %v211 = vld [vmem:[%s165 + $0x130] sm:$0xff]
      %v212 = vld [vmem:[%s165 + $0x138] sm:$0xff]
      %v213 = vld [vmem:[%s165 + $0x140] sm:$0xff]
      %v214 = vld [vmem:[%s165 + $0x148] sm:$0xff]
      %v215 = vld [vmem:[%s165 + $0x150] sm:$0xff]
      %v216 = vld [vmem:[%s165 + $0x158] sm:$0xff]
      %v217 = vld [vmem:[%s165 + $0x160] sm:$0xff]
      %v218 = vld [vmem:[%s165 + $0x168] sm:$0xff]
      %v219 = vld [vmem:[%s165 + $0x170] sm:$0xff]
      %v220 = vld [vmem:[%s165 + $0x178] sm:$0xff]
      %v221 = vld [vmem:[%s165 + $0x180] sm:$0xff]
      %v222 = vld [vmem:[%s165 + $0x188] sm:$0xff]
      %v223 = vld [vmem:[%s165 + $0x190] sm:$0xff]
      %v224 = vld [vmem:[%s165 + $0x198] sm:$0xff]
      %v225 = vld [vmem:[%s165 + $0x1a0] sm:$0xff]
      %v226 = vld [vmem:[%s165 + $0x1a8] sm:$0xff]
      %v227 = vld [vmem:[%s165 + $0x1b0] sm:$0xff]
      %v228 = vld [vmem:[%s165 + $0x1b8] sm:$0xff]
      %v229 = vld [vmem:[%s165 + $0x1c0] sm:$0xff]
      %v230 = vld [vmem:[%s165 + $0x1c8] sm:$0xff]
      %v231 = vld [vmem:[%s165 + $0x1d0] sm:$0xff]
      %v232 = vld [vmem:[%s165 + $0x1d8] sm:$0xff]
      %v233 = vld [vmem:[%s165 + $0x1e0] sm:$0xff]
      %v234 = vld [vmem:[%s165 + $0x1e8] sm:$0xff]
      %v235 = vld [vmem:[%s165 + $0x1f0] sm:$0xff]
      %v236 = vld [vmem:[%s165 + $0x1f8] sm:$0xff]
      %v237 = vld [vmem:[%s165 + $0x200] sm:$0xff]
      %v238 = vld [vmem:[%s165 + $0x208] sm:$0xff]
      %v239 = vld [vmem:[%s165 + $0x210] sm:$0xff]
      %v240 = vld [vmem:[%s165 + $0x218] sm:$0xff]
      %v241 = vld [vmem:[%s165 + $0x220] sm:$0xff]
      %v242 = vld [vmem:[%s165 + $0x228] sm:$0xff]
      %v243 = vld [vmem:[%s165 + $0x230] sm:$0xff]
      %v244 = vld [vmem:[%s165 + $0x238] sm:$0xff]
      %v317 = vunpack.c.l.b16 %v173
      %v318 = vunpack.c.h.b16 %v173
      %v319 = vunpack.c.l.b16 %v174
      %v320 = vunpack.c.h.b16 %v174
      %v321 = vunpack.c.l.b16 %v175
      %v322 = vunpack.c.h.b16 %v175
      %v323 = vunpack.c.l.b16 %v176
      %v324 = vunpack.c.h.b16 %v176
      %v325 = vunpack.c.l.b16 %v177
      %v326 = vunpack.c.h.b16 %v177
      %v327 = vunpack.c.l.b16 %v178
      %v328 = vunpack.c.h.b16 %v178
      %v329 = vunpack.c.l.b16 %v179
      %v330 = vunpack.c.h.b16 %v179
      %v331 = vunpack.c.l.b16 %v180
      %v332 = vunpack.c.h.b16 %v180
      %v333 = vunpack.c.l.b16 %v181
      %v334 = vunpack.c.h.b16 %v181
      %v335 = vunpack.c.l.b16 %v182
      %v336 = vunpack.c.h.b16 %v182
      %v337 = vunpack.c.l.b16 %v183
      %v338 = vunpack.c.h.b16 %v183
      %v339 = vunpack.c.l.b16 %v184
      %v340 = vunpack.c.h.b16 %v184
      %v341 = vunpack.c.l.b16 %v185
      %v342 = vunpack.c.h.b16 %v185
      %v343 = vunpack.c.l.b16 %v186
      %v344 = vunpack.c.h.b16 %v186
      %v345 = vunpack.c.l.b16 %v187
      %v346 = vunpack.c.h.b16 %v187
      %v347 = vunpack.c.l.b16 %v188
      %v348 = vunpack.c.h.b16 %v188
      %v349 = vunpack.c.l.b16 %v189
      %v350 = vunpack.c.h.b16 %v189
      %v351 = vunpack.c.l.b16 %v190
      %v352 = vunpack.c.h.b16 %v190
      %v353 = vunpack.c.l.b16 %v191
      %v354 = vunpack.c.h.b16 %v191
      %v355 = vunpack.c.l.b16 %v192
      %v356 = vunpack.c.h.b16 %v192
      %v357 = vunpack.c.l.b16 %v193
      %v358 = vunpack.c.h.b16 %v193
      %v359 = vunpack.c.l.b16 %v194
      %v360 = vunpack.c.h.b16 %v194
      %v361 = vunpack.c.l.b16 %v195
      %v362 = vunpack.c.h.b16 %v195
      %v363 = vunpack.c.l.b16 %v196
      %v364 = vunpack.c.h.b16 %v196
      %v365 = vunpack.c.l.b16 %v197
      %v366 = vunpack.c.h.b16 %v197
      %v367 = vunpack.c.l.b16 %v198
      %v368 = vunpack.c.h.b16 %v198
      %v369 = vunpack.c.l.b16 %v199
      %v370 = vunpack.c.h.b16 %v199
      %v371 = vunpack.c.l.b16 %v200
      %v372 = vunpack.c.h.b16 %v200
      %v373 = vunpack.c.l.b16 %v201
      %v374 = vunpack.c.h.b16 %v201
      %v375 = vunpack.c.l.b16 %v202
      %v376 = vunpack.c.h.b16 %v202
      %v377 = vunpack.c.l.b16 %v203
      %v378 = vunpack.c.h.b16 %v203
      %v379 = vunpack.c.l.b16 %v204
      %v380 = vunpack.c.h.b16 %v204
      %v381 = vunpack.c.l.b16 %v205
      %v382 = vunpack.c.h.b16 %v205
      %v383 = vunpack.c.l.b16 %v206
      %v384 = vunpack.c.h.b16 %v206
      %v385 = vunpack.c.l.b16 %v207
      %v386 = vunpack.c.h.b16 %v207
      %v387 = vunpack.c.l.b16 %v208
      %v388 = vunpack.c.h.b16 %v208
      %v389 = vunpack.c.l.b16 %v209
      %v390 = vunpack.c.h.b16 %v209
      %v391 = vunpack.c.l.b16 %v210
      %v392 = vunpack.c.h.b16 %v210
      %v393 = vunpack.c.l.b16 %v211
      %v394 = vunpack.c.h.b16 %v211
      %v395 = vunpack.c.l.b16 %v212
      %v396 = vunpack.c.h.b16 %v212
      %v397 = vunpack.c.l.b16 %v213
      %v398 = vunpack.c.h.b16 %v213
      %v399 = vunpack.c.l.b16 %v214
      %v400 = vunpack.c.h.b16 %v214
      %v401 = vunpack.c.l.b16 %v215
      %v402 = vunpack.c.h.b16 %v215
      %v403 = vunpack.c.l.b16 %v216
      %v404 = vunpack.c.h.b16 %v216
      %v405 = vunpack.c.l.b16 %v217
      %v406 = vunpack.c.h.b16 %v217
      %v407 = vunpack.c.l.b16 %v218
      %v408 = vunpack.c.h.b16 %v218
      %v409 = vunpack.c.l.b16 %v219
      %v410 = vunpack.c.h.b16 %v219
      %v411 = vunpack.c.l.b16 %v220
      %v412 = vunpack.c.h.b16 %v220
      %v413 = vunpack.c.l.b16 %v221
      %v414 = vunpack.c.h.b16 %v221
      %v415 = vunpack.c.l.b16 %v222
      %v416 = vunpack.c.h.b16 %v222
      %v417 = vunpack.c.l.b16 %v223
      %v418 = vunpack.c.h.b16 %v223
      %v419 = vunpack.c.l.b16 %v224
      %v420 = vunpack.c.h.b16 %v224
      %v421 = vunpack.c.l.b16 %v225
      %v422 = vunpack.c.h.b16 %v225
      %v423 = vunpack.c.l.b16 %v226
      %v424 = vunpack.c.h.b16 %v226
      %v425 = vunpack.c.l.b16 %v227
      %v426 = vunpack.c.h.b16 %v227
      %v427 = vunpack.c.l.b16 %v228
      %v428 = vunpack.c.h.b16 %v228
      %v429 = vunpack.c.l.b16 %v229
      %v430 = vunpack.c.h.b16 %v229
      %v431 = vunpack.c.l.b16 %v230
      %v432 = vunpack.c.h.b16 %v230
      %v433 = vunpack.c.l.b16 %v231
      %v434 = vunpack.c.h.b16 %v231
      %v435 = vunpack.c.l.b16 %v232
      %v436 = vunpack.c.h.b16 %v232
      %v437 = vunpack.c.l.b16 %v233
      %v438 = vunpack.c.h.b16 %v233
      %v439 = vunpack.c.l.b16 %v234
      %v440 = vunpack.c.h.b16 %v234
      %v441 = vunpack.c.l.b16 %v235
      %v442 = vunpack.c.h.b16 %v235
      %v443 = vunpack.c.l.b16 %v236
      %v444 = vunpack.c.h.b16 %v236
      %v445 = vunpack.c.l.b16 %v237
      %v446 = vunpack.c.h.b16 %v237
      %v447 = vunpack.c.l.b16 %v238
      %v448 = vunpack.c.h.b16 %v238
      %v449 = vunpack.c.l.b16 %v239
      %v450 = vunpack.c.h.b16 %v239
      %v451 = vunpack.c.l.b16 %v240
      %v452 = vunpack.c.h.b16 %v240
      %v453 = vunpack.c.l.b16 %v241
      %v454 = vunpack.c.h.b16 %v241
      %v455 = vunpack.c.l.b16 %v242
      %v456 = vunpack.c.h.b16 %v242
      %v457 = vunpack.c.l.b16 %v243
      %v458 = vunpack.c.h.b16 %v243
      %v459 = vunpack.c.l.b16 %v244
      %v460 = vunpack.c.h.b16 %v244
      %v461 = vpack.c.b16 %v353, %v317
      %v462 = vpack.c.b16 %v354, %v318
      %v463 = vpack.c.b16 %v355, %v319
      %v464 = vpack.c.b16 %v356, %v320
      %v465 = vpack.c.b16 %v357, %v321
      %v466 = vpack.c.b16 %v358, %v322
      %v467 = vpack.c.b16 %v359, %v323
      %v468 = vpack.c.b16 %v360, %v324
      %v469 = vpack.c.b16 %v361, %v325
      %v470 = vpack.c.b16 %v362, %v326
      %v471 = vpack.c.b16 %v363, %v327
      %v472 = vpack.c.b16 %v364, %v328
      %v473 = vpack.c.b16 %v365, %v329
      %v474 = vpack.c.b16 %v366, %v330
      %v475 = vpack.c.b16 %v367, %v331
      %v476 = vpack.c.b16 %v368, %v332
      %v477 = vpack.c.b16 %v369, %v333
      %v478 = vpack.c.b16 %v370, %v334
      %v479 = vpack.c.b16 %v371, %v335
      %v480 = vpack.c.b16 %v372, %v336
      %v481 = vpack.c.b16 %v373, %v337
      %v482 = vpack.c.b16 %v374, %v338
      %v483 = vpack.c.b16 %v375, %v339
      %v484 = vpack.c.b16 %v376, %v340
      %v485 = vpack.c.b16 %v377, %v341
      %v486 = vpack.c.b16 %v378, %v342
      %v487 = vpack.c.b16 %v379, %v343
      %v488 = vpack.c.b16 %v380, %v344
      %v489 = vpack.c.b16 %v381, %v345
      %v490 = vpack.c.b16 %v382, %v346
      %v491 = vpack.c.b16 %v383, %v347
      %v492 = vpack.c.b16 %v384, %v348
      %v493 = vpack.c.b16 %v385, %v349
      %v494 = vpack.c.b16 %v386, %v350
      %v495 = vpack.c.b16 %v387, %v351
      %v496 = vpack.c.b16 %v388, %v352
      %v497 = vpack.c.b16 %v425, %v389
      %v498 = vpack.c.b16 %v426, %v390
      %v499 = vpack.c.b16 %v427, %v391
      %v500 = vpack.c.b16 %v428, %v392
      %v501 = vpack.c.b16 %v429, %v393
      %v502 = vpack.c.b16 %v430, %v394
      %v503 = vpack.c.b16 %v431, %v395
      %v504 = vpack.c.b16 %v432, %v396
      %v505 = vpack.c.b16 %v433, %v397
      %v506 = vpack.c.b16 %v434, %v398
      %v507 = vpack.c.b16 %v435, %v399
      %v508 = vpack.c.b16 %v436, %v400
      %v509 = vpack.c.b16 %v437, %v401
      %v510 = vpack.c.b16 %v438, %v402
      %v511 = vpack.c.b16 %v439, %v403
      %v512 = vpack.c.b16 %v440, %v404
      %v513 = vpack.c.b16 %v441, %v405
      %v514 = vpack.c.b16 %v442, %v406
      %v515 = vpack.c.b16 %v443, %v407
      %v516 = vpack.c.b16 %v444, %v408
      %v517 = vpack.c.b16 %v445, %v409
      %v518 = vpack.c.b16 %v446, %v410
      %v519 = vpack.c.b16 %v447, %v411
      %v520 = vpack.c.b16 %v448, %v412
      %v521 = vpack.c.b16 %v449, %v413
      %v522 = vpack.c.b16 %v450, %v414
      %v523 = vpack.c.b16 %v451, %v415
      %v524 = vpack.c.b16 %v452, %v416
      %v525 = vpack.c.b16 %v453, %v417
      %v526 = vpack.c.b16 %v454, %v418
      %v527 = vpack.c.b16 %v455, %v419
      %v528 = vpack.c.b16 %v456, %v420
      %v529 = vpack.c.b16 %v457, %v421
      %v530 = vpack.c.b16 %v458, %v422
      %v531 = vpack.c.b16 %v459, %v423
      %v532 = vpack.c.b16 %v460, %v424
      %vm605 = vcmask 261120
      %v607 = vsel %vm605, %v172, 0
      %609 = vmatprep.subr.bf16.mxu0 %v462
      %610 = vmatpush1.bf16.msra.mxu0 %v461
      %611 = vmatprep.subr.bf16.mxu0 %v498
      %612 = vmatpush1.bf16.msra.mxu0 %v497
      %613 = vmatprep.subr.bf16.mxu0 0
      %614 = vmatpush1.bf16.msra.mxu0 0
      %615 = vmatprep.subr.bf16.mxu0 0
      %616 = vmatpush1.bf16.msra.mxu0 0
      %617 = vmatprep.subr.bf16.mxu0 0
      %618 = vmatpush1.bf16.msra.mxu0 0
      %619 = vmatprep.subr.bf16.mxu0 0
      %620 = vmatpush1.bf16.msra.mxu0 0
      %621 = vmatprep.subr.bf16.mxu0 0
      %622 = vmatpush1.bf16.msra.mxu0 0
      %623 = vmatprep.subr.bf16.mxu0 0
      %624 = vmatpush1.bf16.msra.mxu0 0
      %625 = vmatprep.subr.bf16.mxu0 0
      %626 = vmatpush1.bf16.msra.mxu0 0
      %627 = vmatprep.subr.bf16.mxu0 0
      %628 = vmatpush1.bf16.msra.mxu0 0
      %629 = vmatprep.subr.bf16.mxu0 0
      %630 = vmatpush1.bf16.msra.mxu0 0
      %631 = vmatprep.subr.bf16.mxu0 0
      %632 = vmatpush1.bf16.msra.mxu0 0
      %633 = vmatprep.subr.bf16.mxu0 0
      %634 = vmatpush1.bf16.msra.mxu0 0
      %635 = vmatprep.subr.bf16.mxu0 0
      %636 = vmatpush1.bf16.msra.mxu0 0
      %637 = vmatprep.subr.bf16.mxu0 0
      %638 = vmatpush1.bf16.msra.mxu0 0
      %639 = vmatprep.subr.bf16.mxu0 0
      %640 = vmatpush1.bf16.msra.mxu0 0
      %641 = vmatprep.mubr.bf16.mxu0 0
      %642 = vmatmul.mubr.bf16.gmra.mrb[0].mxu0 %v607
      %v643 = vpop.f32.mrb[0].mxu0
      %v644 = vadd.f32 0.0, %v643
      %v645 = vpop.f32.mrb[0].mxu0
      %v646 = vadd.f32 0.0, %v645
      %v647 = vpop.f32.mrb[0].mxu0
      %v648 = vpop.f32.mrb[0].mxu0
      %649 = vdwg.mxu0
      %650 = vmatprep.subr.bf16.mxu0 %v464
      %651 = vmatpush1.bf16.msra.mxu0 %v463
      %652 = vmatprep.subr.bf16.mxu0 %v500
      %653 = vmatpush1.bf16.msra.mxu0 %v499
      %654 = vmatprep.subr.bf16.mxu0 0
      %655 = vmatpush1.bf16.msra.mxu0 0
      %656 = vmatprep.subr.bf16.mxu0 0
      %657 = vmatpush1.bf16.msra.mxu0 0
      %658 = vmatprep.subr.bf16.mxu0 0
      %659 = vmatpush1.bf16.msra.mxu0 0
      %660 = vmatprep.subr.bf16.mxu0 0
      %661 = vmatpush1.bf16.msra.mxu0 0
      %662 = vmatprep.subr.bf16.mxu0 0
      %663 = vmatpush1.bf16.msra.mxu0 0
      %664 = vmatprep.subr.bf16.mxu0 0
      %665 = vmatpush1.bf16.msra.mxu0 0
      %666 = vmatprep.subr.bf16.mxu0 0
      %667 = vmatpush1.bf16.msra.mxu0 0
      %668 = vmatprep.subr.bf16.mxu0 0
      %669 = vmatpush1.bf16.msra.mxu0 0
      %670 = vmatprep.subr.bf16.mxu0 0
      %671 = vmatpush1.bf16.msra.mxu0 0
      %672 = vmatprep.subr.bf16.mxu0 0
      %673 = vmatpush1.bf16.msra.mxu0 0
      %674 = vmatprep.subr.bf16.mxu0 0
      %675 = vmatpush1.bf16.msra.mxu0 0
      %676 = vmatprep.subr.bf16.mxu0 0
      %677 = vmatpush1.bf16.msra.mxu0 0
      %678 = vmatprep.subr.bf16.mxu0 0
      %679 = vmatpush1.bf16.msra.mxu0 0
      %680 = vmatprep.subr.bf16.mxu0 0
      %681 = vmatpush1.bf16.msra.mxu0 0
      %682 = vmatprep.mubr.bf16.mxu0 0
      %683 = vmatmul.mubr.bf16.gmra.mrb[0].mxu0 %v607
      %v684 = vpop.f32.mrb[0].mxu0
      %v685 = vadd.f32 0.0, %v684
      %v686 = vpop.f32.mrb[0].mxu0
      %v687 = vadd.f32 0.0, %v686
      %v688 = vpop.f32.mrb[0].mxu0
      %v689 = vpop.f32.mrb[0].mxu0
      %690 = vdwg.mxu0
      %691 = vmatprep.subr.bf16.mxu0 %v466
      %692 = vmatpush1.bf16.msra.mxu0 %v465
      %693 = vmatprep.subr.bf16.mxu0 %v502
      %694 = vmatpush1.bf16.msra.mxu0 %v501
      %695 = vmatprep.subr.bf16.mxu0 0
      %696 = vmatpush1.bf16.msra.mxu0 0
      %697 = vmatprep.subr.bf16.mxu0 0
      %698 = vmatpush1.bf16.msra.mxu0 0
      %699 = vmatprep.subr.bf16.mxu0 0
      %700 = vmatpush1.bf16.msra.mxu0 0
      %701 = vmatprep.subr.bf16.mxu0 0
      %702 = vmatpush1.bf16.msra.mxu0 0
      %703 = vmatprep.subr.bf16.mxu0 0
      %704 = vmatpush1.bf16.msra.mxu0 0
      %705 = vmatprep.subr.bf16.mxu0 0
      %706 = vmatpush1.bf16.msra.mxu0 0
      %707 = vmatprep.subr.bf16.mxu0 0
      %708 = vmatpush1.bf16.msra.mxu0 0
      %709 = vmatprep.subr.bf16.mxu0 0
      %710 = vmatpush1.bf16.msra.mxu0 0
      %711 = vmatprep.subr.bf16.mxu0 0
      %712 = vmatpush1.bf16.msra.mxu0 0
      %713 = vmatprep.subr.bf16.mxu0 0
      %714 = vmatpush1.bf16.msra.mxu0 0
      %715 = vmatprep.subr.bf16.mxu0 0
      %716 = vmatpush1.bf16.msra.mxu0 0
      %717 = vmatprep.subr.bf16.mxu0 0
      %718 = vmatpush1.bf16.msra.mxu0 0
      %719 = vmatprep.subr.bf16.mxu0 0
      %720 = vmatpush1.bf16.msra.mxu0 0
      %721 = vmatprep.subr.bf16.mxu0 0
      %722 = vmatpush1.bf16.msra.mxu0 0
      %723 = vmatprep.mubr.bf16.mxu0 0
      %724 = vmatmul.mubr.bf16.gmra.mrb[0].mxu0 %v607
      %v725 = vpop.f32.mrb[0].mxu0
      %v726 = vadd.f32 0.0, %v725
      %v727 = vpop.f32.mrb[0].mxu0
      %v728 = vadd.f32 0.0, %v727
      %v729 = vpop.f32.mrb[0].mxu0
      %v730 = vpop.f32.mrb[0].mxu0
      %731 = vdwg.mxu0
      %732 = vmatprep.subr.bf16.mxu0 %v468
      %733 = vmatpush1.bf16.msra.mxu0 %v467
      %734 = vmatprep.subr.bf16.mxu0 %v504
      %735 = vmatpush1.bf16.msra.mxu0 %v503
      %736 = vmatprep.subr.bf16.mxu0 0
      %737 = vmatpush1.bf16.msra.mxu0 0
      %738 = vmatprep.subr.bf16.mxu0 0
      %739 = vmatpush1.bf16.msra.mxu0 0
      %740 = vmatprep.subr.bf16.mxu0 0
      %741 = vmatpush1.bf16.msra.mxu0 0
      %742 = vmatprep.subr.bf16.mxu0 0
      %743 = vmatpush1.bf16.msra.mxu0 0
      %744 = vmatprep.subr.bf16.mxu0 0
      %745 = vmatpush1.bf16.msra.mxu0 0
      %746 = vmatprep.subr.bf16.mxu0 0
      %747 = vmatpush1.bf16.msra.mxu0 0
      %748 = vmatprep.subr.bf16.mxu0 0
      %749 = vmatpush1.bf16.msra.mxu0 0
      %750 = vmatprep.subr.bf16.mxu0 0
      %751 = vmatpush1.bf16.msra.mxu0 0
      %752 = vmatprep.subr.bf16.mxu0 0
      %753 = vmatpush1.bf16.msra.mxu0 0
      %754 = vmatprep.subr.bf16.mxu0 0
      %755 = vmatpush1.bf16.msra.mxu0 0
      %756 = vmatprep.subr.bf16.mxu0 0
      %757 = vmatpush1.bf16.msra.mxu0 0
      %758 = vmatprep.subr.bf16.mxu0 0
      %759 = vmatpush1.bf16.msra.mxu0 0
      %760 = vmatprep.subr.bf16.mxu0 0
      %761 = vmatpush1.bf16.msra.mxu0 0
      %762 = vmatprep.subr.bf16.mxu0 0
      %763 = vmatpush1.bf16.msra.mxu0 0
      %764 = vmatprep.mubr.bf16.mxu0 0
      %765 = vmatmul.mubr.bf16.gmra.mrb[0].mxu0 %v607
      %v766 = vpop.f32.mrb[0].mxu0
      %v767 = vadd.f32 0.0, %v766
      %v768 = vpop.f32.mrb[0].mxu0
      %v769 = vadd.f32 0.0, %v768
      %v770 = vpop.f32.mrb[0].mxu0
      %v771 = vpop.f32.mrb[0].mxu0
      %772 = vdwg.mxu0
      %773 = vmatprep.subr.bf16.mxu0 %v470
      %774 = vmatpush1.bf16.msra.mxu0 %v469
      %775 = vmatprep.subr.bf16.mxu0 %v506
      %776 = vmatpush1.bf16.msra.mxu0 %v505
      %777 = vmatprep.subr.bf16.mxu0 0
      %778 = vmatpush1.bf16.msra.mxu0 0
      %779 = vmatprep.subr.bf16.mxu0 0
      %780 = vmatpush1.bf16.msra.mxu0 0
      %781 = vmatprep.subr.bf16.mxu0 0
      %782 = vmatpush1.bf16.msra.mxu0 0
      %783 = vmatprep.subr.bf16.mxu0 0
      %784 = vmatpush1.bf16.msra.mxu0 0
      %785 = vmatprep.subr.bf16.mxu0 0
      %786 = vmatpush1.bf16.msra.mxu0 0
      %787 = vmatprep.subr.bf16.mxu0 0
      %788 = vmatpush1.bf16.msra.mxu0 0
      %789 = vmatprep.subr.bf16.mxu0 0
      %790 = vmatpush1.bf16.msra.mxu0 0
      %791 = vmatprep.subr.bf16.mxu0 0
      %792 = vmatpush1.bf16.msra.mxu0 0
      %793 = vmatprep.subr.bf16.mxu0 0
      %794 = vmatpush1.bf16.msra.mxu0 0
      %795 = vmatprep.subr.bf16.mxu0 0
      %796 = vmatpush1.bf16.msra.mxu0 0
      %797 = vmatprep.subr.bf16.mxu0 0
      %798 = vmatpush1.bf16.msra.mxu0 0
      %799 = vmatprep.subr.bf16.mxu0 0
      %800 = vmatpush1.bf16.msra.mxu0 0
      %801 = vmatprep.subr.bf16.mxu0 0
      %802 = vmatpush1.bf16.msra.mxu0 0
      %803 = vmatprep.subr.bf16.mxu0 0
      %804 = vmatpush1.bf16.msra.mxu0 0
      %805 = vmatprep.mubr.bf16.mxu0 0
      %806 = vmatmul.mubr.bf16.gmra.mrb[0].mxu0 %v607
      %v807 = vpop.f32.mrb[0].mxu0
      %v808 = vadd.f32 0.0, %v807
      %v809 = vpop.f32.mrb[0].mxu0
      %v810 = vadd.f32 0.0, %v809
      %v811 = vpop.f32.mrb[0].mxu0
      %v812 = vpop.f32.mrb[0].mxu0
      %813 = vdwg.mxu0
      %814 = vmatprep.subr.bf16.mxu0 %v472
      %815 = vmatpush1.bf16.msra.mxu0 %v471
      %816 = vmatprep.subr.bf16.mxu0 %v508
      %817 = vmatpush1.bf16.msra.mxu0 %v507
      %818 = vmatprep.subr.bf16.mxu0 0
      %819 = vmatpush1.bf16.msra.mxu0 0
      %820 = vmatprep.subr.bf16.mxu0 0
      %821 = vmatpush1.bf16.msra.mxu0 0
      %822 = vmatprep.subr.bf16.mxu0 0
      %823 = vmatpush1.bf16.msra.mxu0 0
      %824 = vmatprep.subr.bf16.mxu0 0
      %825 = vmatpush1.bf16.msra.mxu0 0
      %826 = vmatprep.subr.bf16.mxu0 0
      %827 = vmatpush1.bf16.msra.mxu0 0
      %828 = vmatprep.subr.bf16.mxu0 0
      %829 = vmatpush1.bf16.msra.mxu0 0
      %830 = vmatprep.subr.bf16.mxu0 0
      %831 = vmatpush1.bf16.msra.mxu0 0
      %832 = vmatprep.subr.bf16.mxu0 0
      %833 = vmatpush1.bf16.msra.mxu0 0
      %834 = vmatprep.subr.bf16.mxu0 0
      %835 = vmatpush1.bf16.msra.mxu0 0
      %836 = vmatprep.subr.bf16.mxu0 0
      %837 = vmatpush1.bf16.msra.mxu0 0
      %838 = vmatprep.subr.bf16.mxu0 0
      %839 = vmatpush1.bf16.msra.mxu0 0
      %840 = vmatprep.subr.bf16.mxu0 0
      %841 = vmatpush1.bf16.msra.mxu0 0
      %842 = vmatprep.subr.bf16.mxu0 0
      %843 = vmatpush1.bf16.msra.mxu0 0
      %844 = vmatprep.subr.bf16.mxu0 0
      %845 = vmatpush1.bf16.msra.mxu0 0
      %846 = vmatprep.mubr.bf16.mxu0 0
      %847 = vmatmul.mubr.bf16.gmra.mrb[0].mxu0 %v607
      %v848 = vpop.f32.mrb[0].mxu0
      %v849 = vadd.f32 0.0, %v848
      %v850 = vpop.f32.mrb[0].mxu0
      %v851 = vadd.f32 0.0, %v850
      %v852 = vpop.f32.mrb[0].mxu0
      %v853 = vpop.f32.mrb[0].mxu0
      %854 = vdwg.mxu0
      %855 = vmatprep.subr.bf16.mxu0 %v474
      %856 = vmatpush1.bf16.msra.mxu0 %v473
      %857 = vmatprep.subr.bf16.mxu0 %v510
      %858 = vmatpush1.bf16.msra.mxu0 %v509
      %859 = vmatprep.subr.bf16.mxu0 0
      %860 = vmatpush1.bf16.msra.mxu0 0
      %861 = vmatprep.subr.bf16.mxu0 0
      %862 = vmatpush1.bf16.msra.mxu0 0
      %863 = vmatprep.subr.bf16.mxu0 0
      %864 = vmatpush1.bf16.msra.mxu0 0
      %865 = vmatprep.subr.bf16.mxu0 0
      %866 = vmatpush1.bf16.msra.mxu0 0
      %867 = vmatprep.subr.bf16.mxu0 0
      %868 = vmatpush1.bf16.msra.mxu0 0
      %869 = vmatprep.subr.bf16.mxu0 0
      %870 = vmatpush1.bf16.msra.mxu0 0
      %871 = vmatprep.subr.bf16.mxu0 0
      %872 = vmatpush1.bf16.msra.mxu0 0
      %873 = vmatprep.subr.bf16.mxu0 0
      %874 = vmatpush1.bf16.msra.mxu0 0
      %875 = vmatprep.subr.bf16.mxu0 0
      %876 = vmatpush1.bf16.msra.mxu0 0
      %877 = vmatprep.subr.bf16.mxu0 0
      %878 = vmatpush1.bf16.msra.mxu0 0
      %879 = vmatprep.subr.bf16.mxu0 0
      %880 = vmatpush1.bf16.msra.mxu0 0
      %881 = vmatprep.subr.bf16.mxu0 0
      %882 = vmatpush1.bf16.msra.mxu0 0
      %883 = vmatprep.subr.bf16.mxu0 0
      %884 = vmatpush1.bf16.msra.mxu0 0
      %885 = vmatprep.subr.bf16.mxu0 0
      %886 = vmatpush1.bf16.msra.mxu0 0
      %887 = vmatprep.mubr.bf16.mxu0 0
      %888 = vmatmul.mubr.bf16.gmra.mrb[0].mxu0 %v607
      %v889 = vpop.f32.mrb[0].mxu0
      %v890 = vadd.f32 0.0, %v889
      %v891 = vpop.f32.mrb[0].mxu0
      %v892 = vadd.f32 0.0, %v891
      %v893 = vpop.f32.mrb[0].mxu0
      %v894 = vpop.f32.mrb[0].mxu0
      %895 = vdwg.mxu0
      %896 = vmatprep.subr.bf16.mxu0 %v476
      %897 = vmatpush1.bf16.msra.mxu0 %v475
      %898 = vmatprep.subr.bf16.mxu0 %v512
      %899 = vmatpush1.bf16.msra.mxu0 %v511
      %900 = vmatprep.subr.bf16.mxu0 0
      %901 = vmatpush1.bf16.msra.mxu0 0
      %902 = vmatprep.subr.bf16.mxu0 0
      %903 = vmatpush1.bf16.msra.mxu0 0
      %904 = vmatprep.subr.bf16.mxu0 0
      %905 = vmatpush1.bf16.msra.mxu0 0
      %906 = vmatprep.subr.bf16.mxu0 0
      %907 = vmatpush1.bf16.msra.mxu0 0
      %908 = vmatprep.subr.bf16.mxu0 0
      %909 = vmatpush1.bf16.msra.mxu0 0
      %910 = vmatprep.subr.bf16.mxu0 0
      %911 = vmatpush1.bf16.msra.mxu0 0
      %912 = vmatprep.subr.bf16.mxu0 0
      %913 = vmatpush1.bf16.msra.mxu0 0
      %914 = vmatprep.subr.bf16.mxu0 0
      %915 = vmatpush1.bf16.msra.mxu0 0
      %916 = vmatprep.subr.bf16.mxu0 0
      %917 = vmatpush1.bf16.msra.mxu0 0
      %918 = vmatprep.subr.bf16.mxu0 0
      %919 = vmatpush1.bf16.msra.mxu0 0
      %920 = vmatprep.subr.bf16.mxu0 0
      %921 = vmatpush1.bf16.msra.mxu0 0
      %922 = vmatprep.subr.bf16.mxu0 0
      %923 = vmatpush1.bf16.msra.mxu0 0
      %924 = vmatprep.subr.bf16.mxu0 0
      %925 = vmatpush1.bf16.msra.mxu0 0
      %926 = vmatprep.subr.bf16.mxu0 0
      %927 = vmatpush1.bf16.msra.mxu0 0
      %928 = vmatprep.mubr.bf16.mxu0 0
      %929 = vmatmul.mubr.bf16.gmra.mrb[0].mxu0 %v607
      %v930 = vpop.f32.mrb[0].mxu0
      %v931 = vadd.f32 0.0, %v930
      %v932 = vpop.f32.mrb[0].mxu0
      %v933 = vadd.f32 0.0, %v932
      %v934 = vpop.f32.mrb[0].mxu0
      %v935 = vpop.f32.mrb[0].mxu0
      %936 = vdwg.mxu0
      %937 = vmatprep.subr.bf16.mxu0 %v478
      %938 = vmatpush1.bf16.msra.mxu0 %v477
      %939 = vmatprep.subr.bf16.mxu0 %v514
      %940 = vmatpush1.bf16.msra.mxu0 %v513
      %941 = vmatprep.subr.bf16.mxu0 0
      %942 = vmatpush1.bf16.msra.mxu0 0
      %943 = vmatprep.subr.bf16.mxu0 0
      %944 = vmatpush1.bf16.msra.mxu0 0
      %945 = vmatprep.subr.bf16.mxu0 0
      %946 = vmatpush1.bf16.msra.mxu0 0
      %947 = vmatprep.subr.bf16.mxu0 0
      %948 = vmatpush1.bf16.msra.mxu0 0
      %949 = vmatprep.subr.bf16.mxu0 0
      %950 = vmatpush1.bf16.msra.mxu0 0
      %951 = vmatprep.subr.bf16.mxu0 0
      %952 = vmatpush1.bf16.msra.mxu0 0
      %953 = vmatprep.subr.bf16.mxu0 0
      %954 = vmatpush1.bf16.msra.mxu0 0
      %955 = vmatprep.subr.bf16.mxu0 0
      %956 = vmatpush1.bf16.msra.mxu0 0
      %957 = vmatprep.subr.bf16.mxu0 0
      %958 = vmatpush1.bf16.msra.mxu0 0
      %959 = vmatprep.subr.bf16.mxu0 0
      %960 = vmatpush1.bf16.msra.mxu0 0
      %961 = vmatprep.subr.bf16.mxu0 0
      %962 = vmatpush1.bf16.msra.mxu0 0
      %963 = vmatprep.subr.bf16.mxu0 0
      %964 = vmatpush1.bf16.msra.mxu0 0
      %965 = vmatprep.subr.bf16.mxu0 0
      %966 = vmatpush1.bf16.msra.mxu0 0
      %967 = vmatprep.subr.bf16.mxu0 0
      %968 = vmatpush1.bf16.msra.mxu0 0
      %969 = vmatprep.mubr.bf16.mxu0 0
      %970 = vmatmul.mubr.bf16.gmra.mrb[0].mxu0 %v607
      %v971 = vpop.f32.mrb[0].mxu0
      %v972 = vadd.f32 0.0, %v971
      %v973 = vpop.f32.mrb[0].mxu0
      %v974 = vadd.f32 0.0, %v973
      %v975 = vpop.f32.mrb[0].mxu0
      %v976 = vpop.f32.mrb[0].mxu0
      %977 = vdwg.mxu0
      %978 = vmatprep.subr.bf16.mxu0 %v480
      %979 = vmatpush1.bf16.msra.mxu0 %v479
      %980 = vmatprep.subr.bf16.mxu0 %v516
      %981 = vmatpush1.bf16.msra.mxu0 %v515
      %982 = vmatprep.subr.bf16.mxu0 0
      %983 = vmatpush1.bf16.msra.mxu0 0
      %984 = vmatprep.subr.bf16.mxu0 0
      %985 = vmatpush1.bf16.msra.mxu0 0
      %986 = vmatprep.subr.bf16.mxu0 0
      %987 = vmatpush1.bf16.msra.mxu0 0
      %988 = vmatprep.subr.bf16.mxu0 0
      %989 = vmatpush1.bf16.msra.mxu0 0
      %990 = vmatprep.subr.bf16.mxu0 0
      %991 = vmatpush1.bf16.msra.mxu0 0
      %992 = vmatprep.subr.bf16.mxu0 0
      %993 = vmatpush1.bf16.msra.mxu0 0
      %994 = vmatprep.subr.bf16.mxu0 0
      %995 = vmatpush1.bf16.msra.mxu0 0
      %996 = vmatprep.subr.bf16.mxu0 0
      %997 = vmatpush1.bf16.msra.mxu0 0
      %998 = vmatprep.subr.bf16.mxu0 0
      %999 = vmatpush1.bf16.msra.mxu0 0
      %1000 = vmatprep.subr.bf16.mxu0 0
      %1001 = vmatpush1.bf16.msra.mxu0 0
      %1002 = vmatprep.subr.bf16.mxu0 0
      %1003 = vmatpush1.bf16.msra.mxu0 0
      %1004 = vmatprep.subr.bf16.mxu0 0
      %1005 = vmatpush1.bf16.msra.mxu0 0
      %1006 = vmatprep.subr.bf16.mxu0 0
      %1007 = vmatpush1.bf16.msra.mxu0 0
      %1008 = vmatprep.subr.bf16.mxu0 0
      %1009 = vmatpush1.bf16.msra.mxu0 0
      %1010 = vmatprep.mubr.bf16.mxu0 0
      %1011 = vmatmul.mubr.bf16.gmra.mrb[0].mxu0 %v607
      %v1012 = vpop.f32.mrb[0].mxu0
      %v1013 = vadd.f32 0.0, %v1012
      %v1014 = vpop.f32.mrb[0].mxu0
      %v1015 = vadd.f32 0.0, %v1014
      %v1016 = vpop.f32.mrb[0].mxu0
      %v1017 = vpop.f32.mrb[0].mxu0
      %1018 = vdwg.mxu0
      %1019 = vmatprep.subr.bf16.mxu0 %v482
      %1020 = vmatpush1.bf16.msra.mxu0 %v481
      %1021 = vmatprep.subr.bf16.mxu0 %v518
      %1022 = vmatpush1.bf16.msra.mxu0 %v517
      %1023 = vmatprep.subr.bf16.mxu0 0
      %1024 = vmatpush1.bf16.msra.mxu0 0
      %1025 = vmatprep.subr.bf16.mxu0 0
      %1026 = vmatpush1.bf16.msra.mxu0 0
      %1027 = vmatprep.subr.bf16.mxu0 0
      %1028 = vmatpush1.bf16.msra.mxu0 0
      %1029 = vmatprep.subr.bf16.mxu0 0
      %1030 = vmatpush1.bf16.msra.mxu0 0
      %1031 = vmatprep.subr.bf16.mxu0 0
      %1032 = vmatpush1.bf16.msra.mxu0 0
      %1033 = vmatprep.subr.bf16.mxu0 0
      %1034 = vmatpush1.bf16.msra.mxu0 0
      %1035 = vmatprep.subr.bf16.mxu0 0
      %1036 = vmatpush1.bf16.msra.mxu0 0
      %1037 = vmatprep.subr.bf16.mxu0 0
      %1038 = vmatpush1.bf16.msra.mxu0 0
      %1039 = vmatprep.subr.bf16.mxu0 0
      %1040 = vmatpush1.bf16.msra.mxu0 0
      %1041 = vmatprep.subr.bf16.mxu0 0
      %1042 = vmatpush1.bf16.msra.mxu0 0
      %1043 = vmatprep.subr.bf16.mxu0 0
      %1044 = vmatpush1.bf16.msra.mxu0 0
      %1045 = vmatprep.subr.bf16.mxu0 0
      %1046 = vmatpush1.bf16.msra.mxu0 0
      %1047 = vmatprep.subr.bf16.mxu0 0
      %1048 = vmatpush1.bf16.msra.mxu0 0
      %1049 = vmatprep.subr.bf16.mxu0 0
      %1050 = vmatpush1.bf16.msra.mxu0 0
      %1051 = vmatprep.mubr.bf16.mxu0 0
      %1052 = vmatmul.mubr.bf16.gmra.mrb[0].mxu0 %v607
      %v1053 = vpop.f32.mrb[0].mxu0
      %v1054 = vadd.f32 0.0, %v1053
      %v1055 = vpop.f32.mrb[0].mxu0
      %v1056 = vadd.f32 0.0, %v1055
      %v1057 = vpop.f32.mrb[0].mxu0
      %v1058 = vpop.f32.mrb[0].mxu0
      %1059 = vdwg.mxu0
      %1060 = vmatprep.subr.bf16.mxu0 %v484
      %1061 = vmatpush1.bf16.msra.mxu0 %v483
      %1062 = vmatprep.subr.bf16.mxu0 %v520
      %1063 = vmatpush1.bf16.msra.mxu0 %v519
      %1064 = vmatprep.subr.bf16.mxu0 0
      %1065 = vmatpush1.bf16.msra.mxu0 0
      %1066 = vmatprep.subr.bf16.mxu0 0
      %1067 = vmatpush1.bf16.msra.mxu0 0
      %1068 = vmatprep.subr.bf16.mxu0 0
      %1069 = vmatpush1.bf16.msra.mxu0 0
      %1070 = vmatprep.subr.bf16.mxu0 0
      %1071 = vmatpush1.bf16.msra.mxu0 0
      %1072 = vmatprep.subr.bf16.mxu0 0
      %1073 = vmatpush1.bf16.msra.mxu0 0
      %1074 = vmatprep.subr.bf16.mxu0 0
      %1075 = vmatpush1.bf16.msra.mxu0 0
      %1076 = vmatprep.subr.bf16.mxu0 0
      %1077 = vmatpush1.bf16.msra.mxu0 0
      %1078 = vmatprep.subr.bf16.mxu0 0
      %1079 = vmatpush1.bf16.msra.mxu0 0
      %1080 = vmatprep.subr.bf16.mxu0 0
      %1081 = vmatpush1.bf16.msra.mxu0 0
      %1082 = vmatprep.subr.bf16.mxu0 0
      %1083 = vmatpush1.bf16.msra.mxu0 0
      %1084 = vmatprep.subr.bf16.mxu0 0
      %1085 = vmatpush1.bf16.msra.mxu0 0
      %1086 = vmatprep.subr.bf16.mxu0 0
      %1087 = vmatpush1.bf16.msra.mxu0 0
      %1088 = vmatprep.subr.bf16.mxu0 0
      %1089 = vmatpush1.bf16.msra.mxu0 0
      %1090 = vmatprep.subr.bf16.mxu0 0
      %1091 = vmatpush1.bf16.msra.mxu0 0
      %1092 = vmatprep.mubr.bf16.mxu0 0
      %1093 = vmatmul.mubr.bf16.gmra.mrb[0].mxu0 %v607
      %v1094 = vpop.f32.mrb[0].mxu0
      %v1095 = vadd.f32 0.0, %v1094
      %v1096 = vpop.f32.mrb[0].mxu0
      %v1097 = vadd.f32 0.0, %v1096
      %v1098 = vpop.f32.mrb[0].mxu0
      %v1099 = vpop.f32.mrb[0].mxu0
      %1100 = vdwg.mxu0
      %1101 = vmatprep.subr.bf16.mxu0 %v486
      %1102 = vmatpush1.bf16.msra.mxu0 %v485
      %1103 = vmatprep.subr.bf16.mxu0 %v522
      %1104 = vmatpush1.bf16.msra.mxu0 %v521
      %1105 = vmatprep.subr.bf16.mxu0 0
      %1106 = vmatpush1.bf16.msra.mxu0 0
      %1107 = vmatprep.subr.bf16.mxu0 0
      %1108 = vmatpush1.bf16.msra.mxu0 0
      %1109 = vmatprep.subr.bf16.mxu0 0
      %1110 = vmatpush1.bf16.msra.mxu0 0
      %1111 = vmatprep.subr.bf16.mxu0 0
      %1112 = vmatpush1.bf16.msra.mxu0 0
      %1113 = vmatprep.subr.bf16.mxu0 0
      %1114 = vmatpush1.bf16.msra.mxu0 0
      %1115 = vmatprep.subr.bf16.mxu0 0
      %1116 = vmatpush1.bf16.msra.mxu0 0
      %1117 = vmatprep.subr.bf16.mxu0 0
      %1118 = vmatpush1.bf16.msra.mxu0 0
      %1119 = vmatprep.subr.bf16.mxu0 0
      %1120 = vmatpush1.bf16.msra.mxu0 0
      %1121 = vmatprep.subr.bf16.mxu0 0
      %1122 = vmatpush1.bf16.msra.mxu0 0
      %1123 = vmatprep.subr.bf16.mxu0 0
      %1124 = vmatpush1.bf16.msra.mxu0 0
      %1125 = vmatprep.subr.bf16.mxu0 0
      %1126 = vmatpush1.bf16.msra.mxu0 0
      %1127 = vmatprep.subr.bf16.mxu0 0
      %1128 = vmatpush1.bf16.msra.mxu0 0
      %1129 = vmatprep.subr.bf16.mxu0 0
      %1130 = vmatpush1.bf16.msra.mxu0 0
      %1131 = vmatprep.subr.bf16.mxu0 0
      %1132 = vmatpush1.bf16.msra.mxu0 0
      %1133 = vmatprep.mubr.bf16.mxu0 0
      %1134 = vmatmul.mubr.bf16.gmra.mrb[0].mxu0 %v607
      %v1135 = vpop.f32.mrb[0].mxu0
      %v1136 = vadd.f32 0.0, %v1135
      %v1137 = vpop.f32.mrb[0].mxu0
      %v1138 = vadd.f32 0.0, %v1137
      %v1139 = vpop.f32.mrb[0].mxu0
      %v1140 = vpop.f32.mrb[0].mxu0
      %1141 = vdwg.mxu0
      %1142 = vmatprep.subr.bf16.mxu0 %v488
      %1143 = vmatpush1.bf16.msra.mxu0 %v487
      %1144 = vmatprep.subr.bf16.mxu0 %v524
      %1145 = vmatpush1.bf16.msra.mxu0 %v523
      %1146 = vmatprep.subr.bf16.mxu0 0
      %1147 = vmatpush1.bf16.msra.mxu0 0
      %1148 = vmatprep.subr.bf16.mxu0 0
      %1149 = vmatpush1.bf16.msra.mxu0 0
      %1150 = vmatprep.subr.bf16.mxu0 0
      %1151 = vmatpush1.bf16.msra.mxu0 0
      %1152 = vmatprep.subr.bf16.mxu0 0
      %1153 = vmatpush1.bf16.msra.mxu0 0
      %1154 = vmatprep.subr.bf16.mxu0 0
      %1155 = vmatpush1.bf16.msra.mxu0 0
      %1156 = vmatprep.subr.bf16.mxu0 0
      %1157 = vmatpush1.bf16.msra.mxu0 0
      %1158 = vmatprep.subr.bf16.mxu0 0
      %1159 = vmatpush1.bf16.msra.mxu0 0
      %1160 = vmatprep.subr.bf16.mxu0 0
      %1161 = vmatpush1.bf16.msra.mxu0 0
      %1162 = vmatprep.subr.bf16.mxu0 0
      %1163 = vmatpush1.bf16.msra.mxu0 0
      %1164 = vmatprep.subr.bf16.mxu0 0
      %1165 = vmatpush1.bf16.msra.mxu0 0
      %1166 = vmatprep.subr.bf16.mxu0 0
      %1167 = vmatpush1.bf16.msra.mxu0 0
      %1168 = vmatprep.subr.bf16.mxu0 0
      %1169 = vmatpush1.bf16.msra.mxu0 0
      %1170 = vmatprep.subr.bf16.mxu0 0
      %1171 = vmatpush1.bf16.msra.mxu0 0
      %1172 = vmatprep.subr.bf16.mxu0 0
      %1173 = vmatpush1.bf16.msra.mxu0 0
      %1174 = vmatprep.mubr.bf16.mxu0 0
      %1175 = vmatmul.mubr.bf16.gmra.mrb[0].mxu0 %v607
      %v1176 = vpop.f32.mrb[0].mxu0
      %v1177 = vadd.f32 0.0, %v1176
      %v1178 = vpop.f32.mrb[0].mxu0
      %v1179 = vadd.f32 0.0, %v1178
      %v1180 = vpop.f32.mrb[0].mxu0
      %v1181 = vpop.f32.mrb[0].mxu0
      %1182 = vdwg.mxu0
      %1183 = vmatprep.subr.bf16.mxu0 %v490
      %1184 = vmatpush1.bf16.msra.mxu0 %v489
      %1185 = vmatprep.subr.bf16.mxu0 %v526
      %1186 = vmatpush1.bf16.msra.mxu0 %v525
      %1187 = vmatprep.subr.bf16.mxu0 0
      %1188 = vmatpush1.bf16.msra.mxu0 0
      %1189 = vmatprep.subr.bf16.mxu0 0
      %1190 = vmatpush1.bf16.msra.mxu0 0
      %1191 = vmatprep.subr.bf16.mxu0 0
      %1192 = vmatpush1.bf16.msra.mxu0 0
      %1193 = vmatprep.subr.bf16.mxu0 0
      %1194 = vmatpush1.bf16.msra.mxu0 0
      %1195 = vmatprep.subr.bf16.mxu0 0
      %1196 = vmatpush1.bf16.msra.mxu0 0
      %1197 = vmatprep.subr.bf16.mxu0 0
      %1198 = vmatpush1.bf16.msra.mxu0 0
      %1199 = vmatprep.subr.bf16.mxu0 0
      %1200 = vmatpush1.bf16.msra.mxu0 0
      %1201 = vmatprep.subr.bf16.mxu0 0
      %1202 = vmatpush1.bf16.msra.mxu0 0
      %1203 = vmatprep.subr.bf16.mxu0 0
      %1204 = vmatpush1.bf16.msra.mxu0 0
      %1205 = vmatprep.subr.bf16.mxu0 0
      %1206 = vmatpush1.bf16.msra.mxu0 0
      %1207 = vmatprep.subr.bf16.mxu0 0
      %1208 = vmatpush1.bf16.msra.mxu0 0
      %1209 = vmatprep.subr.bf16.mxu0 0
      %1210 = vmatpush1.bf16.msra.mxu0 0
      %1211 = vmatprep.subr.bf16.mxu0 0
      %1212 = vmatpush1.bf16.msra.mxu0 0
      %1213 = vmatprep.subr.bf16.mxu0 0
      %1214 = vmatpush1.bf16.msra.mxu0 0
      %1215 = vmatprep.mubr.bf16.mxu0 0
      %1216 = vmatmul.mubr.bf16.gmra.mrb[0].mxu0 %v607
      %v1217 = vpop.f32.mrb[0].mxu0
      %v1218 = vadd.f32 0.0, %v1217
      %v1219 = vpop.f32.mrb[0].mxu0
      %v1220 = vadd.f32 0.0, %v1219
      %v1221 = vpop.f32.mrb[0].mxu0
      %v1222 = vpop.f32.mrb[0].mxu0
      %1223 = vdwg.mxu0
      %1224 = vmatprep.subr.bf16.mxu0 %v492
      %1225 = vmatpush1.bf16.msra.mxu0 %v491
      %1226 = vmatprep.subr.bf16.mxu0 %v528
      %1227 = vmatpush1.bf16.msra.mxu0 %v527
      %1228 = vmatprep.subr.bf16.mxu0 0
      %1229 = vmatpush1.bf16.msra.mxu0 0
      %1230 = vmatprep.subr.bf16.mxu0 0
      %1231 = vmatpush1.bf16.msra.mxu0 0
      %1232 = vmatprep.subr.bf16.mxu0 0
      %1233 = vmatpush1.bf16.msra.mxu0 0
      %1234 = vmatprep.subr.bf16.mxu0 0
      %1235 = vmatpush1.bf16.msra.mxu0 0
      %1236 = vmatprep.subr.bf16.mxu0 0
      %1237 = vmatpush1.bf16.msra.mxu0 0
      %1238 = vmatprep.subr.bf16.mxu0 0
      %1239 = vmatpush1.bf16.msra.mxu0 0
      %1240 = vmatprep.subr.bf16.mxu0 0
      %1241 = vmatpush1.bf16.msra.mxu0 0
      %1242 = vmatprep.subr.bf16.mxu0 0
      %1243 = vmatpush1.bf16.msra.mxu0 0
      %1244 = vmatprep.subr.bf16.mxu0 0
      %1245 = vmatpush1.bf16.msra.mxu0 0
      %1246 = vmatprep.subr.bf16.mxu0 0
      %1247 = vmatpush1.bf16.msra.mxu0 0
      %1248 = vmatprep.subr.bf16.mxu0 0
      %1249 = vmatpush1.bf16.msra.mxu0 0
      %1250 = vmatprep.subr.bf16.mxu0 0
      %1251 = vmatpush1.bf16.msra.mxu0 0
      %1252 = vmatprep.subr.bf16.mxu0 0
      %1253 = vmatpush1.bf16.msra.mxu0 0
      %1254 = vmatprep.subr.bf16.mxu0 0
      %1255 = vmatpush1.bf16.msra.mxu0 0
      %1256 = vmatprep.mubr.bf16.mxu0 0
      %1257 = vmatmul.mubr.bf16.gmra.mrb[0].mxu0 %v607
      %v1258 = vpop.f32.mrb[0].mxu0
      %v1259 = vadd.f32 0.0, %v1258
      %v1260 = vpop.f32.mrb[0].mxu0
      %v1261 = vadd.f32 0.0, %v1260
      %v1262 = vpop.f32.mrb[0].mxu0
      %v1263 = vpop.f32.mrb[0].mxu0
      %1264 = vdwg.mxu0
      %1265 = vmatprep.subr.bf16.mxu0 %v494
      %1266 = vmatpush1.bf16.msra.mxu0 %v493
      %1267 = vmatprep.subr.bf16.mxu0 %v530
      %1268 = vmatpush1.bf16.msra.mxu0 %v529
      %1269 = vmatprep.subr.bf16.mxu0 0
      %1270 = vmatpush1.bf16.msra.mxu0 0
      %1271 = vmatprep.subr.bf16.mxu0 0
      %1272 = vmatpush1.bf16.msra.mxu0 0
      %1273 = vmatprep.subr.bf16.mxu0 0
      %1274 = vmatpush1.bf16.msra.mxu0 0
      %1275 = vmatprep.subr.bf16.mxu0 0
      %1276 = vmatpush1.bf16.msra.mxu0 0
      %1277 = vmatprep.subr.bf16.mxu0 0
      %1278 = vmatpush1.bf16.msra.mxu0 0
      %1279 = vmatprep.subr.bf16.mxu0 0
      %1280 = vmatpush1.bf16.msra.mxu0 0
      %1281 = vmatprep.subr.bf16.mxu0 0
      %1282 = vmatpush1.bf16.msra.mxu0 0
      %1283 = vmatprep.subr.bf16.mxu0 0
      %1284 = vmatpush1.bf16.msra.mxu0 0
      %1285 = vmatprep.subr.bf16.mxu0 0
      %1286 = vmatpush1.bf16.msra.mxu0 0
      %1287 = vmatprep.subr.bf16.mxu0 0
      %1288 = vmatpush1.bf16.msra.mxu0 0
      %1289 = vmatprep.subr.bf16.mxu0 0
      %1290 = vmatpush1.bf16.msra.mxu0 0
      %1291 = vmatprep.subr.bf16.mxu0 0
      %1292 = vmatpush1.bf16.msra.mxu0 0
      %1293 = vmatprep.subr.bf16.mxu0 0
      %1294 = vmatpush1.bf16.msra.mxu0 0
      %1295 = vmatprep.subr.bf16.mxu0 0
      %1296 = vmatpush1.bf16.msra.mxu0 0
      %1297 = vmatprep.mubr.bf16.mxu0 0
      %1298 = vmatmul.mubr.bf16.gmra.mrb[0].mxu0 %v607
      %v1299 = vpop.f32.mrb[0].mxu0
      %v1300 = vadd.f32 0.0, %v1299
      %v1301 = vpop.f32.mrb[0].mxu0
      %v1302 = vadd.f32 0.0, %v1301
      %v1303 = vpop.f32.mrb[0].mxu0
      %v1304 = vpop.f32.mrb[0].mxu0
      %1305 = vdwg.mxu0
      %1306 = vmatprep.subr.bf16.mxu0 %v496
      %1307 = vmatpush1.bf16.msra.mxu0 %v495
      %1308 = vmatprep.subr.bf16.mxu0 %v532
      %1309 = vmatpush1.bf16.msra.mxu0 %v531
      %1310 = vmatprep.subr.bf16.mxu0 0
      %1311 = vmatpush1.bf16.msra.mxu0 0
      %1312 = vmatprep.subr.bf16.mxu0 0
      %1313 = vmatpush1.bf16.msra.mxu0 0
      %1314 = vmatprep.subr.bf16.mxu0 0
      %1315 = vmatpush1.bf16.msra.mxu0 0
      %1316 = vmatprep.subr.bf16.mxu0 0
      %1317 = vmatpush1.bf16.msra.mxu0 0
      %1318 = vmatprep.subr.bf16.mxu0 0
      %1319 = vmatpush1.bf16.msra.mxu0 0
      %1320 = vmatprep.subr.bf16.mxu0 0
      %1321 = vmatpush1.bf16.msra.mxu0 0
      %1322 = vmatprep.subr.bf16.mxu0 0
      %1323 = vmatpush1.bf16.msra.mxu0 0
      %1324 = vmatprep.subr.bf16.mxu0 0
      %1325 = vmatpush1.bf16.msra.mxu0 0
      %1326 = vmatprep.subr.bf16.mxu0 0
      %1327 = vmatpush1.bf16.msra.mxu0 0
      %1328 = vmatprep.subr.bf16.mxu0 0
      %1329 = vmatpush1.bf16.msra.mxu0 0
      %1330 = vmatprep.subr.bf16.mxu0 0
      %1331 = vmatpush1.bf16.msra.mxu0 0
      %1332 = vmatprep.subr.bf16.mxu0 0
      %1333 = vmatpush1.bf16.msra.mxu0 0
      %1334 = vmatprep.subr.bf16.mxu0 0
      %1335 = vmatpush1.bf16.msra.mxu0 0
      %1336 = vmatprep.subr.bf16.mxu0 0
      %1337 = vmatpush1.bf16.msra.mxu0 0
      %1338 = vmatprep.mubr.bf16.mxu0 0
      %1339 = vmatmul.mubr.bf16.gmra.mrb[0].mxu0 %v607
      %v1340 = vpop.f32.mrb[0].mxu0
      %v1341 = vadd.f32 0.0, %v1340
      %v1342 = vpop.f32.mrb[0].mxu0
      %v1343 = vadd.f32 0.0, %v1342
      %v1344 = vpop.f32.mrb[0].mxu0
      %v1345 = vpop.f32.mrb[0].mxu0
      %1346 = vdwg.mxu0
      %v1347 = vmax.f32 %v644, %v810
      %v1348 = vmax.f32 %v646, %v849
      %v1349 = vmax.f32 %v685, %v851
      %v1350 = vmax.f32 %v687, %v890
      %v1351 = vmax.f32 %v726, %v892
      %v1352 = vmax.f32 %v728, %v931
      %v1353 = vmax.f32 %v767, %v933
      %v1354 = vmax.f32 %v769, %v972
      %v1355 = vmax.f32 %v808, %v974
      %v1356 = vmax.f32 %v1013, %v1179
      %v1357 = vmax.f32 %v1015, %v1218
      %v1358 = vmax.f32 %v1054, %v1220
      %v1359 = vmax.f32 %v1056, %v1259
      %v1360 = vmax.f32 %v1095, %v1261
      %v1361 = vmax.f32 %v1097, %v1300
      %v1362 = vmax.f32 %v1136, %v1302
      %v1363 = vmax.f32 %v1138, %v1341
      %v1364 = vmax.f32 %v1177, %v1343
      %v1365 = vmax.f32 %v1347, %v1356
      %v1366 = vmax.f32 %v1348, %v1357
      %v1367 = vmax.f32 %v1349, %v1358
      %v1368 = vmax.f32 %v1350, %v1359
      %v1369 = vmax.f32 %v1351, %v1360
      %v1370 = vmax.f32 %v1352, %v1361
      %v1371 = vmax.f32 %v1353, %v1362
      %v1372 = vmax.f32 %v1354, %v1363
      %v1373 = vmax.f32 %v1355, %v1364
      %v1374 = vld [vmem:[%s2] sm:$0xff]
      %1376 = vset.pattern.permute.xlu0 0
      %1377 = vperm.xlu0 %1376, %v1374
      %v1378 = vpop.permute.xlu0 %1377
      %v1380 = vadd.f32 %v1365, %v1378
      %v1381 = vadd.f32 %v1366, %v1378
      %v1382 = vadd.f32 %v1367, %v1378
      %v1383 = vadd.f32 %v1368, %v1378
      %v1384 = vadd.f32 %v1369, %v1378
      %v1385 = vadd.f32 %v1370, %v1378
      %v1386 = vadd.f32 %v1371, %v1378
      %v1387 = vadd.f32 %v1372, %v1378
      %v1388 = vadd.f32 %v1373, %v1378
      %v1389 = vmax.f32 %v1380, 0.0
      %v1390 = vmax.f32 %v1381, 0.0
      %v1391 = vmax.f32 %v1382, 0.0
      %v1392 = vmax.f32 %v1383, 0.0
      %v1393 = vmax.f32 %v1384, 0.0
      %v1394 = vmax.f32 %v1385, 0.0
      %v1395 = vmax.f32 %v1386, 0.0
      %v1396 = vmax.f32 %v1387, 0.0
      %v1397 = vmax.f32 %v1388, 0.0
      %1398 = vst [vmem:[%s170] sm:$0xff] %v1389
      %1399 = vst [vmem:[%s170 + $0x8] sm:$0xff] %v1390
      %1400 = vst [vmem:[%s170 + $0x10] sm:$0xff] %v1391
      %1401 = vst [vmem:[%s170 + $0x18] sm:$0xff] %v1392
      %1402 = vst [vmem:[%s170 + $0x20] sm:$0xff] %v1393
      %1403 = vst [vmem:[%s170 + $0x28] sm:$0xff] %v1394
      %1404 = vst [vmem:[%s170 + $0x30] sm:$0xff] %v1395
      %1405 = vst [vmem:[%s170 + $0x38] sm:$0xff] %v1396
      %1406 = vst [vmem:[%s170 + $0x40] sm:$0xff] %v1397
      %p1407 = scmp.lt.s32.totalorder %s14, 1
      %s1408 = scalar_select %p1407, %s14, 1
      %s1409 = smul.addr %s1408, 9
      %s1410 = smul.addr %s1409, 8
      %s1411 = scalar_lea.vmem %s3, %s1410
      // Predicated region
      $region33: #{fashion_convnet_forward.2} parent=31 // pred_check
        %p1412 = pneg %p100
      $region34: #{fashion_convnet_forward.2} parent=31 // pred_check_branch
        %1414 = sbr.rel (%p1412) target = $region36
      $region35: #{fashion_convnet_forward.2} parent=31 // pred_region
        _
      $region36: #{fashion_convnet_forward.2} parent=31 // pred_fallthru
        _
    $region32: #{fashion_convnet_forward.2} parent=5 // pred_fallthru
      _
    %p1415 = scmp.le.s32.totalorder 2, %s9
    // Predicated region
    $region37: #{fashion_convnet_forward.2} parent=5 // pred_check
      %p1416 = pneg %p1415
    $region38: #{fashion_convnet_forward.2} parent=5 // pred_check_branch
      %1418 = sbr.rel (%p1416) target = $region40
    $region39: #{fashion_convnet_forward.2} parent=5 // pred_region
      %s1419 = ssub.s32 %s9, 2
      // Predicated region
      $region41: #{fashion_convnet_forward.2} parent=39 // pred_check
        %p1420 = pneg %p106
      $region42: #{fashion_convnet_forward.2} parent=39 // pred_check_branch
        %1422 = sbr.rel (%p1420) target = $region44
      $region43: #{fashion_convnet_forward.2} parent=39 // pred_region
        %p1423 = scmp.lt.s32.totalorder %s15, 1
        %s1424 = scalar_select %p1423, %s15, 1
        %s1425 = smul.addr %s1424, 9
        %s1426 = smul.addr %s1425, 8
        %s1427 = scalar_lea.vmem %s3, %s1426
      $region44: #{fashion_convnet_forward.2} parent=39 // pred_fallthru
        _
    $region40: #{fashion_convnet_forward.2} parent=5 // pred_fallthru
      _
  $region6: #{fashion_convnet_forward.2} parent=0 // loop_footer
    %s13 = sadd.s32 1, %s9
  $region7: #{fashion_convnet_forward.2} parent=0 // loop_footer_branch
    %8 = sbr.rel target = $region3
  $region8: #{fashion_convnet_forward.2} parent=0 // loop_exit
    _

// kernel: tile.8
$region0: #{tile.8}
  #allocation0 [shape = 's32[1]{0}', space=sflag, size = 0x4, scoped, tag = 'scoped memory for tile.8']
  %s0 = inlined_call_operand.vmem [shape: f32[8], index: 0, kind: input, shape index: {}]
  %s1 = inlined_call_operand.vmem [shape: f32[16,8], index: 1, kind: output, shape index: {}]
  // Predicated region
  $region2: #{tile.8} parent=0 // pred_check
    _
  $region3: #{tile.8} parent=0 // pred_check_branch
    %3 = sbr.rel (0) target = $region5
  $region4: #{tile.8} parent=0 // pred_region
    _
  $region5: #{tile.8} parent=0 // pred_fallthru
    _
  %v4 = vld [vmem:[%s0] ss:$0 sm:$0xff]
  %5 = vst [vmem:[%s1] sm:$0xff] %v4
  %s6 = scalar_lea.vmem %s1, 8
  %7 = vst [vmem:[%s6] sm:$0xff] %v4

// kernel: fashion_convnet_forward.3
$region0: #{fashion_convnet_forward.3}
  #allocation0 [shape = 'u32[]', space=smem, size = 0x4, offset = 0x4, fixed_abs, tag = 'smem constant byte address 0x4 - core index']
  #allocation1 [shape = 'u32[144,128]{1,0:T(1,128)}', space=vmem, size = 0x12000, scoped, tag = 'internal scratch']
  %s0 = inlined_call_operand.vmem [shape: bf16[2,32,1664], index: 0, kind: input, shape index: {}]
  %s1 = inlined_call_operand.vmem [shape: bf16[1664,128], index: 1, kind: input, shape index: {}]
  %s2 = inlined_call_operand.vmem [shape: f32[1,128], index: 2, kind: input, shape index: {}]
  %s3 = inlined_call_operand.vmem [shape: bf16[128,64], index: 3, kind: input, shape index: {}]
  %s4 = inlined_call_operand.vmem [shape: f32[1,64], index: 4, kind: input, shape index: {}]
  %s5 = inlined_call_operand.vmem [shape: bf16[64,128], index: 5, kind: input, shape index: {}]
  %s6 = inlined_call_operand.vmem [shape: f32[1,128], index: 6, kind: input, shape index: {}]
  %s7 = inlined_call_operand.hbm [shape: f32[16,128], index: 7, kind: output, shape index: {}]
  %s8 = sld [smem:[#allocation0]]
  $region61: #{fashion_convnet_forward.3} parent=0
    _
  %s10 = ssub.s32 1, %s8
  %s11 = scalar_select 0, %s10, %s8
  $region1: #{fashion_convnet_forward.3} parent=0
    #allocation2 [shape = 'u8[8192]{0}', space=vmem, size = 0x2000, scoped, tag = 'output window, operand 0']
    #allocation3 [shape = 's32[2]{0}', space=sflag, size = 0x8, scoped, tag = 'scoped memory for fashion_convnet_forward.3']
    %12 = vsyncpa [#allocation3], 0
    %s13 = scalar_lea.sflag [#allocation3], 1
    %14 = vsyncpa %s13, 0
    loop: start=0, step=1, limit=4
    $region2: #{fashion_convnet_forward.3} parent=1 // loop_pre_header
      _
    $region3: #{fashion_convnet_forward.3} parent=1 // loop_header
      %s16 = sphi 0, %s20
      %p17 = scmp.ge.s32.totalorder %s16, 4
      %s26 = sphi 0, %s28
      %s29 = sphi 0, %s26
      %s30 = sphi 0, %s29
      %s46 = sphi 0, %s30
      %s50 = sphi 0, %s50
      %s52 = sphi 0, %s50
      %s53 = sphi 0, %s52
      %s67 = sphi 0, %s53
      %s71 = sphi 0, %s71
      %s73 = sphi 0, %s71
      %s74 = sphi 0, %s73
      %s88 = sphi 0, %s74
      %s92 = sphi 0, %s92
      %s94 = sphi 0, %s92
      %s95 = sphi 0, %s94
      %s109 = sphi 0, %s95
      %s113 = sphi 0, %s113
      %s115 = sphi 0, %s113
      %s116 = sphi 0, %s115
      %s130 = sphi 0, %s116
      %s134 = sphi 0, %s134
      %s136 = sphi 0, %s134
      %s137 = sphi 0, %s136
      %s151 = sphi 0, %s137
      %s155 = sphi 0, %s155
      %s157 = sphi 0, %s155
      %s158 = sphi 0, %s157
      %s172 = sphi 0, %s158
      %s178 = sphi 0, %s180
      %s181 = sphi 0, %s178
      %s182 = sphi 0, %s181
      %s198 = sphi 0, %s182
    $region4: #{fashion_convnet_forward.3} parent=1 // loop_header_branch
      %19 = sbr.rel (%p17) target = $region8
    $region5: #{fashion_convnet_forward.3} parent=1 // loop_body
      %s21 = ssub.s32 %s16, 1
      %s22 = ssub.s32 %s16, 2
      %s23 = sadd.s32 %s16, 1
      %s24 = ssub.s32 %s16, %s23
      %p25 = scmp.eq.s32.totalorder %s24, 0
      %s27 = sadd.s32 %s26, 1
      %s28 = scalar_select %p25, %s26, %s27
      %p31 = pneg %p25
      %p32 = scmp.eq.s32.totalorder %s16, 1
      %p33 = por %p31, %p32
      %p34 = scmp.ne.s32.totalorder %s26, %s29
      %p35 = scmp.eq.s32.totalorder %s16, 0
      %p36 = por %p34, %p35
      %p37 = scmp.ne.s32.totalorder %s26, %s29
      %p38 = scmp.eq.s32.totalorder %s21, 1
      %p39 = por %p37, %p38
      %p40 = scmp.ne.s32.totalorder %s29, %s30
      %p41 = scmp.eq.s32.totalorder %s21, 0
      %p42 = por %p40, %p41
      %p43 = scmp.ne.s32.totalorder %s29, %s30
      %p44 = scmp.eq.s32.totalorder %s22, 1
      %p45 = por %p43, %p44
      %p47 = scmp.ne.s32.totalorder %s30, %s46
      %p48 = scmp.eq.s32.totalorder %s22, 0
      %p49 = por %p47, %p48
      %s51 = sadd.s32 %s50, 1
      %p54 = scmp.eq.s32.totalorder %s16, 1
      %p55 = scmp.ne.s32.totalorder %s50, %s52
      %p56 = scmp.eq.s32.totalorder %s16, 0
      %p57 = por %p55, %p56
      %p58 = scmp.ne.s32.totalorder %s50, %s52
      %p59 = scmp.eq.s32.totalorder %s21, 1
      %p60 = por %p58, %p59
      %p61 = scmp.ne.s32.totalorder %s52, %s53
      %p62 = scmp.eq.s32.totalorder %s21, 0
      %p63 = por %p61, %p62
      %p64 = scmp.ne.s32.totalorder %s52, %s53
      %p65 = scmp.eq.s32.totalorder %s22, 1
      %p66 = por %p64, %p65
      %p68 = scmp.ne.s32.totalorder %s53, %s67
      %p69 = scmp.eq.s32.totalorder %s22, 0
      %p70 = por %p68, %p69
      %s72 = sadd.s32 %s71, 1
      %p75 = scmp.eq.s32.totalorder %s16, 1
      %p76 = scmp.ne.s32.totalorder %s71, %s73
      %p77 = scmp.eq.s32.totalorder %s16, 0
      %p78 = por %p76, %p77
      %p79 = scmp.ne.s32.totalorder %s71, %s73
      %p80 = scmp.eq.s32.totalorder %s21, 1
      %p81 = por %p79, %p80
      %p82 = scmp.ne.s32.totalorder %s73, %s74
      %p83 = scmp.eq.s32.totalorder %s21, 0
      %p84 = por %p82, %p83
      %p85 = scmp.ne.s32.totalorder %s73, %s74
      %p86 = scmp.eq.s32.totalorder %s22, 1
      %p87 = por %p85, %p86
      %p89 = scmp.ne.s32.totalorder %s74, %s88
      %p90 = scmp.eq.s32.totalorder %s22, 0
      %p91 = por %p89, %p90
      %s93 = sadd.s32 %s92, 1
      %p96 = scmp.eq.s32.totalorder %s16, 1
      %p97 = scmp.ne.s32.totalorder %s92, %s94
      %p98 = scmp.eq.s32.totalorder %s16, 0
      %p99 = por %p97, %p98
      %p100 = scmp.ne.s32.totalorder %s92, %s94
      %p101 = scmp.eq.s32.totalorder %s21, 1
      %p102 = por %p100, %p101
      %p103 = scmp.ne.s32.totalorder %s94, %s95
      %p104 = scmp.eq.s32.totalorder %s21, 0
      %p105 = por %p103, %p104
      %p106 = scmp.ne.s32.totalorder %s94, %s95
      %p107 = scmp.eq.s32.totalorder %s22, 1
      %p108 = por %p106, %p107
      %p110 = scmp.ne.s32.totalorder %s95, %s109
      %p111 = scmp.eq.s32.totalorder %s22, 0
      %p112 = por %p110, %p111
      %s114 = sadd.s32 %s113, 1
      %p117 = scmp.eq.s32.totalorder %s16, 1
      %p118 = scmp.ne.s32.totalorder %s113, %s115
      %p119 = scmp.eq.s32.totalorder %s16, 0
      %p120 = por %p118, %p119
      %p121 = scmp.ne.s32.totalorder %s113, %s115
      %p122 = scmp.eq.s32.totalorder %s21, 1
      %p123 = por %p121, %p122
      %p124 = scmp.ne.s32.totalorder %s115, %s116
      %p125 = scmp.eq.s32.totalorder %s21, 0
      %p126 = por %p124, %p125
      %p127 = scmp.ne.s32.totalorder %s115, %s116
      %p128 = scmp.eq.s32.totalorder %s22, 1
      %p129 = por %p127, %p128
      %p131 = scmp.ne.s32.totalorder %s116, %s130
      %p132 = scmp.eq.s32.totalorder %s22, 0
      %p133 = por %p131, %p132
      %s135 = sadd.s32 %s134, 1
      %p138 = scmp.eq.s32.totalorder %s16, 1
      %p139 = scmp.ne.s32.totalorder %s134, %s136
      %p140 = scmp.eq.s32.totalorder %s16, 0
      %p141 = por %p139, %p140
      %p142 = scmp.ne.s32.totalorder %s134, %s136
      %p143 = scmp.eq.s32.totalorder %s21, 1
      %p144 = por %p142, %p143
      %p145 = scmp.ne.s32.totalorder %s136, %s137
      %p146 = scmp.eq.s32.totalorder %s21, 0
      %p147 = por %p145, %p146
      %p148 = scmp.ne.s32.totalorder %s136, %s137
      %p149 = scmp.eq.s32.totalorder %s22, 1
      %p150 = por %p148, %p149
      %p152 = scmp.ne.s32.totalorder %s137, %s151
      %p153 = scmp.eq.s32.totalorder %s22, 0
      %p154 = por %p152, %p153
      %s156 = sadd.s32 %s155, 1
      %p159 = scmp.eq.s32.totalorder %s16, 1
      %p160 = scmp.ne.s32.totalorder %s155, %s157
      %p161 = scmp.eq.s32.totalorder %s16, 0
      %p162 = por %p160, %p161
      %p163 = scmp.ne.s32.totalorder %s155, %s157
      %p164 = scmp.eq.s32.totalorder %s21, 1
      %p165 = por %p163, %p164
      %p166 = scmp.ne.s32.totalorder %s157, %s158
      %p167 = scmp.eq.s32.totalorder %s21, 0
      %p168 = por %p166, %p167
      %p169 = scmp.ne.s32.totalorder %s157, %s158
      %p170 = scmp.eq.s32.totalorder %s22, 1
      %p171 = por %p169, %p170
      %p173 = scmp.ne.s32.totalorder %s158, %s172
      %p174 = scmp.eq.s32.totalorder %s22, 0
      %p175 = por %p173, %p174
      %s176 = ssub.s32 %s16, %s23
      %p177 = scmp.eq.s32.totalorder %s176, 0
      %s179 = sadd.s32 %s178, 1
      %s180 = scalar_select %p177, %s178, %s179
      %p183 = pneg %p177
      %p184 = scmp.eq.s32.totalorder %s16, 1
      %p185 = por %p183, %p184
      %p186 = scmp.ne.s32.totalorder %s178, %s181
      %p187 = scmp.eq.s32.totalorder %s16, 0
      %p188 = por %p186, %p187
      %p189 = scmp.ne.s32.totalorder %s178, %s181
      %p190 = scmp.eq.s32.totalorder %s21, 1
      %p191 = por %p189, %p190
      %p192 = scmp.ne.s32.totalorder %s181, %s182
      %p193 = scmp.eq.s32.totalorder %s21, 0
      %p194 = por %p192, %p193
      %p195 = scmp.ne.s32.totalorder %s181, %s182
      %p196 = scmp.eq.s32.totalorder %s22, 1
      %p197 = por %p195, %p196
      %p199 = scmp.ne.s32.totalorder %s182, %s198
      %p200 = scmp.eq.s32.totalorder %s22, 0
      %p201 = por %p199, %p200
      %p202 = scmp.le.s32.totalorder 1, %s16
      %p203 = scmp.lt.s32.totalorder %s16, 3
      %p204 = pnand %p202, %p203
      %p205 = pneg %p204
      // Predicated region
      $region9: #{fashion_convnet_forward.3} parent=5 // pred_check
        _
      $region10: #{fashion_convnet_forward.3} parent=5 // pred_check_branch
        %207 = sbr.rel (%p204) target = $region12
      $region11: #{fashion_convnet_forward.3} parent=5 // pred_region
        %s208 = ssub.s32 %s16, 1
        // Predicated region
        $region13: #{fashion_convnet_forward.3} parent=11 // pred_check
          %p209 = pneg %p63
        $region14: #{fashion_convnet_forward.3} parent=11 // pred_check_branch
          %211 = sbr.rel (%p209) target = $region16
        $region15: #{fashion_convnet_forward.3} parent=11 // pred_region
          _
        $region16: #{fashion_convnet_forward.3} parent=11 // pred_fallthru
          _
        // Predicated region
        $region17: #{fashion_convnet_forward.3} parent=11 // pred_check
          %p212 = pneg %p84
        $region18: #{fashion_convnet_forward.3} parent=11 // pred_check_branch
          %214 = sbr.rel (%p212) target = $region20
        $region19: #{fashion_convnet_forward.3} parent=11 // pred_region
          _
        $region20: #{fashion_convnet_forward.3} parent=11 // pred_fallthru
          _
        // Predicated region
        $region21: #{fashion_convnet_forward.3} parent=11 // pred_check
          %p215 = pneg %p105
        $region22: #{fashion_convnet_forward.3} parent=11 // pred_check_branch
          %217 = sbr.rel (%p215) target = $region24
        $region23: #{fashion_convnet_forward.3} parent=11 // pred_region
          _
        $region24: #{fashion_convnet_forward.3} parent=11 // pred_fallthru
          _
        // Predicated region
        $region25: #{fashion_convnet_forward.3} parent=11 // pred_check
          %p218 = pneg %p126
        $region26: #{fashion_convnet_forward.3} parent=11 // pred_check_branch
          %220 = sbr.rel (%p218) target = $region28
        $region27: #{fashion_convnet_forward.3} parent=11 // pred_region
          _
        $region28: #{fashion_convnet_forward.3} parent=11 // pred_fallthru
          _
        // Predicated region
        $region29: #{fashion_convnet_forward.3} parent=11 // pred_check
          %p221 = pneg %p147
        $region30: #{fashion_convnet_forward.3} parent=11 // pred_check_branch
          %223 = sbr.rel (%p221) target = $region32
        $region31: #{fashion_convnet_forward.3} parent=11 // pred_region
          _
        $region32: #{fashion_convnet_forward.3} parent=11 // pred_fallthru
          _
        // Predicated region
        $region33: #{fashion_convnet_forward.3} parent=11 // pred_check
          %p224 = pneg %p168
        $region34: #{fashion_convnet_forward.3} parent=11 // pred_check_branch
          %226 = sbr.rel (%p224) target = $region36
        $region35: #{fashion_convnet_forward.3} parent=11 // pred_region
          _
        $region36: #{fashion_convnet_forward.3} parent=11 // pred_fallthru
          _
      $region12: #{fashion_convnet_forward.3} parent=5 // pred_fallthru
        _
      %p227 = scmp.lt.s32.totalorder %s16, 2
      // Predicated region
      $region37: #{fashion_convnet_forward.3} parent=5 // pred_check
        %p228 = pneg %p227
      $region38: #{fashion_convnet_forward.3} parent=5 // pred_check_branch
        %230 = sbr.rel (%p228) target = $region40
      $region39: #{fashion_convnet_forward.3} parent=5 // pred_region
        // Predicated region
        $region41: #{fashion_convnet_forward.3} parent=39 // pred_check
          %p231 = pneg %p36
        $region42: #{fashion_convnet_forward.3} parent=39 // pred_check_branch
          %233 = sbr.rel (%p231) target = $region44
        $region43: #{fashion_convnet_forward.3} parent=39 // pred_region
          %p234 = scmp.lt.s32.totalorder %s16, 1
          %s235 = scalar_select %p234, %s16, 1
          %s236 = smul.addr %s235, 52
          %s237 = smul.addr %s236, 4
          %s238 = scalar_lea.vmem %s0, %s237
        $region44: #{fashion_convnet_forward.3} parent=39 // pred_fallthru
          _
      $region40: #{fashion_convnet_forward.3} parent=5 // pred_fallthru
        _
      %p239 = scmp.le.s32.totalorder 1, %s16
      %p240 = scmp.lt.s32.totalorder %s16, 3
      %p241 = pnand %p239, %p240
      %p242 = pneg %p241
      // Predicated region
      $region45: #{fashion_convnet_forward.3} parent=5 // pred_check
        _
      $region46: #{fashion_convnet_forward.3} parent=5 // pred_check_branch
        %244 = sbr.rel (%p241) target = $region48
      $region47: #{fashion_convnet_forward.3} parent=5 // pred_region
        %s245 = ssub.s32 %s16, 1
        %p246 = scmp.lt.s32.totalorder %s21, 1
        %s247 = scalar_select %p246, %s21, 1
        %s248 = smul.addr %s247, 52
        %s249 = smul.addr %s248, 4
        %s250 = scalar_lea.vmem %s0, %s249
        %p251 = pneg %p42
        %p252 = pneg %p39
        %p253 = pneg %p63
        %p254 = pneg %p60
        %p255 = pneg %p84
        %p256 = pneg %p81
        %p257 = pneg %p105
        %p258 = pneg %p102
        %p259 = pneg %p126
        %p260 = pneg %p123
        %p261 = pneg %p147
        %p262 = pneg %p144
        %p263 = pneg %p168
        %p264 = pneg %p165
        %p265 = pneg %p194
        %p266 = pneg %p191
        %s267 = sand.u32 %s181, 1
        %s268 = scalar_lea.sflag [#allocation3], %s267
        %s269 = sand.u32 %s181, 1
        %s270 = smul.addr %s269, 8
        %s271 = scalar_lea.vmem [#allocation2], %s270
        %p272 = scmp.lt.s32.totalorder %s21, 1
        %s273 = scalar_select %p272, %s21, 1
        %s274 = smul.addr %s273, 52
        %s275 = smul.addr %s274, 4
        %s276 = scalar_lea.vmem %s0, %s275
        %v278 = vld [vmem:[%s276] sm:$0xff]
        %v279 = vld [vmem:[%s276 + $0x8] sm:$0xff]
        %v280 = vld [vmem:[%s276 + $0x10] sm:$0xff]
        %v281 = vld [vmem:[%s276 + $0x18] sm:$0xff]
        %v282 = vld [vmem:[%s276 + $0x20] sm:$0xff]
        %v283 = vld [vmem:[%s276 + $0x28] sm:$0xff]
        %v284 = vld [vmem:[%s276 + $0x30] sm:$0xf]
        %v285 = vld [vmem:[%s276 + $0x34] sm:$0xff]
        %v286 = vld [vmem:[%s276 + $0x3c] sm:$0xff]
        %v287 = vld [vmem:[%s276 + $0x44] sm:$0xff]
        %v288 = vld [vmem:[%s276 + $0x4c] sm:$0xff]
        %v289 = vld [vmem:[%s276 + $0x54] sm:$0xff]
        %v290 = vld [vmem:[%s276 + $0x5c] sm:$0xff]
        %v291 = vld [vmem:[%s276 + $0x64] sm:$0xf]
        %v292 = vld [vmem:[%s276 + $0x68] sm:$0xff]
        %v293 = vld [vmem:[%s276 + $0x70] sm:$0xff]
        %v294 = vld [vmem:[%s276 + $0x78] sm:$0xff]
        %v295 = vld [vmem:[%s276 + $0x80] sm:$0xff]
        %v296 = vld [vmem:[%s276 + $0x88] sm:$0xff]
        %v297 = vld [vmem:[%s276 + $0x90] sm:$0xff]
        %v298 = vld [vmem:[%s276 + $0x98] sm:$0xf]
        %v299 = vld [vmem:[%s276 + $0x9c] sm:$0xff]
        %v300 = vld [vmem:[%s276 + $0xa4] sm:$0xff]
        %v301 = vld [vmem:[%s276 + $0xac] sm:$0xff]
        %v302 = vld [vmem:[%s276 + $0xb4] sm:$0xff]
        %v303 = vld [vmem:[%s276 + $0xbc] sm:$0xff]
        %v304 = vld [vmem:[%s276 + $0xc4] sm:$0xff]
        %v305 = vld [vmem:[%s276 + $0xcc] sm:$0xf]
        %v306 = vld [vmem:[%s1] sm:$0xf]
        %v307 = vld [vmem:[%s1 + $0x4] sm:$0xf]
        %v308 = vld [vmem:[%s1 + $0x8] sm:$0xf]
        %v309 = vld [vmem:[%s1 + $0xc] sm:$0xf]
        %v310 = vld [vmem:[%s1 + $0x10] sm:$0xf]
        %v311 = vld [vmem:[%s1 + $0x14] sm:$0xf]
        %v312 = vld [vmem:[%s1 + $0x18] sm:$0xf]
        %v313 = vld [vmem:[%s1 + $0x1c] sm:$0xf]
        %v314 = vld [vmem:[%s1 + $0x20] sm:$0xf]
        %v315 = vld [vmem:[%s1 + $0x24] sm:$0xf]
        %v316 = vld [vmem:[%s1 + $0x28] sm:$0xf]
        %v317 = vld [vmem:[%s1 + $0x2c] sm:$0xf]
        %v318 = vld [vmem:[%s1 + $0x30] sm:$0xf]
        %v319 = vld [vmem:[%s1 + $0x34] sm:$0xf]
        %v320 = vld [vmem:[%s1 + $0x38] sm:$0xf]
        %v321 = vld [vmem:[%s1 + $0x3c] sm:$0xf]
        %v322 = vld [vmem:[%s1 + $0x40] sm:$0xf]
        %v323 = vld [vmem:[%s1 + $0x44] sm:$0xf]
        %v324 = vld [vmem:[%s1 + $0x48] sm:$0xf]
        %v325 = vld [vmem:[%s1 + $0x4c] sm:$0xf]
        %v326 = vld [vmem:[%s1 + $0x50] sm:$0xf]
        %v327 = vld [vmem:[%s1 + $0x54] sm:$0xf]
        %v328 = vld [vmem:[%s1 + $0x58] sm:$0xf]
        %v329 = vld [vmem:[%s1 + $0x5c] sm:$0xf]
        %v330 = vld [vmem:[%s1 + $0x60] sm:$0xf]
        %v331 = vld [vmem:[%s1 + $0x64] sm:$0xf]
        %v332 = vld [vmem:[%s1 + $0x68] sm:$0xf]
        %v333 = vld [vmem:[%s1 + $0x6c] sm:$0xf]
        %v334 = vld [vmem:[%s1 + $0x70] sm:$0xf]
        %v335 = vld [vmem:[%s1 + $0x74] sm:$0xf]
        %v336 = vld [vmem:[%s1 + $0x78] sm:$0xf]
        %v337 = vld [vmem:[%s1 + $0x7c] sm:$0xf]
        %v338 = vld [vmem:[%s1 + $0x80] sm:$0xf]
        %v339 = vld [vmem:[%s1 + $0x84] sm:$0xf]
        %v340 = vld [vmem:[%s1 + $0x88] sm:$0xf]
        %v341 = vld [vmem:[%s1 + $0x8c] sm:$0xf]
        %v342 = vld [vmem:[%s1 + $0x90] sm:$0xf]
        %v343 = vld [vmem:[%s1 + $0x94] sm:$0xf]
        %v344 = vld [vmem:[%s1 + $0x98] sm:$0xf]
        %v345 = vld [vmem:[%s1 + $0x9c] sm:$0xf]
        %v346 = vld [vmem:[%s1 + $0xa0] sm:$0xf]
        %v347 = vld [vmem:[%s1 + $0xa4] sm:$0xf]
        %v348 = vld [vmem:[%s1 + $0xa8] sm:$0xf]
        %v349 = vld [vmem:[%s1 + $0xac] sm:$0xf]
        %v350 = vld [vmem:[%s1 + $0xb0] sm:$0xf]
        %v351 = vld [vmem:[%s1 + $0xb4] sm:$0xf]
        %v352 = vld [vmem:[%s1 + $0xb8] sm:$0xf]
        %v353 = vld [vmem:[%s1 + $0xbc] sm:$0xf]
        %v354 = vld [vmem:[%s1 + $0xc0] sm:$0xf]
        %v355 = vld [vmem:[%s1 + $0xc4] sm:$0xf]
        %v356 = vld [vmem:[%s1 + $0xc8] sm:$0xf]
        %v357 = vld [vmem:[%s1 + $0xcc] sm:$0xf]
        %v358 = vld [vmem:[%s1 + $0xd0] sm:$0xf]
        %v359 = vld [vmem:[%s1 + $0xd4] sm:$0xf]
        %v360 = vld [vmem:[%s1 + $0xd8] sm:$0xf]
        %v361 = vld [vmem:[%s1 + $0xdc] sm:$0xf]
        %v362 = vld [vmem:[%s1 + $0xe0] sm:$0xf]
        %v363 = vld [vmem:[%s1 + $0xe4] sm:$0xf]
        %v364 = vld [vmem:[%s1 + $0xe8] sm:$0xf]
        %v365 = vld [vmem:[%s1 + $0xec] sm:$0xf]
        %v366 = vld [vmem:[%s1 + $0xf0] sm:$0xf]
        %v367 = vld [vmem:[%s1 + $0xf4] sm:$0xf]
        %v368 = vld [vmem:[%s1 + $0xf8] sm:$0xf]
        %v369 = vld [vmem:[%s1 + $0xfc] sm:$0xf]
        %v370 = vld [vmem:[%s1 + $0x100] sm:$0xf]
        %v371 = vld [vmem:[%s1 + $0x104] sm:$0xf]
        %v372 = vld [vmem:[%s1 + $0x108] sm:$0xf]
        %v373 = vld [vmem:[%s1 + $0x10c] sm:$0xf]
        %v374 = vld [vmem:[%s1 + $0x110] sm:$0xf]
        %v375 = vld [vmem:[%s1 + $0x114] sm:$0xf]
        %v376 = vld [vmem:[%s1 + $0x118] sm:$0xf]
        %v377 = vld [vmem:[%s1 + $0x11c] sm:$0xf]
        %v378 = vld [vmem:[%s1 + $0x120] sm:$0xf]
        %v379 = vld [vmem:[%s1 + $0x124] sm:$0xf]
        %v380 = vld [vmem:[%s1 + $0x128] sm:$0xf]
        %v381 = vld [vmem:[%s1 + $0x12c] sm:$0xf]
        %v382 = vld [vmem:[%s1 + $0x130] sm:$0xf]
        %v383 = vld [vmem:[%s1 + $0x134] sm:$0xf]
        %v384 = vld [vmem:[%s1 + $0x138] sm:$0xf]
        %v385 = vld [vmem:[%s1 + $0x13c] sm:$0xf]
        %v386 = vld [vmem:[%s1 + $0x140] sm:$0xf]
        %v387 = vld [vmem:[%s1 + $0x144] sm:$0xf]
        %v388 = vld [vmem:[%s1 + $0x148] sm:$0xf]
        %v389 = vld [vmem:[%s1 + $0x14c] sm:$0xf]
        %v390 = vld [vmem:[%s1 + $0x150] sm:$0xf]
        %v391 = vld [vmem:[%s1 + $0x154] sm:$0xf]
        %v392 = vld [vmem:[%s1 + $0x158] sm:$0xf]
        %v393 = vld [vmem:[%s1 + $0x15c] sm:$0xf]
        %v394 = vld [vmem:[%s1 + $0x160] sm:$0xf]
        %v395 = vld [vmem:[%s1 + $0x164] sm:$0xf]
        %v396 = vld [vmem:[%s1 + $0x168] sm:$0xf]
        %v397 = vld [vmem:[%s1 + $0x16c] sm:$0xf]
        %v398 = vld [vmem:[%s1 + $0x170] sm:$0xf]
        %v399 = vld [vmem:[%s1 + $0x174] sm:$0xf]
        %v400 = vld [vmem:[%s1 + $0x178] sm:$0xf]
        %v401 = vld [vmem:[%s1 + $0x17c] sm:$0xf]
        %v402 = vld [vmem:[%s1 + $0x180] sm:$0xf]
        %v403 = vld [vmem:[%s1 + $0x184] sm:$0xf]
        %v404 = vld [vmem:[%s1 + $0x188] sm:$0xf]
        %v405 = vld [vmem:[%s1 + $0x18c] sm:$0xf]
        %v406 = vld [vmem:[%s1 + $0x190] sm:$0xf]
        %v407 = vld [vmem:[%s1 + $0x194] sm:$0xf]
        %v408 = vld [vmem:[%s1 + $0x198] sm:$0xf]
        %v409 = vld [vmem:[%s1 + $0x19c] sm:$0xf]
        %v410 = vld [vmem:[%s1 + $0x1a0] sm:$0xf]
        %v411 = vld [vmem:[%s1 + $0x1a4] sm:$0xf]
        %v412 = vld [vmem:[%s1 + $0x1a8] sm:$0xf]
        %v413 = vld [vmem:[%s1 + $0x1ac] sm:$0xf]
        %v414 = vld [vmem:[%s1 + $0x1b0] sm:$0xf]
        %v415 = vld [vmem:[%s1 + $0x1b4] sm:$0xf]
        %v416 = vld [vmem:[%s1 + $0x1b8] sm:$0xf]
        %v417 = vld [vmem:[%s1 + $0x1bc] sm:$0xf]
        %v418 = vld [vmem:[%s1 + $0x1c0] sm:$0xf]
        %v419 = vld [vmem:[%s1 + $0x1c4] sm:$0xf]
        %v420 = vld [vmem:[%s1 + $0x1c8] sm:$0xf]
        %v421 = vld [vmem:[%s1 + $0x1cc] sm:$0xf]
        %v422 = vld [vmem:[%s1 + $0x1d0] sm:$0xf]
        %v423 = vld [vmem:[%s1 + $0x1d4] sm:$0xf]
        %v424 = vld [vmem:[%s1 + $0x1d8] sm:$0xf]
        %v425 = vld [vmem:[%s1 + $0x1dc] sm:$0xf]
        %v426 = vld [vmem:[%s1 + $0x1e0] sm:$0xf]
        %v427 = vld [vmem:[%s1 + $0x1e4] sm:$0xf]
        %v428 = vld [vmem:[%s1 + $0x1e8] sm:$0xf]
        %v429 = vld [vmem:[%s1 + $0x1ec] sm:$0xf]
        %v430 = vld [vmem:[%s1 + $0x1f0] sm:$0xf]
        %v431 = vld [vmem:[%s1 + $0x1f4] sm:$0xf]
        %v432 = vld [vmem:[%s1 + $0x1f8] sm:$0xf]
        %v433 = vld [vmem:[%s1 + $0x1fc] sm:$0xf]
        %v434 = vld [vmem:[%s1 + $0x200] sm:$0xf]
        %v435 = vld [vmem:[%s1 + $0x204] sm:$0xf]
        %v436 = vld [vmem:[%s1 + $0x208] sm:$0xf]
        %v437 = vld [vmem:[%s1 + $0x20c] sm:$0xf]
        %v438 = vld [vmem:[%s1 + $0x210] sm:$0xf]
        %v439 = vld [vmem:[%s1 + $0x214] sm:$0xf]
        %v440 = vld [vmem:[%s1 + $0x218] sm:$0xf]
        %v441 = vld [vmem:[%s1 + $0x21c] sm:$0xf]
        %v442 = vld [vmem:[%s1 + $0x220] sm:$0xf]
        %v443 = vld [vmem:[%s1 + $0x224] sm:$0xf]
        %v444 = vld [vmem:[%s1 + $0x228] sm:$0xf]
        %v445 = vld [vmem:[%s1 + $0x22c] sm:$0xf]
        %v446 = vld [vmem:[%s1 + $0x230] sm:$0xf]
        %v447 = vld [vmem:[%s1 + $0x234] sm:$0xf]
        %v448 = vld [vmem:[%s1 + $0x238] sm:$0xf]
        %v449 = vld [vmem:[%s1 + $0x23c] sm:$0xf]
        %v450 = vld [vmem:[%s1 + $0x240] sm:$0xf]
        %v451 = vld [vmem:[%s1 + $0x244] sm:$0xf]
        %v452 = vld [vmem:[%s1 + $0x248] sm:$0xf]
        %v453 = vld [vmem:[%s1 + $0x24c] sm:$0xf]
        %v454 = vld [vmem:[%s1 + $0x250] sm:$0xf]
        %v455 = vld [vmem:[%s1 + $0x254] sm:$0xf]
        %v456 = vld [vmem:[%s1 + $0x258] sm:$0xf]
        %v457 = vld [vmem:[%s1 + $0x25c] sm:$0xf]
        %v458 = vld [vmem:[%s1 + $0x260] sm:$0xf]
        %v459 = vld [vmem:[%s1 + $0x264] sm:$0xf]
        %v460 = vld [vmem:[%s1 + $0x268] sm:$0xf]
        %v461 = vld [vmem:[%s1 + $0x26c] sm:$0xf]
        %v462 = vld [vmem:[%s1 + $0x270] sm:$0xf]
        %v463 = vld [vmem:[%s1 + $0x274] sm:$0xf]
        %v464 = vld [vmem:[%s1 + $0x278] sm:$0xf]
        %v465 = vld [vmem:[%s1 + $0x27c] sm:$0xf]
        %v466 = vld [vmem:[%s1 + $0x280] sm:$0xf]
        %v467 = vld [vmem:[%s1 + $0x284] sm:$0xf]
        %v468 = vld [vmem:[%s1 + $0x288] sm:$0xf]
        %v469 = vld [vmem:[%s1 + $0x28c] sm:$0xf]
        %v470 = vld [vmem:[%s1 + $0x290] sm:$0xf]
        %v471 = vld [vmem:[%s1 + $0x294] sm:$0xf]
        %v472 = vld [vmem:[%s1 + $0x298] sm:$0xf]
        %v473 = vld [vmem:[%s1 + $0x29c] sm:$0xf]
        %v474 = vld [vmem:[%s1 + $0x2a0] sm:$0xf]
        %v475 = vld [vmem:[%s1 + $0x2a4] sm:$0xf]
        %v476 = vld [vmem:[%s1 + $0x2a8] sm:$0xf]
        %v477 = vld [vmem:[%s1 + $0x2ac] sm:$0xf]
        %v478 = vld [vmem:[%s1 + $0x2b0] sm:$0xf]
        %v479 = vld [vmem:[%s1 + $0x2b4] sm:$0xf]
        %v480 = vld [vmem:[%s1 + $0x2b8] sm:$0xf]
        %v481 = vld [vmem:[%s1 + $0x2bc] sm:$0xf]
        %v482 = vld [vmem:[%s1 + $0x2c0] sm:$0xf]
        %v483 = vld [vmem:[%s1 + $0x2c4] sm:$0xf]
        %v484 = vld [vmem:[%s1 + $0x2c8] sm:$0xf]
        %v485 = vld [vmem:[%s1 + $0x2cc] sm:$0xf]
        %v486 = vld [vmem:[%s1 + $0x2d0] sm:$0xf]
        %v487 = vld [vmem:[%s1 + $0x2d4] sm:$0xf]
        %v488 = vld [vmem:[%s1 + $0x2d8] sm:$0xf]
        %v489 = vld [vmem:[%s1 + $0x2dc] sm:$0xf]
        %v490 = vld [vmem:[%s1 + $0x2e0] sm:$0xf]
        %v491 = vld [vmem:[%s1 + $0x2e4] sm:$0xf]
        %v492 = vld [vmem:[%s1 + $0x2e8] sm:$0xf]
        %v493 = vld [vmem:[%s1 + $0x2ec] sm:$0xf]
        %v494 = vld [vmem:[%s1 + $0x2f0] sm:$0xf]
        %v495 = vld [vmem:[%s1 + $0x2f4] sm:$0xf]
        %v496 = vld [vmem:[%s1 + $0x2f8] sm:$0xf]
        %v497 = vld [vmem:[%s1 + $0x2fc] sm:$0xf]
        %v498 = vld [vmem:[%s1 + $0x300] sm:$0xf]
        %v499 = vld [vmem:[%s1 + $0x304] sm:$0xf]
        %v500 = vld [vmem:[%s1 + $0x308] sm:$0xf]
        %v501 = vld [vmem:[%s1 + $0x30c] sm:$0xf]
        %v502 = vld [vmem:[%s1 + $0x310] sm:$0xf]
        %v503 = vld [vmem:[%s1 + $0x314] sm:$0xf]
        %v504 = vld [vmem:[%s1 + $0x318] sm:$0xf]
        %v505 = vld [vmem:[%s1 + $0x31c] sm:$0xf]
        %v506 = vld [vmem:[%s1 + $0x320] sm:$0xf]
        %v507 = vld [vmem:[%s1 + $0x324] sm:$0xf]
        %v508 = vld [vmem:[%s1 + $0x328] sm:$0xf]
        %v509 = vld [vmem:[%s1 + $0x32c] sm:$0xf]
        %v510 = vld [vmem:[%s1 + $0x330] sm:$0xf]
        %v511 = vld [vmem:[%s1 + $0x334] sm:$0xf]
        %v512 = vld [vmem:[%s1 + $0x338] sm:$0xf]
        %v513 = vld [vmem:[%s1 + $0x33c] sm:$0xf]
        %v542 = vunpack.c.l.b16 %v278
        %v543 = vunpack.c.h.b16 %v278
        %v544 = vunpack.c.l.b16 %v279
        %v545 = vunpack.c.h.b16 %v279
        %v546 = vunpack.c.l.b16 %v280
        %v547 = vunpack.c.h.b16 %v280
        %v548 = vunpack.c.l.b16 %v281
        %v549 = vunpack.c.h.b16 %v281
        %v550 = vunpack.c.l.b16 %v282
        %v551 = vunpack.c.h.b16 %v282
        %v552 = vunpack.c.l.b16 %v283
        %v553 = vunpack.c.h.b16 %v283
        %v554 = vunpack.c.l.b16 %v284
        %v555 = vunpack.c.l.b16 %v285
        %v556 = vunpack.c.h.b16 %v285
        %v557 = vunpack.c.l.b16 %v286
        %v558 = vunpack.c.h.b16 %v286
        %v559 = vunpack.c.l.b16 %v287
        %v560 = vunpack.c.h.b16 %v287
        %v561 = vunpack.c.l.b16 %v288
        %v562 = vunpack.c.h.b16 %v288
        %v563 = vunpack.c.l.b16 %v289
        %v564 = vunpack.c.h.b16 %v289
        %v565 = vunpack.c.l.b16 %v290
        %v566 = vunpack.c.h.b16 %v290
        %v567 = vunpack.c.l.b16 %v291
        %v568 = vunpack.c.l.b16 %v292
        %v569 = vunpack.c.h.b16 %v292
        %v570 = vunpack.c.l.b16 %v293
        %v571 = vunpack.c.h.b16 %v293
        %v572 = vunpack.c.l.b16 %v294
        %v573 = vunpack.c.h.b16 %v294
        %v574 = vunpack.c.l.b16 %v295
        %v575 = vunpack.c.h.b16 %v295
        %v576 = vunpack.c.l.b16 %v296
        %v577 = vunpack.c.h.b16 %v296
        %v578 = vunpack.c.l.b16 %v297
        %v579 = vunpack.c.h.b16 %v297
        %v580 = vunpack.c.l.b16 %v298
        %v581 = vunpack.c.l.b16 %v299
        %v582 = vunpack.c.h.b16 %v299
        %v583 = vunpack.c.l.b16 %v300
        %v584 = vunpack.c.h.b16 %v300
        %v585 = vunpack.c.l.b16 %v301
        %v586 = vunpack.c.h.b16 %v301
        %v587 = vunpack.c.l.b16 %v302
        %v588 = vunpack.c.h.b16 %v302
        %v589 = vunpack.c.l.b16 %v303
        %v590 = vunpack.c.h.b16 %v303
        %v591 = vunpack.c.l.b16 %v304
        %v592 = vunpack.c.h.b16 %v304
        %v593 = vunpack.c.l.b16 %v305
        %v594 = vpack.c.b16 %v555, %v542
        %v595 = vpack.c.b16 %v556, %v543
        %v596 = vpack.c.b16 %v557, %v544
        %v597 = vpack.c.b16 %v558, %v545
        %v598 = vpack.c.b16 %v559, %v546
        %v599 = vpack.c.b16 %v560, %v547
        %v600 = vpack.c.b16 %v561, %v548
        %v601 = vpack.c.b16 %v562, %v549
        %v602 = vpack.c.b16 %v563, %v550
        %v603 = vpack.c.b16 %v564, %v551
        %v604 = vpack.c.b16 %v565, %v552
        %v605 = vpack.c.b16 %v566, %v553
        %v606 = vpack.c.b16 %v567, %v554
        %v607 = vpack.c.b16 %v581, %v568
        %v608 = vpack.c.b16 %v582, %v569
        %v609 = vpack.c.b16 %v583, %v570
        %v610 = vpack.c.b16 %v584, %v571
        %v611 = vpack.c.b16 %v585, %v572
        %v612 = vpack.c.b16 %v586, %v573
        %v613 = vpack.c.b16 %v587, %v574
        %v614 = vpack.c.b16 %v588, %v575
        %v615 = vpack.c.b16 %v589, %v576
        %v616 = vpack.c.b16 %v590, %v577
        %v617 = vpack.c.b16 %v591, %v578
        %v618 = vpack.c.b16 %v592, %v579
        %v619 = vpack.c.b16 %v593, %v580
        %v854 = vunpack.c.l.b16 %v306
        %v855 = vunpack.c.l.b16 %v307
        %v856 = vunpack.c.l.b16 %v308
        %v857 = vunpack.c.l.b16 %v309
        %v858 = vunpack.c.l.b16 %v310
        %v859 = vunpack.c.l.b16 %v311
        %v860 = vunpack.c.l.b16 %v312
        %v861 = vunpack.c.l.b16 %v313
        %v862 = vunpack.c.l.b16 %v314
        %v863 = vunpack.c.l.b16 %v315
        %v864 = vunpack.c.l.b16 %v316
        %v865 = vunpack.c.l.b16 %v317
        %v866 = vunpack.c.l.b16 %v318
        %v867 = vunpack.c.l.b16 %v319
        %v868 = vunpack.c.l.b16 %v320
        %v869 = vunpack.c.l.b16 %v321
        %v870 = vunpack.c.l.b16 %v322
        %v871 = vunpack.c.l.b16 %v323
        %v872 = vunpack.c.l.b16 %v324
        %v873 = vunpack.c.l.b16 %v325
        %v874 = vunpack.c.l.b16 %v326
        %v875 = vunpack.c.l.b16 %v327
        %v876 = vunpack.c.l.b16 %v328
        %v877 = vunpack.c.l.b16 %v329
        %v878 = vunpack.c.l.b16 %v330
        %v879 = vunpack.c.l.b16 %v331
        %v880 = vunpack.c.l.b16 %v332
        %v881 = vunpack.c.l.b16 %v333
        %v882 = vunpack.c.l.b16 %v334
        %v883 = vunpack.c.l.b16 %v335
        %v884 = vunpack.c.l.b16 %v336
        %v885 = vunpack.c.l.b16 %v337
        %v886 = vunpack.c.l.b16 %v338
        %v887 = vunpack.c.l.b16 %v339
        %v888 = vunpack.c.l.b16 %v340
        %v889 = vunpack.c.l.b16 %v341
        %v890 = vunpack.c.l.b16 %v342
        %v891 = vunpack.c.l.b16 %v343
        %v892 = vunpack.c.l.b16 %v344
        %v893 = vunpack.c.l.b16 %v345
        %v894 = vunpack.c.l.b16 %v346
        %v895 = vunpack.c.l.b16 %v347
        %v896 = vunpack.c.l.b16 %v348
        %v897 = vunpack.c.l.b16 %v349
        %v898 = vunpack.c.l.b16 %v350
        %v899 = vunpack.c.l.b16 %v351
        %v900 = vunpack.c.l.b16 %v352
        %v901 = vunpack.c.l.b16 %v353
        %v902 = vunpack.c.l.b16 %v354
        %v903 = vunpack.c.l.b16 %v355
        %v904 = vunpack.c.l.b16 %v356
        %v905 = vunpack.c.l.b16 %v357
        %v906 = vunpack.c.l.b16 %v358
        %v907 = vunpack.c.l.b16 %v359
        %v908 = vunpack.c.l.b16 %v360
        %v909 = vunpack.c.l.b16 %v361
        %v910 = vunpack.c.l.b16 %v362
        %v911 = vunpack.c.l.b16 %v363
        %v912 = vunpack.c.l.b16 %v364
        %v913 = vunpack.c.l.b16 %v365
        %v914 = vunpack.c.l.b16 %v366
        %v915 = vunpack.c.l.b16 %v367
        %v916 = vunpack.c.l.b16 %v368
        %v917 = vunpack.c.l.b16 %v369
        %v918 = vunpack.c.l.b16 %v370
        %v919 = vunpack.c.l.b16 %v371
        %v920 = vunpack.c.l.b16 %v372
        %v921 = vunpack.c.l.b16 %v373
        %v922 = vunpack.c.l.b16 %v374
        %v923 = vunpack.c.l.b16 %v375
        %v924 = vunpack.c.l.b16 %v376
        %v925 = vunpack.c.l.b16 %v377
        %v926 = vunpack.c.l.b16 %v378
        %v927 = vunpack.c.l.b16 %v379
        %v928 = vunpack.c.l.b16 %v380
        %v929 = vunpack.c.l.b16 %v381
        %v930 = vunpack.c.l.b16 %v382
        %v931 = vunpack.c.l.b16 %v383
        %v932 = vunpack.c.l.b16 %v384
        %v933 = vunpack.c.l.b16 %v385
        %v934 = vunpack.c.l.b16 %v386
        %v935 = vunpack.c.l.b16 %v387
        %v936 = vunpack.c.l.b16 %v388
        %v937 = vunpack.c.l.b16 %v389
        %v938 = vunpack.c.l.b16 %v390
        %v939 = vunpack.c.l.b16 %v391
        %v940 = vunpack.c.l.b16 %v392
        %v941 = vunpack.c.l.b16 %v393
        %v942 = vunpack.c.l.b16 %v394
        %v943 = vunpack.c.l.b16 %v395
        %v944 = vunpack.c.l.b16 %v396
        %v945 = vunpack.c.l.b16 %v397
        %v946 = vunpack.c.l.b16 %v398
        %v947 = vunpack.c.l.b16 %v399
        %v948 = vunpack.c.l.b16 %v400
        %v949 = vunpack.c.l.b16 %v401
        %v950 = vunpack.c.l.b16 %v402
        %v951 = vunpack.c.l.b16 %v403
        %v952 = vunpack.c.l.b16 %v404
        %v953 = vunpack.c.l.b16 %v405
        %v954 = vunpack.c.l.b16 %v406
        %v955 = vunpack.c.l.b16 %v407
        %v956 = vunpack.c.l.b16 %v408
        %v957 = vunpack.c.l.b16 %v409
        %v958 = vunpack.c.l.b16 %v410
        %v959 = vunpack.c.l.b16 %v411
        %v960 = vunpack.c.l.b16 %v412
        %v961 = vunpack.c.l.b16 %v413
        %v962 = vunpack.c.l.b16 %v414
        %v963 = vunpack.c.l.b16 %v415
        %v964 = vunpack.c.l.b16 %v416
        %v965 = vunpack.c.l.b16 %v417
        %v966 = vunpack.c.l.b16 %v418
        %v967 = vunpack.c.l.b16 %v419
        %v968 = vunpack.c.l.b16 %v420
        %v969 = vunpack.c.l.b16 %v421
        %v970 = vunpack.c.l.b16 %v422
        %v971 = vunpack.c.l.b16 %v423
        %v972 = vunpack.c.l.b16 %v424
        %v973 = vunpack.c.l.b16 %v425
        %v974 = vunpack.c.l.b16 %v426
        %v975 = vunpack.c.l.b16 %v427
        %v976 = vunpack.c.l.b16 %v428
        %v977 = vunpack.c.l.b16 %v429
        %v978 = vunpack.c.l.b16 %v430
        %v979 = vunpack.c.l.b16 %v431
        %v980 = vunpack.c.l.b16 %v432
        %v981 = vunpack.c.l.b16 %v433
        %v982 = vunpack.c.l.b16 %v434
        %v983 = vunpack.c.l.b16 %v435
        %v984 = vunpack.c.l.b16 %v436
        %v985 = vunpack.c.l.b16 %v437
        %v986 = vunpack.c.l.b16 %v438
        %v987 = vunpack.c.l.b16 %v439
        %v988 = vunpack.c.l.b16 %v440
        %v989 = vunpack.c.l.b16 %v441
        %v990 = vunpack.c.l.b16 %v442
        %v991 = vunpack.c.l.b16 %v443
        %v992 = vunpack.c.l.b16 %v444
        %v993 = vunpack.c.l.b16 %v445
        %v994 = vunpack.c.l.b16 %v446
        %v995 = vunpack.c.l.b16 %v447
        %v996 = vunpack.c.l.b16 %v448
        %v997 = vunpack.c.l.b16 %v449
        %v998 = vunpack.c.l.b16 %v450
        %v999 = vunpack.c.l.b16 %v451
        %v1000 = vunpack.c.l.b16 %v452
        %v1001 = vunpack.c.l.b16 %v453
        %v1002 = vunpack.c.l.b16 %v454
        %v1003 = vunpack.c.l.b16 %v455
        %v1004 = vunpack.c.l.b16 %v456
        %v1005 = vunpack.c.l.b16 %v457
        %v1006 = vunpack.c.l.b16 %v458
        %v1007 = vunpack.c.l.b16 %v459
        %v1008 = vunpack.c.l.b16 %v460
        %v1009 = vunpack.c.l.b16 %v461
        %v1010 = vunpack.c.l.b16 %v462
        %v1011 = vunpack.c.l.b16 %v463
        %v1012 = vunpack.c.l.b16 %v464
        %v1013 = vunpack.c.l.b16 %v465
        %v1014 = vunpack.c.l.b16 %v466
        %v1015 = vunpack.c.l.b16 %v467
        %v1016 = vunpack.c.l.b16 %v468
        %v1017 = vunpack.c.l.b16 %v469
        %v1018 = vunpack.c.l.b16 %v470
        %v1019 = vunpack.c.l.b16 %v471
        %v1020 = vunpack.c.l.b16 %v472
        %v1021 = vunpack.c.l.b16 %v473
        %v1022 = vunpack.c.l.b16 %v474
        %v1023 = vunpack.c.l.b16 %v475
        %v1024 = vunpack.c.l.b16 %v476
        %v1025 = vunpack.c.l.b16 %v477
        %v1026 = vunpack.c.l.b16 %v478
        %v1027 = vunpack.c.l.b16 %v479
        %v1028 = vunpack.c.l.b16 %v480
        %v1029 = vunpack.c.l.b16 %v481
        %v1030 = vunpack.c.l.b16 %v482
        %v1031 = vunpack.c.l.b16 %v483
        %v1032 = vunpack.c.l.b16 %v484
        %v1033 = vunpack.c.l.b16 %v485
        %v1034 = vunpack.c.l.b16 %v486
        %v1035 = vunpack.c.l.b16 %v487
        %v1036 = vunpack.c.l.b16 %v488
        %v1037 = vunpack.c.l.b16 %v489
        %v1038 = vunpack.c.l.b16 %v490
        %v1039 = vunpack.c.l.b16 %v491
        %v1040 = vunpack.c.l.b16 %v492
        %v1041 = vunpack.c.l.b16 %v493
        %v1042 = vunpack.c.l.b16 %v494
        %v1043 = vunpack.c.l.b16 %v495
        %v1044 = vunpack.c.l.b16 %v496
        %v1045 = vunpack.c.l.b16 %v497
        %v1046 = vunpack.c.l.b16 %v498
        %v1047 = vunpack.c.l.b16 %v499
        %v1048 = vunpack.c.l.b16 %v500
        %v1049 = vunpack.c.l.b16 %v501
        %v1050 = vunpack.c.l.b16 %v502
        %v1051 = vunpack.c.l.b16 %v503
        %v1052 = vunpack.c.l.b16 %v504
        %v1053 = vunpack.c.l.b16 %v505
        %v1054 = vunpack.c.l.b16 %v506
        %v1055 = vunpack.c.l.b16 %v507
        %v1056 = vunpack.c.l.b16 %v508
        %v1057 = vunpack.c.l.b16 %v509
        %v1058 = vunpack.c.l.b16 %v510
        %v1059 = vunpack.c.l.b16 %v511
        %v1060 = vunpack.c.l.b16 %v512
        %v1061 = vunpack.c.l.b16 %v513
        %v1062 = vpack.c.b16 %v855, %v854
        %v1063 = vpack.c.b16 %v857, %v856
        %v1064 = vpack.c.b16 %v859, %v858
        %v1065 = vpack.c.b16 %v861, %v860
        %v1066 = vpack.c.b16 %v863, %v862
        %v1067 = vpack.c.b16 %v865, %v864
        %v1068 = vpack.c.b16 %v867, %v866
        %v1069 = vpack.c.b16 %v869, %v868
        %v1070 = vpack.c.b16 %v871, %v870
        %v1071 = vpack.c.b16 %v873, %v872
        %v1072 = vpack.c.b16 %v875, %v874
        %v1073 = vpack.c.b16 %v877, %v876
        %v1074 = vpack.c.b16 %v879, %v878
        %v1075 = vpack.c.b16 %v881, %v880
        %v1076 = vpack.c.b16 %v883, %v882
        %v1077 = vpack.c.b16 %v885, %v884
        %v1078 = vpack.c.b16 %v887, %v886
        %v1079 = vpack.c.b16 %v889, %v888
        %v1080 = vpack.c.b16 %v891, %v890
        %v1081 = vpack.c.b16 %v893, %v892
        %v1082 = vpack.c.b16 %v895, %v894
        %v1083 = vpack.c.b16 %v897, %v896
        %v1084 = vpack.c.b16 %v899, %v898
        %v1085 = vpack.c.b16 %v901, %v900
        %v1086 = vpack.c.b16 %v903, %v902
        %v1087 = vpack.c.b16 %v905, %v904
        %v1088 = vpack.c.b16 %v907, %v906
        %v1089 = vpack.c.b16 %v909, %v908
        %v1090 = vpack.c.b16 %v911, %v910
        %v1091 = vpack.c.b16 %v913, %v912
        %v1092 = vpack.c.b16 %v915, %v914
        %v1093 = vpack.c.b16 %v917, %v916
        %v1094 = vpack.c.b16 %v919, %v918
        %v1095 = vpack.c.b16 %v921, %v920
        %v1096 = vpack.c.b16 %v923, %v922
        %v1097 = vpack.c.b16 %v925, %v924
        %v1098 = vpack.c.b16 %v927, %v926
        %v1099 = vpack.c.b16 %v929, %v928
        %v1100 = vpack.c.b16 %v931, %v930
        %v1101 = vpack.c.b16 %v933, %v932
        %v1102 = vpack.c.b16 %v935, %v934
        %v1103 = vpack.c.b16 %v937, %v936
        %v1104 = vpack.c.b16 %v939, %v938
        %v1105 = vpack.c.b16 %v941, %v940
        %v1106 = vpack.c.b16 %v943, %v942
        %v1107 = vpack.c.b16 %v945, %v944
        %v1108 = vpack.c.b16 %v947, %v946
        %v1109 = vpack.c.b16 %v949, %v948
        %v1110 = vpack.c.b16 %v951, %v950
        %v1111 = vpack.c.b16 %v953, %v952
        %v1112 = vpack.c.b16 %v955, %v954
        %v1113 = vpack.c.b16 %v957, %v956
        %v1114 = vpack.c.b16 %v959, %v958
        %v1115 = vpack.c.b16 %v961, %v960
        %v1116 = vpack.c.b16 %v963, %v962
        %v1117 = vpack.c.b16 %v965, %v964
        %v1118 = vpack.c.b16 %v967, %v966
        %v1119 = vpack.c.b16 %v969, %v968
        %v1120 = vpack.c.b16 %v971, %v970
        %v1121 = vpack.c.b16 %v973, %v972
        %v1122 = vpack.c.b16 %v975, %v974
        %v1123 = vpack.c.b16 %v977, %v976
        %v1124 = vpack.c.b16 %v979, %v978
        %v1125 = vpack.c.b16 %v981, %v980
        %v1126 = vpack.c.b16 %v983, %v982
        %v1127 = vpack.c.b16 %v985, %v984
        %v1128 = vpack.c.b16 %v987, %v986
        %v1129 = vpack.c.b16 %v989, %v988
        %v1130 = vpack.c.b16 %v991, %v990
        %v1131 = vpack.c.b16 %v993, %v992
        %v1132 = vpack.c.b16 %v995, %v994
        %v1133 = vpack.c.b16 %v997, %v996
        %v1134 = vpack.c.b16 %v999, %v998
        %v1135 = vpack.c.b16 %v1001, %v1000
        %v1136 = vpack.c.b16 %v1003, %v1002
        %v1137 = vpack.c.b16 %v1005, %v1004
        %v1138 = vpack.c.b16 %v1007, %v1006
        %v1139 = vpack.c.b16 %v1009, %v1008
        %v1140 = vpack.c.b16 %v1011, %v1010
        %v1141 = vpack.c.b16 %v1013, %v1012
        %v1142 = vpack.c.b16 %v1015, %v1014
        %v1143 = vpack.c.b16 %v1017, %v1016
        %v1144 = vpack.c.b16 %v1019, %v1018
        %v1145 = vpack.c.b16 %v1021, %v1020
        %v1146 = vpack.c.b16 %v1023, %v1022
        %v1147 = vpack.c.b16 %v1025, %v1024
        %v1148 = vpack.c.b16 %v1027, %v1026
        %v1149 = vpack.c.b16 %v1029, %v1028
        %v1150 = vpack.c.b16 %v1031, %v1030
        %v1151 = vpack.c.b16 %v1033, %v1032
        %v1152 = vpack.c.b16 %v1035, %v1034
        %v1153 = vpack.c.b16 %v1037, %v1036
        %v1154 = vpack.c.b16 %v1039, %v1038
        %v1155 = vpack.c.b16 %v1041, %v1040
        %v1156 = vpack.c.b16 %v1043, %v1042
        %v1157 = vpack.c.b16 %v1045, %v1044
        %v1158 = vpack.c.b16 %v1047, %v1046
        %v1159 = vpack.c.b16 %v1049, %v1048
        %v1160 = vpack.c.b16 %v1051, %v1050
        %v1161 = vpack.c.b16 %v1053, %v1052
        %v1162 = vpack.c.b16 %v1055, %v1054
        %v1163 = vpack.c.b16 %v1057, %v1056
        %v1164 = vpack.c.b16 %v1059, %v1058
        %v1165 = vpack.c.b16 %v1061, %v1060
        %1270 = vmatprep.subr.bf16.mxu0 0
        %1271 = vmatpush1.bf16.msra.mxu0 %v1062
        %1272 = vmatprep.subr.bf16.mxu0 0
        %1273 = vmatpush1.bf16.msra.mxu0 %v1063
        %1274 = vmatprep.subr.bf16.mxu0 0
        %1275 = vmatpush1.bf16.msra.mxu0 %v1064
        %1276 = vmatprep.subr.bf16.mxu0 0
        %1277 = vmatpush1.bf16.msra.mxu0 %v1065
        %1278 = vmatprep.subr.bf16.mxu0 0
        %1279 = vmatpush1.bf16.msra.mxu0 %v1066
        %1280 = vmatprep.subr.bf16.mxu0 0
        %1281 = vmatpush1.bf16.msra.mxu0 %v1067
        %1282 = vmatprep.subr.bf16.mxu0 0
        %1283 = vmatpush1.bf16.msra.mxu0 %v1068
        %1284 = vmatprep.subr.bf16.mxu0 0
        %1285 = vmatpush1.bf16.msra.mxu0 %v1069
        %1286 = vmatprep.subr.bf16.mxu0 0
        %1287 = vmatpush1.bf16.msra.mxu0 %v1070
        %1288 = vmatprep.subr.bf16.mxu0 0
        %1289 = vmatpush1.bf16.msra.mxu0 %v1071
        %1290 = vmatprep.subr.bf16.mxu0 0
        %1291 = vmatpush1.bf16.msra.mxu0 %v1072
        %1292 = vmatprep.subr.bf16.mxu0 0
        %1293 = vmatpush1.bf16.msra.mxu0 %v1073
        %1294 = vmatprep.subr.bf16.mxu0 0
        %1295 = vmatpush1.bf16.msra.mxu0 %v1074
        %1296 = vmatprep.subr.bf16.mxu0 0
        %1297 = vmatpush1.bf16.msra.mxu0 %v1075
        %1298 = vmatprep.subr.bf16.mxu0 0
        %1299 = vmatpush1.bf16.msra.mxu0 %v1076
        %1300 = vmatprep.subr.bf16.mxu0 0
        %1301 = vmatpush1.bf16.msra.mxu0 %v1077
        %1302 = vmatprep.mubr.bf16.mxu0 %v595
        %1303 = vmatmul.mubr.bf16.gmra.mrb[0].mxu0 %v594
        %v1304 = vpop.f32.mrb[0].mxu0
        %v1305 = vadd.f32 0.0, %v1304
        %v1306 = vpop.f32.mrb[0].mxu0
        %v1307 = vpop.f32.mrb[0].mxu0
        %v1308 = vadd.f32 0.0, %v1307
        %v1309 = vpop.f32.mrb[0].mxu0
        %1310 = vmatprep.mubr.bf16.mxu0 %v608
        %1311 = vmatmul.mubr.bf16.gmra.mrb[0].mxu0 %v607
        %v1312 = vpop.f32.mrb[0].mxu0
        %v1313 = vadd.f32 0.0, %v1312
        %v1314 = vpop.f32.mrb[0].mxu0
        %v1315 = vpop.f32.mrb[0].mxu0
        %v1316 = vadd.f32 0.0, %v1315
        %v1317 = vpop.f32.mrb[0].mxu0
        %1318 = vdwg.mxu0
        %1319 = vmatprep.subr.bf16.mxu0 0
        %1320 = vmatpush1.bf16.msra.mxu0 %v1078
        %1321 = vmatprep.subr.bf16.mxu0 0
        %1322 = vmatpush1.bf16.msra.mxu0 %v1079
        %1323 = vmatprep.subr.bf16.mxu0 0
        %1324 = vmatpush1.bf16.msra.mxu0 %v1080
        %1325 = vmatprep.subr.bf16.mxu0 0
        %1326 = vmatpush1.bf16.msra.mxu0 %v1081
        %1327 = vmatprep.subr.bf16.mxu0 0
        %1328 = vmatpush1.bf16.msra.mxu0 %v1082
        %1329 = vmatprep.subr.bf16.mxu0 0
        %1330 = vmatpush1.bf16.msra.mxu0 %v1083
        %1331 = vmatprep.subr.bf16.mxu0 0
        %1332 = vmatpush1.bf16.msra.mxu0 %v1084
        %1333 = vmatprep.subr.bf16.mxu0 0
        %1334 = vmatpush1.bf16.msra.mxu0 %v1085
        %1335 = vmatprep.subr.bf16.mxu0 0
        %1336 = vmatpush1.bf16.msra.mxu0 %v1086
        %1337 = vmatprep.subr.bf16.mxu0 0
        %1338 = vmatpush1.bf16.msra.mxu0 %v1087
        %1339 = vmatprep.subr.bf16.mxu0 0
        %1340 = vmatpush1.bf16.msra.mxu0 %v1088
        %1341 = vmatprep.subr.bf16.mxu0 0
        %1342 = vmatpush1.bf16.msra.mxu0 %v1089
        %1343 = vmatprep.subr.bf16.mxu0 0
        %1344 = vmatpush1.bf16.msra.mxu0 %v1090
        %1345 = vmatprep.subr.bf16.mxu0 0
        %1346 = vmatpush1.bf16.msra.mxu0 %v1091
        %1347 = vmatprep.subr.bf16.mxu0 0
        %1348 = vmatpush1.bf16.msra.mxu0 %v1092
        %1349 = vmatprep.subr.bf16.mxu0 0
        %1350 = vmatpush1.bf16.msra.mxu0 %v1093
        %1351 = vmatprep.mubr.bf16.mxu0 %v597
        %1352 = vmatmul.mubr.bf16.gmra.mrb[0].mxu0 %v596
        %v1353 = vpop.f32.mrb[0].mxu0
        %v1354 = vadd.f32 %v1305, %v1353
        %v1355 = vpop.f32.mrb[0].mxu0
        %v1356 = vpop.f32.mrb[0].mxu0
        %v1357 = vadd.f32 %v1308, %v1356
        %v1358 = vpop.f32.mrb[0].mxu0
        %1359 = vmatprep.mubr.bf16.mxu0 %v610
        %1360 = vmatmul.mubr.bf16.gmra.mrb[0].mxu0 %v609
        %v1361 = vpop.f32.mrb[0].mxu0
        %v1362 = vadd.f32 %v1313, %v1361
        %v1363 = vpop.f32.mrb[0].mxu0
        %v1364 = vpop.f32.mrb[0].mxu0
        %v1365 = vadd.f32 %v1316, %v1364
        %v1366 = vpop.f32.mrb[0].mxu0
        %1367 = vdwg.mxu0
        %1368 = vmatprep.subr.bf16.mxu0 0
        %1369 = vmatpush1.bf16.msra.mxu0 %v1094
        %1370 = vmatprep.subr.bf16.mxu0 0
        %1371 = vmatpush1.bf16.msra.mxu0 %v1095
        %1372 = vmatprep.subr.bf16.mxu0 0
        %1373 = vmatpush1.bf16.msra.mxu0 %v1096
        %1374 = vmatprep.subr.bf16.mxu0 0
        %1375 = vmatpush1.bf16.msra.mxu0 %v1097
        %1376 = vmatprep.subr.bf16.mxu0 0
        %1377 = vmatpush1.bf16.msra.mxu0 %v1098
        %1378 = vmatprep.subr.bf16.mxu0 0
        %1379 = vmatpush1.bf16.msra.mxu0 %v1099
        %1380 = vmatprep.subr.bf16.mxu0 0
        %1381 = vmatpush1.bf16.msra.mxu0 %v1100
        %1382 = vmatprep.subr.bf16.mxu0 0
        %1383 = vmatpush1.bf16.msra.mxu0 %v1101
        %1384 = vmatprep.subr.bf16.mxu0 0
        %1385 = vmatpush1.bf16.msra.mxu0 %v1102
        %1386 = vmatprep.subr.bf16.mxu0 0
        %1387 = vmatpush1.bf16.msra.mxu0 %v1103
        %1388 = vmatprep.subr.bf16.mxu0 0
        %1389 = vmatpush1.bf16.msra.mxu0 %v1104
        %1390 = vmatprep.subr.bf16.mxu0 0
        %1391 = vmatpush1.bf16.msra.mxu0 %v1105
        %1392 = vmatprep.subr.bf16.mxu0 0
        %1393 = vmatpush1.bf16.msra.mxu0 %v1106
        %1394 = vmatprep.subr.bf16.mxu0 0
        %1395 = vmatpush1.bf16.msra.mxu0 %v1107
        %1396 = vmatprep.subr.bf16.mxu0 0
        %1397 = vmatpush1.bf16.msra.mxu0 %v1108
        %1398 = vmatprep.subr.bf16.mxu0 0
        %1399 = vmatpush1.bf16.msra.mxu0 %v1109
        %1400 = vmatprep.mubr.bf16.mxu0 %v599
        %1401 = vmatmul.mubr.bf16.gmra.mrb[0].mxu0 %v598
        %v1402 = vpop.f32.mrb[0].mxu0
        %v1403 = vadd.f32 %v1354, %v1402
        %v1404 = vpop.f32.mrb[0].mxu0
        %v1405 = vpop.f32.mrb[0].mxu0
        %v1406 = vadd.f32 %v1357, %v1405
        %v1407 = vpop.f32.mrb[0].mxu0
        %1408 = vmatprep.mubr.bf16.mxu0 %v612
        %1409 = vmatmul.mubr.bf16.gmra.mrb[0].mxu0 %v611
        %v1410 = vpop.f32.mrb[0].mxu0
        %v1411 = vadd.f32 %v1362, %v1410
        %v1412 = vpop.f32.mrb[0].mxu0
        %v1413 = vpop.f32.mrb[0].mxu0
        %v1414 = vadd.f32 %v1365, %v1413
        %v1415 = vpop.f32.mrb[0].mxu0
        %1416 = vdwg.mxu0
        %1417 = vmatprep.subr.bf16.mxu0 0
        %1418 = vmatpush1.bf16.msra.mxu0 %v1110
        %1419 = vmatprep.subr.bf16.mxu0 0
        %1420 = vmatpush1.bf16.msra.mxu0 %v1111
        %1421 = vmatprep.subr.bf16.mxu0 0
        %1422 = vmatpush1.bf16.msra.mxu0 %v1112
        %1423 = vmatprep.subr.bf16.mxu0 0
        %1424 = vmatpush1.bf16.msra.mxu0 %v1113
        %1425 = vmatprep.subr.bf16.mxu0 0
        %1426 = vmatpush1.bf16.msra.mxu0 %v1114
        %1427 = vmatprep.subr.bf16.mxu0 0
        %1428 = vmatpush1.bf16.msra.mxu0 %v1115
        %1429 = vmatprep.subr.bf16.mxu0 0
        %1430 = vmatpush1.bf16.msra.mxu0 %v1116
        %1431 = vmatprep.subr.bf16.mxu0 0
        %1432 = vmatpush1.bf16.msra.mxu0 %v1117
        %1433 = vmatprep.subr.bf16.mxu0 0
        %1434 = vmatpush1.bf16.msra.mxu0 %v1118
        %1435 = vmatprep.subr.bf16.mxu0 0
        %1436 = vmatpush1.bf16.msra.mxu0 %v1119
        %1437 = vmatprep.subr.bf16.mxu0 0
        %1438 = vmatpush1.bf16.msra.mxu0 %v1120
        %1439 = vmatprep.subr.bf16.mxu0 0
        %1440 = vmatpush1.bf16.msra.mxu0 %v1121
        %1441 = vmatprep.subr.bf16.mxu0 0
        %1442 = vmatpush1.bf16.msra.mxu0 %v1122
        %1443 = vmatprep.subr.bf16.mxu0 0
        %1444 = vmatpush1.bf16.msra.mxu0 %v1123
        %1445 = vmatprep.subr.bf16.mxu0 0
        %1446 = vmatpush1.bf16.msra.mxu0 %v1124
        %1447 = vmatprep.subr.bf16.mxu0 0
        %1448 = vmatpush1.bf16.msra.mxu0 %v1125
        %1449 = vmatprep.mubr.bf16.mxu0 %v601
        %1450 = vmatmul.mubr.bf16.gmra.mrb[0].mxu0 %v600
        %v1451 = vpop.f32.mrb[0].mxu0
        %v1452 = vadd.f32 %v1403, %v1451
        %v1453 = vpop.f32.mrb[0].mxu0
        %v1454 = vpop.f32.mrb[0].mxu0
        %v1455 = vadd.f32 %v1406, %v1454
        %v1456 = vpop.f32.mrb[0].mxu0
        %1457 = vmatprep.mubr.bf16.mxu0 %v614
        %1458 = vmatmul.mubr.bf16.gmra.mrb[0].mxu0 %v613
        %v1459 = vpop.f32.mrb[0].mxu0
        %v1460 = vadd.f32 %v1411, %v1459
        %v1461 = vpop.f32.mrb[0].mxu0
        %v1462 = vpop.f32.mrb[0].mxu0
        %v1463 = vadd.f32 %v1414, %v1462
        %v1464 = vpop.f32.mrb[0].mxu0
        %1465 = vdwg.mxu0
        %1466 = vmatprep.subr.bf16.mxu0 0
        %1467 = vmatpush1.bf16.msra.mxu0 %v1126
        %1468 = vmatprep.subr.bf16.mxu0 0
        %1469 = vmatpush1.bf16.msra.mxu0 %v1127
        %1470 = vmatprep.subr.bf16.mxu0 0
        %1471 = vmatpush1.bf16.msra.mxu0 %v1128
        %1472 = vmatprep.subr.bf16.mxu0 0
        %1473 = vmatpush1.bf16.msra.mxu0 %v1129
        %1474 = vmatprep.subr.bf16.mxu0 0
        %1475 = vmatpush1.bf16.msra.mxu0 %v1130
        %1476 = vmatprep.subr.bf16.mxu0 0
        %1477 = vmatpush1.bf16.msra.mxu0 %v1131
        %1478 = vmatprep.subr.bf16.mxu0 0
        %1479 = vmatpush1.bf16.msra.mxu0 %v1132
        %1480 = vmatprep.subr.bf16.mxu0 0
        %1481 = vmatpush1.bf16.msra.mxu0 %v1133
        %1482 = vmatprep.subr.bf16.mxu0 0
        %1483 = vmatpush1.bf16.msra.mxu0 %v1134
        %1484 = vmatprep.subr.bf16.mxu0 0
        %1485 = vmatpush1.bf16.msra.mxu0 %v1135
        %1486 = vmatprep.subr.bf16.mxu0 0
        %1487 = vmatpush1.bf16.msra.mxu0 %v1136
        %1488 = vmatprep.subr.bf16.mxu0 0
        %1489 = vmatpush1.bf16.msra.mxu0 %v1137
        %1490 = vmatprep.subr.bf16.mxu0 0
        %1491 = vmatpush1.bf16.msra.mxu0 %v1138
        %1492 = vmatprep.subr.bf16.mxu0 0
        %1493 = vmatpush1.bf16.msra.mxu0 %v1139
        %1494 = vmatprep.subr.bf16.mxu0 0
        %1495 = vmatpush1.bf16.msra.mxu0 %v1140
        %1496 = vmatprep.subr.bf16.mxu0 0
        %1497 = vmatpush1.bf16.msra.mxu0 %v1141
        %1498 = vmatprep.mubr.bf16.mxu0 %v603
        %1499 = vmatmul.mubr.bf16.gmra.mrb[0].mxu0 %v602
        %v1500 = vpop.f32.mrb[0].mxu0
        %v1501 = vadd.f32 %v1452, %v1500
        %v1502 = vpop.f32.mrb[0].mxu0
        %v1503 = vpop.f32.mrb[0].mxu0
        %v1504 = vadd.f32 %v1455, %v1503
        %v1505 = vpop.f32.mrb[0].mxu0
        %1506 = vmatprep.mubr.bf16.mxu0 %v616
        %1507 = vmatmul.mubr.bf16.gmra.mrb[0].mxu0 %v615
        %v1508 = vpop.f32.mrb[0].mxu0
        %v1509 = vadd.f32 %v1460, %v1508
        %v1510 = vpop.f32.mrb[0].mxu0
        %v1511 = vpop.f32.mrb[0].mxu0
        %v1512 = vadd.f32 %v1463, %v1511
        %v1513 = vpop.f32.mrb[0].mxu0
        %1514 = vdwg.mxu0
        %1515 = vmatprep.subr.bf16.mxu0 0
        %1516 = vmatpush1.bf16.msra.mxu0 %v1142
        %1517 = vmatprep.subr.bf16.mxu0 0
        %1518 = vmatpush1.bf16.msra.mxu0 %v1143
        %1519 = vmatprep.subr.bf16.mxu0 0
        %1520 = vmatpush1.bf16.msra.mxu0 %v1144
        %1521 = vmatprep.subr.bf16.mxu0 0
        %1522 = vmatpush1.bf16.msra.mxu0 %v1145
        %1523 = vmatprep.subr.bf16.mxu0 0
        %1524 = vmatpush1.bf16.msra.mxu0 %v1146
        %1525 = vmatprep.subr.bf16.mxu0 0
        %1526 = vmatpush1.bf16.msra.mxu0 %v1147
        %1527 = vmatprep.subr.bf16.mxu0 0
        %1528 = vmatpush1.bf16.msra.mxu0 %v1148
        %1529 = vmatprep.subr.bf16.mxu0 0
        %1530 = vmatpush1.bf16.msra.mxu0 %v1149
        %1531 = vmatprep.subr.bf16.mxu0 0
        %1532 = vmatpush1.bf16.msra.mxu0 %v1150
        %1533 = vmatprep.subr.bf16.mxu0 0
        %1534 = vmatpush1.bf16.msra.mxu0 %v1151
        %1535 = vmatprep.subr.bf16.mxu0 0
        %1536 = vmatpush1.bf16.msra.mxu0 %v1152
        %1537 = vmatprep.subr.bf16.mxu0 0
        %1538 = vmatpush1.bf16.msra.mxu0 %v1153
        %1539 = vmatprep.subr.bf16.mxu0 0
        %1540 = vmatpush1.bf16.msra.mxu0 %v1154
        %1541 = vmatprep.subr.bf16.mxu0 0
        %1542 = vmatpush1.bf16.msra.mxu0 %v1155
        %1543 = vmatprep.subr.bf16.mxu0 0
        %1544 = vmatpush1.bf16.msra.mxu0 %v1156
        %1545 = vmatprep.subr.bf16.mxu0 0
        %1546 = vmatpush1.bf16.msra.mxu0 %v1157
        %1547 = vmatprep.mubr.bf16.mxu0 %v605
        %1548 = vmatmul.mubr.bf16.gmra.mrb[0].mxu0 %v604
        %v1549 = vpop.f32.mrb[0].mxu0
        %v1550 = vadd.f32 %v1501, %v1549
        %v1551 = vpop.f32.mrb[0].mxu0
        %v1552 = vpop.f32.mrb[0].mxu0
        %v1553 = vadd.f32 %v1504, %v1552
        %v1554 = vpop.f32.mrb[0].mxu0
        %1555 = vmatprep.mubr.bf16.mxu0 %v618
        %1556 = vmatmul.mubr.bf16.gmra.mrb[0].mxu0 %v617
        %v1557 = vpop.f32.mrb[0].mxu0
        %v1558 = vadd.f32 %v1509, %v1557
        %v1559 = vpop.f32.mrb[0].mxu0
        %v1560 = vpop.f32.mrb[0].mxu0
        %v1561 = vadd.f32 %v1512, %v1560
        %v1562 = vpop.f32.mrb[0].mxu0
        %1563 = vdwg.mxu0
        %1564 = vmatprep.subr.bf16.mxu0 0
        %1565 = vmatpush1.bf16.msra.mxu0 %v1158
        %1566 = vmatprep.subr.bf16.mxu0 0
        %1567 = vmatpush1.bf16.msra.mxu0 %v1159
        %1568 = vmatprep.subr.bf16.mxu0 0
        %1569 = vmatpush1.bf16.msra.mxu0 %v1160
        %1570 = vmatprep.subr.bf16.mxu0 0
        %1571 = vmatpush1.bf16.msra.mxu0 %v1161
        %1572 = vmatprep.subr.bf16.mxu0 0
        %1573 = vmatpush1.bf16.msra.mxu0 %v1162
        %1574 = vmatprep.subr.bf16.mxu0 0
        %1575 = vmatpush1.bf16.msra.mxu0 %v1163
        %1576 = vmatprep.subr.bf16.mxu0 0
        %1577 = vmatpush1.bf16.msra.mxu0 %v1164
        %1578 = vmatprep.subr.bf16.mxu0 0
        %1579 = vmatpush1.bf16.msra.mxu0 %v1165
        %1580 = vmatprep.subr.bf16.mxu0 0
        %1581 = vmatpush1.bf16.msra.mxu0 0
        %1582 = vmatprep.subr.bf16.mxu0 0
        %1583 = vmatpush1.bf16.msra.mxu0 0
        %1584 = vmatprep.subr.bf16.mxu0 0
        %1585 = vmatpush1.bf16.msra.mxu0 0
        %1586 = vmatprep.subr.bf16.mxu0 0
        %1587 = vmatpush1.bf16.msra.mxu0 0
        %1588 = vmatprep.subr.bf16.mxu0 0
        %1589 = vmatpush1.bf16.msra.mxu0 0
        %1590 = vmatprep.subr.bf16.mxu0 0
        %1591 = vmatpush1.bf16.msra.mxu0 0
        %1592 = vmatprep.subr.bf16.mxu0 0
        %1593 = vmatpush1.bf16.msra.mxu0 0
        %1594 = vmatprep.subr.bf16.mxu0 0
        %1595 = vmatpush1.bf16.msra.mxu0 0
        %1596 = vmatprep.mubr.bf16.mxu0 0
        %1597 = vmatmul.mubr.bf16.gmra.mrb[0].mxu0 %v606
        %v1598 = vpop.f32.mrb[0].mxu0
        %v1599 = vadd.f32 %v1550, %v1598
        %v1600 = vpop.f32.mrb[0].mxu0
        %v1601 = vpop.f32.mrb[0].mxu0
        %v1602 = vadd.f32 %v1553, %v1601
        %v1603 = vpop.f32.mrb[0].mxu0
        %1604 = vmatprep.mubr.bf16.mxu0 0
        %1605 = vmatmul.mubr.bf16.gmra.mrb[0].mxu0 %v619
        %v1606 = vpop.f32.mrb[0].mxu0
        %v1607 = vadd.f32 %v1558, %v1606
        %v1608 = vpop.f32.mrb[0].mxu0
        %v1609 = vpop.f32.mrb[0].mxu0
        %v1610 = vadd.f32 %v1561, %v1609
        %v1611 = vpop.f32.mrb[0].mxu0
        %1612 = vdwg.mxu0
        %v1613 = vmax.f32 %v1599, %v1602
        %v1614 = vmax.f32 %v1607, %v1610
        %v1615 = vmax.f32 %v1613, %v1614
        %v1616 = vld [vmem:[%s2] sm:$0x1]
        %v1618 = vlaneseq
        %v1619 = vshrl.u32 %v1618, 7
        %v1620 = vsub.s32 0, %v1619
        %v1621 = vrot.slane %v1616, %v1620
        %v1623 = vadd.f32 %v1615, %v1621
        %v1624 = vmax.f32 %v1623, 0.0
        %v1625 = vpack.c.bf16 %v1624, %v1624
        %v1626 = vld [vmem:[%s3] sm:$0xf]
        %v1627 = vld [vmem:[%s3 + $0x4] sm:$0xf]
        %v1628 = vld [vmem:[%s3 + $0x8] sm:$0xf]
        %v1629 = vld [vmem:[%s3 + $0xc] sm:$0xf]
        %v1630 = vld [vmem:[%s3 + $0x10] sm:$0xf]
        %v1631 = vld [vmem:[%s3 + $0x14] sm:$0xf]
        %v1632 = vld [vmem:[%s3 + $0x18] sm:$0xf]
        %v1633 = vld [vmem:[%s3 + $0x1c] sm:$0xf]
        %v1634 = vld [vmem:[%s3 + $0x20] sm:$0xf]
        %v1635 = vld [vmem:[%s3 + $0x24] sm:$0xf]
        %v1636 = vld [vmem:[%s3 + $0x28] sm:$0xf]
        %v1637 = vld [vmem:[%s3 + $0x2c] sm:$0xf]
        %v1638 = vld [vmem:[%s3 + $0x30] sm:$0xf]
        %v1639 = vld [vmem:[%s3 + $0x34] sm:$0xf]
        %v1640 = vld [vmem:[%s3 + $0x38] sm:$0xf]
        %v1641 = vld [vmem:[%s3 + $0x3c] sm:$0xf]
        %v1642 = vld [vmem:[%s4] sm:$0x1]
        %v1644 = vlaneseq
        %v1645 = vshrl.u32 %v1644, 7
        %v1646 = vsub.s32 0, %v1645
        %v1647 = vrot.slane %v1642, %v1646
        %v1665 = vunpack.c.l.b16 %v1626
        %v1666 = vunpack.c.l.b16 %v1627
        %v1667 = vunpack.c.l.b16 %v1628
        %v1668 = vunpack.c.l.b16 %v1629
        %v1669 = vunpack.c.l.b16 %v1630
        %v1670 = vunpack.c.l.b16 %v1631
        %v1671 = vunpack.c.l.b16 %v1632
        %v1672 = vunpack.c.l.b16 %v1633
        %v1673 = vunpack.c.l.b16 %v1634
        %v1674 = vunpack.c.l.b16 %v1635
        %v1675 = vunpack.c.l.b16 %v1636
        %v1676 = vunpack.c.l.b16 %v1637
        %v1677 = vunpack.c.l.b16 %v1638
        %v1678 = vunpack.c.l.b16 %v1639
        %v1679 = vunpack.c.l.b16 %v1640
        %v1680 = vunpack.c.l.b16 %v1641
        %v1681 = vpack.c.b16 %v1666, %v1665
        %v1682 = vpack.c.b16 %v1668, %v1667
        %v1683 = vpack.c.b16 %v1670, %v1669
        %v1684 = vpack.c.b16 %v1672, %v1671
        %v1685 = vpack.c.b16 %v1674, %v1673
        %v1686 = vpack.c.b16 %v1676, %v1675
        %v1687 = vpack.c.b16 %v1678, %v1677
        %v1688 = vpack.c.b16 %v1680, %v1679
        %1697 = vmatprep.subr.bf16.mxu0 0
        %1698 = vmatpush1.bf16.msra.mxu0 %v1681
        %1699 = vmatprep.subr.bf16.mxu0 0
        %1700 = vmatpush1.bf16.msra.mxu0 %v1682
        %1701 = vmatprep.subr.bf16.mxu0 0
        %1702 = vmatpush1.bf16.msra.mxu0 %v1683
        %1703 = vmatprep.subr.bf16.mxu0 0
        %1704 = vmatpush1.bf16.msra.mxu0 %v1684
        %1705 = vmatprep.subr.bf16.mxu0 0
        %1706 = vmatpush1.bf16.msra.mxu0 %v1685
        %1707 = vmatprep.subr.bf16.mxu0 0
        %1708 = vmatpush1.bf16.msra.mxu0 %v1686
        %1709 = vmatprep.subr.bf16.mxu0 0
        %1710 = vmatpush1.bf16.msra.mxu0 %v1687
        %1711 = vmatprep.subr.bf16.mxu0 0
        %1712 = vmatpush1.bf16.msra.mxu0 %v1688
        %1713 = vmatprep.subr.bf16.mxu0 0
        %1714 = vmatpush1.bf16.msra.mxu0 0
        %1715 = vmatprep.subr.bf16.mxu0 0
        %1716 = vmatpush1.bf16.msra.mxu0 0
        %1717 = vmatprep.subr.bf16.mxu0 0
        %1718 = vmatpush1.bf16.msra.mxu0 0
        %1719 = vmatprep.subr.bf16.mxu0 0
        %1720 = vmatpush1.bf16.msra.mxu0 0
        %1721 = vmatprep.subr.bf16.mxu0 0
        %1722 = vmatpush1.bf16.msra.mxu0 0
        %1723 = vmatprep.subr.bf16.mxu0 0
        %1724 = vmatpush1.bf16.msra.mxu0 0
        %1725 = vmatprep.subr.bf16.mxu0 0
        %1726 = vmatpush1.bf16.msra.mxu0 0
        %1727 = vmatprep.subr.bf16.mxu0 0
        %1728 = vmatpush1.bf16.msra.mxu0 0
        %1729 = vmatprep.mubr.bf16.mxu0 0
        %1730 = vmatmul.mubr.bf16.gmra.mrb[0].mxu0 %v1625
        %v1731 = vpop.f32.mrb[0].mxu0
        %v1732 = vadd.f32 %v1647, %v1731
        %v1733 = vpop.f32.mrb[0].mxu0
        %v1734 = vpop.f32.mrb[0].mxu0
        %v1735 = vpop.f32.mrb[0].mxu0
        %1736 = vdwg.mxu0
        %v1737 = vmax.f32 %v1732, 0.0
        %v1738 = vpack.c.bf16 %v1737, %v1737
        %v1739 = vld [vmem:[%s5] sm:$0xf]
        %v1740 = vld [vmem:[%s5 + $0x4] sm:$0xf]
        %v1741 = vld [vmem:[%s5 + $0x8] sm:$0xf]
        %v1742 = vld [vmem:[%s5 + $0xc] sm:$0xf]
        %v1743 = vld [vmem:[%s5 + $0x10] sm:$0xf]
        %v1744 = vld [vmem:[%s5 + $0x14] sm:$0xf]
        %v1745 = vld [vmem:[%s5 + $0x18] sm:$0xf]
        %v1746 = vld [vmem:[%s5 + $0x1c] sm:$0xf]
        %v1747 = vld [vmem:[%s6] sm:$0x1]
        %v1749 = vlaneseq
        %v1750 = vshrl.u32 %v1749, 7
        %v1751 = vsub.s32 0, %v1750
        %v1752 = vrot.slane %v1747, %v1751
        %v1762 = vunpack.c.l.b16 %v1739
        %v1763 = vunpack.c.l.b16 %v1740
        %v1764 = vunpack.c.l.b16 %v1741
        %v1765 = vunpack.c.l.b16 %v1742
        %v1766 = vunpack.c.l.b16 %v1743
        %v1767 = vunpack.c.l.b16 %v1744
        %v1768 = vunpack.c.l.b16 %v1745
        %v1769 = vunpack.c.l.b16 %v1746
        %v1770 = vpack.c.b16 %v1763, %v1762
        %v1771 = vpack.c.b16 %v1765, %v1764
        %v1772 = vpack.c.b16 %v1767, %v1766
        %v1773 = vpack.c.b16 %v1769, %v1768
        %vm1778 = vcmask 523264
        %v1780 = vsel %vm1778, %v1738, 0
        %1782 = vmatprep.subr.bf16.mxu0 0
        %1783 = vmatpush1.bf16.msra.mxu0 %v1770
        %1784 = vmatprep.subr.bf16.mxu0 0
        %1785 = vmatpush1.bf16.msra.mxu0 %v1771
        %1786 = vmatprep.subr.bf16.mxu0 0
        %1787 = vmatpush1.bf16.msra.mxu0 %v1772
        %1788 = vmatprep.subr.bf16.mxu0 0
        %1789 = vmatpush1.bf16.msra.mxu0 %v1773
        %1790 = vmatprep.subr.bf16.mxu0 0
        %1791 = vmatpush1.bf16.msra.mxu0 0
        %1792 = vmatprep.subr.bf16.mxu0 0
        %1793 = vmatpush1.bf16.msra.mxu0 0
        %1794 = vmatprep.subr.bf16.mxu0 0
        %1795 = vmatpush1.bf16.msra.mxu0 0
        %1796 = vmatprep.subr.bf16.mxu0 0
        %1797 = vmatpush1.bf16.msra.mxu0 0
        %1798 = vmatprep.subr.bf16.mxu0 0
        %1799 = vmatpush1.bf16.msra.mxu0 0
        %1800 = vmatprep.subr.bf16.mxu0 0
        %1801 = vmatpush1.bf16.msra.mxu0 0
        %1802 = vmatprep.subr.bf16.mxu0 0
        %1803 = vmatpush1.bf16.msra.mxu0 0
        %1804 = vmatprep.subr.bf16.mxu0 0
        %1805 = vmatpush1.bf16.msra.mxu0 0
        %1806 = vmatprep.subr.bf16.mxu0 0
        %1807 = vmatpush1.bf16.msra.mxu0 0
        %1808 = vmatprep.subr.bf16.mxu0 0
        %1809 = vmatpush1.bf16.msra.mxu0 0
        %1810 = vmatprep.subr.bf16.mxu0 0
        %1811 = vmatpush1.bf16.msra.mxu0 0
        %1812 = vmatprep.subr.bf16.mxu0 0
        %1813 = vmatpush1.bf16.msra.mxu0 0
        %1814 = vmatprep.mubr.bf16.mxu0 0
        %1815 = vmatmul.mubr.bf16.gmra.mrb[0].mxu0 %v1780
        %v1816 = vpop.f32.mrb[0].mxu0
        %v1817 = vadd.f32 %v1752, %v1816
        %v1818 = vpop.f32.mrb[0].mxu0
        %v1819 = vpop.f32.mrb[0].mxu0
        %v1820 = vpop.f32.mrb[0].mxu0
        %1821 = vdwg.mxu0
        %1822 = vmax.xlane.f32.xlu0 %v1817
        %v1823 = vpop.xlane.xlu0 %1822
        %v1824 = vsub.f32 %v1817, %v1823
        %v1825 = vmul.f32 %v1824, 1.442695
        %v1826 = vpow.pop %v1825
        %1827 = vadd.xlane.f32.xlu0 %v1826
        %v1828 = vpop.xlane.xlu0 %1827
        %v1829 = vlog2.pop %v1828
        %v1830 = vmul.f32 %v1829, 0.6931472
        %v1831 = vadd.f32 %v1830, %v1823
        %v1832 = vsub.f32 %v1817, %v1831
        %1833 = vst [vmem:[%s271] sm:$0xff] %v1832
        %s1834 = sand.u32 %s181, 1
        %s1835 = scalar_lea.sflag [#allocation3], %s1834
        %s1836 = sand.u32 %s181, 1
        %s1837 = smul.addr %s1836, 8
        %s1838 = scalar_lea.vmem [#allocation2], %s1837
        // Predicated region
        $region49: #{fashion_convnet_forward.3} parent=47 // pred_check
          %p1839 = pneg %p191
        $region50: #{fashion_convnet_forward.3} parent=47 // pred_check_branch
          %1841 = sbr.rel (%p1839) target = $region52
        $region51: #{fashion_convnet_forward.3} parent=47 // pred_region
          %s1843 = ssub.s32 128, 128
          %1844 = vsyncadd %s1835, %s1843
          %s1845 = smul.addr %s21, 128
          %s1846 = scalar_lea.hbm %s7, %s1845
          %s1848 = sshll.u32 %s1838, 4
          %s1849 = int_to_ptr.vmem [resolvable:$true] %s1848
          %1851 = dma.vmem_to_hbm [thread:$0]  %s1849, 128, %s1846, %s1835
        $region52: #{fashion_convnet_forward.3} parent=47 // pred_fallthru
          _
      $region48: #{fashion_convnet_forward.3} parent=5 // pred_fallthru
        _
      %p1852 = scmp.le.s32.totalorder 2, %s16
      // Predicated region
      $region53: #{fashion_convnet_forward.3} parent=5 // pred_check
        %p1853 = pneg %p1852
      $region54: #{fashion_convnet_forward.3} parent=5 // pred_check_branch
        %1855 = sbr.rel (%p1853) target = $region56
      $region55: #{fashion_convnet_forward.3} parent=5 // pred_region
        %s1856 = ssub.s32 %s16, 2
        // Predicated region
        $region57: #{fashion_convnet_forward.3} parent=55 // pred_check
          %p1857 = pneg %p197
        $region58: #{fashion_convnet_forward.3} parent=55 // pred_check_branch
          %1859 = sbr.rel (%p1857) target = $region60
        $region59: #{fashion_convnet_forward.3} parent=55 // pred_region
          %s1860 = sand.u32 %s182, 1
          %s1861 = scalar_lea.sflag [#allocation3], %s1860
          %s1862 = sand.u32 %s182, 1
          %s1863 = smul.addr %s1862, 8
          %s1864 = scalar_lea.vmem [#allocation2], %s1863
          %1865 = dma.done %s1861, 128
        $region60: #{fashion_convnet_forward.3} parent=55 // pred_fallthru
          _
      $region56: #{fashion_convnet_forward.3} parent=5 // pred_fallthru
        _
    $region6: #{fashion_convnet_forward.3} parent=1 // loop_footer
      %s20 = sadd.s32 1, %s16
    $region7: #{fashion_convnet_forward.3} parent=1 // loop_footer_branch
      %15 = sbr.rel target = $region3
    $region8: #{fashion_convnet_forward.3} parent=1 // loop_exit
      _
    %1866 = vsyncpa [#allocation3], 1
    %s1867 = scalar_lea.sflag [#allocation3], 1
    %1868 = vsyncpa %s1867, 1

</llo_original>
